<compile_context>
chip_gen: v5e
topology: v5e:2x2
jax: 0.10.0
libtpu: 0.0.40
codegen_flags: <defaults>
</compile_context>

<pallas_src>
import functools
import math

import jax
import jax.numpy as jnp
from jax import lax
from jax.experimental import pallas as pl
from jax.experimental.pallas import tpu as pltpu


# --------------------------------------------------------------------------
# Per-generation tiling / VMEM budget
# --------------------------------------------------------------------------

def _vmem_capacity_bytes(default=64 * 1024 * 1024):
    """Physical VMEM per core; conservative default if the query fails."""
    try:
        info = pltpu.get_tpu_info()
        cap = getattr(info, "vmem_capacity_bytes", None)
        if cap:
            return int(cap)
    except Exception:
        pass
    return default


_VMEM_CAP = _vmem_capacity_bytes()
_BIG_VMEM = _VMEM_CAP >= 100 * 1024 * 1024          # v5e / v6e 128 MiB parts
_VMEM_LIMIT = min((96 if _BIG_VMEM else 40) * 1024 * 1024, (_VMEM_CAP * 3) // 4)
_TM_CANDIDATES = ((512, 256, 128, 64, 32, 16, 8) if _BIG_VMEM
                  else (256, 128, 64, 32, 16, 8))
_TN_CANDIDATES = (512, 256, 128) if _BIG_VMEM else (256, 128)


def _pick_tile(dim, candidates):
    """Largest candidate that divides dim, else the full dim (always legal)."""
    for c in candidates:
        if dim % c == 0:
            return c
    return dim


# --------------------------------------------------------------------------
# Fused linear kernel:  o = [LN](x) @ W (+ bias) (+ tanh-GELU) (+ residual)
# K (the contraction dim) is kept whole so LayerNorm over the feature dim can
# be fused into the prologue; bf16 MXU operands, f32 accumulation & epilogue.
# --------------------------------------------------------------------------

def _fused_linear_kernel(*refs, has_ln, has_bias, has_residual, apply_gelu, eps):
    refs = list(refs)
    x_ref = refs.pop(0)
    w_ref = refs.pop(0)
    g_ref = refs.pop(0) if has_ln else None
    bln_ref = refs.pop(0) if has_ln else None
    bias_ref = refs.pop(0) if has_bias else None
    res_ref = refs.pop(0) if has_residual else None
    o_ref = refs.pop(0)

    x = x_ref[...]                                           # (tm, K)
    if has_ln:
        xf = x.astype(jnp.float32)
        mean = jnp.mean(xf, axis=-1, keepdims=True)
        xc = xf - mean
        var = jnp.mean(xc * xc, axis=-1, keepdims=True)
        x = ((xc * lax.rsqrt(var + eps)) * g_ref[...] + bln_ref[...]
             ).astype(jnp.bfloat16)
    elif x.dtype != jnp.bfloat16:
        x = x.astype(jnp.bfloat16)

    # bf16 operands, f32 accumulate on the MXU.
    acc = jnp.dot(x, w_ref[...], preferred_element_type=jnp.float32)  # (tm, tn)

    if has_bias:
        acc = acc + bias_ref[...]
    if apply_gelu:
        # GELU(approximate='tanh')
        c = 0.7978845608028654  # sqrt(2/pi)
        acc = 0.5 * acc * (1.0 + jnp.tanh(c * (acc + 0.044715 * acc * acc * acc)))
    if has_residual:
        acc = acc + res_ref[...]
    o_ref[...] = acc.astype(o_ref.dtype)


def fused_linear(x2d, w, bias=None, *, ln=None, residual=None,
                 apply_gelu=False, eps=1e-5, out_dtype=jnp.float32):
    """x2d: [M, K] f32/bf16, w: [K, N] bf16, bias: [N] | None.
    ln: optional (gamma, beta) applied to x before the matmul.
    residual: optional [M, N] f32 added in the epilogue.
    Returns [M, N] out_dtype."""
    M, K = x2d.shape
    Kw, N = w.shape
    assert K == Kw and M % 8 == 0
    if w.dtype != jnp.bfloat16:
        w = w.astype(jnp.bfloat16)

    tm = _pick_tile(M, _TM_CANDIDATES)
    tn = _pick_tile(N, _TN_CANDIDATES)

    has_ln = ln is not None
    has_bias = bias is not None
    has_res = residual is not None
    if has_res:
        assert residual.shape == (M, N)

    # HBM-traffic estimate decides which operand stays resident across the
    # inner grid axis (the other one is re-streamed each outer step).  For
    # weight-dominated layers (lm_head with a real vocab) the weight matrix
    # is then streamed from HBM exactly once.
    x_bytes = jnp.dtype(x2d.dtype).itemsize
    traffic_x_stationary = M * K * x_bytes + (M // tm) * K * N * 2
    traffic_w_stationary = K * N * 2 + (N // tn) * M * K * x_bytes
    weight_stationary = traffic_w_stationary < traffic_x_stationary

    if weight_stationary:
        grid = (N // tn, M // tm)
        x_map = lambda j, i: (i, 0)
        w_map = lambda j, i: (0, j)
        vec_map = lambda j, i: (0, j)     # bias
        ln_map = lambda j, i: (0, 0)
        mn_map = lambda j, i: (i, j)      # residual / output
    else:
        grid = (M // tm, N // tn)
        x_map = lambda i, j: (i, 0)
        w_map = lambda i, j: (0, j)
        vec_map = lambda i, j: (0, j)
        ln_map = lambda i, j: (0, 0)
        mn_map = lambda i, j: (i, j)

    inputs = [x2d, w]
    in_specs = [
        pl.BlockSpec((tm, K), x_map),
        pl.BlockSpec((K, tn), w_map),
    ]
    if has_ln:
        g, b_ln = ln
        inputs += [g.reshape(1, K).astype(jnp.float32),
                   b_ln.reshape(1, K).astype(jnp.float32)]
        in_specs += [pl.BlockSpec((1, K), ln_map),
                     pl.BlockSpec((1, K), ln_map)]
    if has_bias:
        inputs.append(bias.reshape(1, N).astype(jnp.float32))
        in_specs.append(pl.BlockSpec((1, tn), vec_map))
    if has_res:
        inputs.append(residual)
        in_specs.append(pl.BlockSpec((tm, tn), mn_map))

    kernel = functools.partial(
        _fused_linear_kernel, has_ln=has_ln, has_bias=has_bias,
        has_residual=has_res, apply_gelu=apply_gelu, eps=eps)

    return pl.pallas_call(
        kernel,
        out_shape=jax.ShapeDtypeStruct((M, N), out_dtype),
        grid_spec=pltpu.PrefetchScalarGridSpec(
            num_scalar_prefetch=0,
            grid=grid,
            in_specs=in_specs,
            out_specs=pl.BlockSpec((tm, tn), mn_map),
        ),
        compiler_params=pltpu.CompilerParams(
            dimension_semantics=("parallel", "parallel"),
            vmem_limit_bytes=_VMEM_LIMIT,
        ),
    )(*inputs)


# --------------------------------------------------------------------------
# Standalone LayerNorm (used once for ln_f so it is not recomputed for every
# vocab tile of the lm_head; emits bf16 to halve the lm_head activation DMA).
# --------------------------------------------------------------------------

def _layernorm_kernel(x_ref, g_ref, b_ref, o_ref, *, eps):
    x = x_ref[...].astype(jnp.float32)
    mean = jnp.mean(x, axis=-1, keepdims=True)
    xc = x - mean
    var = jnp.mean(xc * xc, axis=-1, keepdims=True)
    y = xc * lax.rsqrt(var + eps) * g_ref[...] + b_ref[...]
    o_ref[...] = y.astype(o_ref.dtype)


def layernorm(x2d, gamma, beta, *, eps=1e-5, out_dtype=jnp.bfloat16):
    M, K = x2d.shape
    tm = _pick_tile(M, _TM_CANDIDATES)
    kernel = functools.partial(_layernorm_kernel, eps=eps)
    return pl.pallas_call(
        kernel,
        out_shape=jax.ShapeDtypeStruct((M, K), out_dtype),
        grid_spec=pltpu.PrefetchScalarGridSpec(
            num_scalar_prefetch=0,
            grid=(M // tm,),
            in_specs=[pl.BlockSpec((tm, K), lambda i: (i, 0)),
                      pl.BlockSpec((1, K), lambda i: (0, 0)),
                      pl.BlockSpec((1, K), lambda i: (0, 0))],
            out_specs=pl.BlockSpec((tm, K), lambda i: (i, 0)),
        ),
        compiler_params=pltpu.CompilerParams(
            dimension_semantics=("parallel",),
            vmem_limit_bytes=_VMEM_LIMIT,
        ),
    )(x2d, gamma.reshape(1, K).astype(jnp.float32),
      beta.reshape(1, K).astype(jnp.float32))


# --------------------------------------------------------------------------
# Causal self-attention: one batch per grid step, fed directly from the fused
# (bf16) qkv buffer.  q/k/v are loaded as three lane-aligned (T, C) slabs,
# per-head split is done on in-register values, and the output is a single
# lane-dense (T, C) store.
# --------------------------------------------------------------------------

def _attention_kernel(qkv_ref, o_ref, *, n_head, scale):
    T = qkv_ref.shape[1]
    C = qkv_ref.shape[2] // 3
    Dh = C // n_head

    # Lane-aligned full-slab loads (C is a multiple of 128); no masked vld.
    q = qkv_ref[0, :, 0:C]           # (T, C) bf16
    k = qkv_ref[0, :, C:2 * C]       # (T, C) bf16
    v = qkv_ref[0, :, 2 * C:3 * C]   # (T, C) bf16

    row = lax.broadcasted_iota(jnp.int32, (T, T), 0)
    col = lax.broadcasted_iota(jnp.int32, (T, T), 1)
    causal = col <= row  # diagonal always unmasked -> softmax never all -inf

    ys = []
    for h in range(n_head):
        qh = q[:, h * Dh:(h + 1) * Dh]
        kh = k[:, h * Dh:(h + 1) * Dh]
        vh = v[:, h * Dh:(h + 1) * Dh]

        # scores = qh @ kh^T (contract Dh), bf16 operands, f32 accumulate
        s = lax.dot_general(qh, kh, (((1,), (1,)), ((), ())),
                            preferred_element_type=jnp.float32) * scale  # (T, T)
        s = jnp.where(causal, s, -jnp.inf)

        m = jnp.max(s, axis=-1, keepdims=True)
        p = jnp.exp(s - m)
        l = jnp.sum(p, axis=-1, keepdims=True)
        y = jnp.dot(p.astype(jnp.bfloat16), vh,
                    preferred_element_type=jnp.float32)                  # (T, Dh)
        ys.append(y * pl.reciprocal(l, approx=True))

    # Single lane-dense (T, C) store instead of per-head 32-lane masked stores.
    o_ref[0, :, :] = jnp.concatenate(ys, axis=-1).astype(o_ref.dtype)


def causal_self_attention(qkv, n_head):
    """qkv: [B, T, 3C] bf16 -> [B, T, C] bf16 (multi-head causal attention)."""
    B, T, C3 = qkv.shape
    C = C3 // 3
    Dh = C // n_head
    scale = 1.0 / math.sqrt(Dh)
    # TODO(synk): flash-style online softmax over KV tiles (and head-packed
    # MXU passes) is needed before scaling T much beyond a few hundred;
    # full (T, T) scores per head are fine at block_size <= 128.
    kernel = functools.partial(_attention_kernel, n_head=n_head, scale=scale)
    return pl.pallas_call(
        kernel,
        out_shape=jax.ShapeDtypeStruct((B, T, C), qkv.dtype),
        grid_spec=pltpu.PrefetchScalarGridSpec(
            num_scalar_prefetch=0,
            grid=(B,),
            in_specs=[pl.BlockSpec((1, T, C3), lambda b: (b, 0, 0))],
            out_specs=pl.BlockSpec((1, T, C), lambda b: (b, 0, 0)),
        ),
        compiler_params=pltpu.CompilerParams(
            dimension_semantics=("parallel",),
            vmem_limit_bytes=_VMEM_LIMIT,
        ),
    )(qkv)


# --------------------------------------------------------------------------
# Parameter init (deterministic, mirrors GPT._init_weights; weights bf16)
# --------------------------------------------------------------------------

def init_params(key, cfg):
    V, Bs, L, C = (cfg["vocab_size"], cfg["block_size"], cfg["n_layer"],
                   cfg["n_embd"])
    std = 0.02
    proj_std = 0.02 * (2 * L) ** -0.5

    keys = iter(jax.random.split(key, 2 + 4 * L))
    wte = std * jax.random.normal(next(keys), (V, C), jnp.float32)
    params = {
        "wte": wte,                                        # [V, C] f32 (embedding gather)
        "wpe": std * jax.random.normal(next(keys), (Bs, C), jnp.float32),
        # lm_head weight tied to wte; pre-transposed ONCE at init (no per-call .T)
        "lm_head_w": wte.T.astype(jnp.bfloat16),           # [C, V] bf16
        "lnf_g": jnp.ones((C,), jnp.float32),
        "lnf_b": jnp.zeros((C,), jnp.float32),
    }

    blocks = []
    for _ in range(L):
        blk = {
            "ln1_g": jnp.ones((C,), jnp.float32),
            "ln1_b": jnp.zeros((C,), jnp.float32),
            # weights stored (in, out) in bf16 so kernels compute x @ W directly
            "attn_w": (std * jax.random.normal(next(keys), (C, 3 * C), jnp.float32)
                       ).astype(jnp.bfloat16),
            "attn_b": jnp.zeros((3 * C,), jnp.float32),
            "attn_proj_w": (proj_std * jax.random.normal(next(keys), (C, C), jnp.float32)
                            ).astype(jnp.bfloat16),
            "attn_proj_b": jnp.zeros((C,), jnp.float32),
            "ln2_g": jnp.ones((C,), jnp.float32),
            "ln2_b": jnp.zeros((C,), jnp.float32),
            "fc_w": (std * jax.random.normal(next(keys), (C, 4 * C), jnp.float32)
                     ).astype(jnp.bfloat16),
            "fc_b": jnp.zeros((4 * C,), jnp.float32),
            # MLP c_proj uses the misspelled attr in the torch code, so it gets
            # plain std=0.02 init (not the scaled one)
            "mlp_proj_w": (std * jax.random.normal(next(keys), (4 * C, C), jnp.float32)
                           ).astype(jnp.bfloat16),
            "mlp_proj_b": jnp.zeros((C,), jnp.float32),
        }
        blocks.append(blk)
    params["blocks"] = blocks
    return params


# --------------------------------------------------------------------------
# Forward pass
# --------------------------------------------------------------------------

def gpt_forward(params, idx, cfg):
    B, T = idx.shape
    H, C = cfg["n_head"], cfg["n_embd"]
    assert T <= cfg["block_size"]

    # embeddings (gather is glue)
    tok_emb = jnp.take(params["wte"], idx, axis=0)           # [B, T, C]
    pos_emb = params["wpe"][:T]                               # [T, C]
    x2d = (tok_emb + pos_emb[None, :, :]).reshape(B * T, C)   # residual stream, f32

    for blk in params["blocks"]:
        # ---- attention sub-block: x = x + c_proj(attn(c_attn(ln_1(x)))) ----
        qkv = fused_linear(x2d, blk["attn_w"], blk["attn_b"],
                           ln=(blk["ln1_g"], blk["ln1_b"]),
                           out_dtype=jnp.bfloat16)                   # [B*T, 3C] bf16
        y = causal_self_attention(qkv.reshape(B, T, 3 * C), H)       # [B, T, C] bf16
        x2d = fused_linear(y.reshape(B * T, C), blk["attn_proj_w"],
                           blk["attn_proj_b"], residual=x2d)         # [B*T, C] f32

        # ---- MLP sub-block: x = x + c_proj(gelu(c_fc(ln_2(x)))) ----
        h = fused_linear(x2d, blk["fc_w"], blk["fc_b"],
                         ln=(blk["ln2_g"], blk["ln2_b"]),
                         apply_gelu=True, out_dtype=jnp.bfloat16)    # [B*T, 4C] bf16
        x2d = fused_linear(h, blk["mlp_proj_w"], blk["mlp_proj_b"],
                           residual=x2d)                             # [B*T, C] f32

    # ln_f computed ONCE (bf16) instead of being recomputed per vocab tile of
    # the lm_head matmul; lm_head has no bias, weight tied to wte.
    x_ln = layernorm(x2d, params["lnf_g"], params["lnf_b"],
                     out_dtype=jnp.bfloat16)                         # [B*T, C] bf16
    logits = fused_linear(x_ln, params["lm_head_w"], None)           # [B*T, V] f32
    # TODO(synk): optional cross-entropy loss path (targets != None) not implemented.
    return logits.reshape(B, T, -1)


# --------------------------------------------------------------------------
# Main
# --------------------------------------------------------------------------

if __name__ == "__main__":
    # small, Pallas-friendly config consistent with the GPT module
    cfg = dict(block_size=64, vocab_size=512, n_layer=2, n_head=4, n_embd=128)
    B, T = 2, 32

    params = init_params(jax.random.PRNGKey(0), cfg)
    idx = jax.random.randint(jax.random.PRNGKey(1), (B, T), 0, cfg["vocab_size"],
                             dtype=jnp.int32)

    forward = jax.jit(functools.partial(gpt_forward, cfg=cfg))
    logits = jax.block_until_ready(forward(params, idx))

    assert logits.shape == (B, T, cfg["vocab_size"])
    assert bool(jnp.all(jnp.isfinite(logits)))
    print("KERNEL_OK")
</pallas_src>

<mosaic_0001>
module attributes {stable_mosaic.version = 11 : i64} {
  func.func @_fused_linear_kernel(%arg0: i32, %arg1: i32, %arg2: memref<64x128xf32, #tpu.memory_space<vmem>>, %arg3: memref<128x256xbf16, #tpu.memory_space<vmem>>, %arg4: memref<1x128xf32, #tpu.memory_space<vmem>>, %arg5: memref<1x128xf32, #tpu.memory_space<vmem>>, %arg6: memref<1x256xf32, #tpu.memory_space<vmem>>, %arg7: memref<64x256xbf16, #tpu.memory_space<vmem>>) attributes {dimension_semantics = [#tpu.dimension_semantics<parallel>, #tpu.dimension_semantics<parallel>], iteration_bounds = array<i64: 1, 2>, scalar_prefetch = 0 : i64, scratch_operands = 0 : i64, tpu.core_type = #tpu.core_type<tc>, window_params = [{transform_indices = @transform_0, window_bounds = array<i64: 64, 128>}, {transform_indices = @transform_1, window_bounds = array<i64: 128, 256>}, {pipeline_mode = #tpu.pipeline_mode<synchronous>, transform_indices = @transform_2, window_bounds = array<i64: 1, 128>}, {pipeline_mode = #tpu.pipeline_mode<synchronous>, transform_indices = @transform_3, window_bounds = array<i64: 1, 128>}, {transform_indices = @transform_4, window_bounds = array<i64: 1, 256>}, {transform_indices = @transform_5, window_bounds = array<i64: 64, 256>}]} {
    %c0 = arith.constant 0 : index
    %c0_0 = arith.constant 0 : index
    %0 = vector.load %arg2[%c0, %c0_0] : memref<64x128xf32, #tpu.memory_space<vmem>>, vector<64x128xf32>
    %cst = arith.constant dense<0.000000e+00> : vector<64xf32>
    %1 = vector.multi_reduction <add>, %0, %cst [1] : vector<64x128xf32> to vector<64xf32>
    %2 = vector.shape_cast %1 : vector<64xf32> to vector<64x1xf32>
    %cst_1 = arith.constant 1.280000e+02 : f32
    %3 = vector.broadcast %cst_1 : f32 to vector<64x1xf32>
    %4 = arith.divf %2, %3 : vector<64x1xf32>
    %5 = vector.broadcast %4 : vector<64x1xf32> to vector<64x128xf32>
    %6 = arith.subf %0, %5 : vector<64x128xf32>
    %7 = arith.mulf %6, %6 : vector<64x128xf32>
    %cst_2 = arith.constant dense<0.000000e+00> : vector<64xf32>
    %8 = vector.multi_reduction <add>, %7, %cst_2 [1] : vector<64x128xf32> to vector<64xf32>
    %9 = vector.shape_cast %8 : vector<64xf32> to vector<64x1xf32>
    %cst_3 = arith.constant 1.280000e+02 : f32
    %10 = vector.broadcast %cst_3 : f32 to vector<64x1xf32>
    %11 = arith.divf %9, %10 : vector<64x1xf32>
    %cst_4 = arith.constant 9.99999974E-6 : f32
    %12 = vector.broadcast %cst_4 : f32 to vector<64x1xf32>
    %13 = arith.addf %11, %12 : vector<64x1xf32>
    %14 = math.rsqrt %13 : vector<64x1xf32>
    %15 = vector.broadcast %14 : vector<64x1xf32> to vector<64x128xf32>
    %16 = arith.mulf %6, %15 : vector<64x128xf32>
    %c0_5 = arith.constant 0 : index
    %c0_6 = arith.constant 0 : index
    %17 = vector.load %arg4[%c0_5, %c0_6] : memref<1x128xf32, #tpu.memory_space<vmem>>, vector<1x128xf32>
    %18 = vector.broadcast %17 : vector<1x128xf32> to vector<64x128xf32>
    %19 = arith.mulf %16, %18 : vector<64x128xf32>
    %c0_7 = arith.constant 0 : index
    %c0_8 = arith.constant 0 : index
    %20 = vector.load %arg5[%c0_7, %c0_8] : memref<1x128xf32, #tpu.memory_space<vmem>>, vector<1x128xf32>
    %21 = vector.broadcast %20 : vector<1x128xf32> to vector<64x128xf32>
    %22 = arith.addf %19, %21 : vector<64x128xf32>
    %23 = arith.truncf %22 : vector<64x128xf32> to vector<64x128xbf16>
    %c0_9 = arith.constant 0 : index
    %c0_10 = arith.constant 0 : index
    %24 = vector.load %arg3[%c0_9, %c0_10] : memref<128x256xbf16, #tpu.memory_space<vmem>>, vector<128x256xbf16>
    %cst_11 = arith.constant dense<0.000000e+00> : vector<64x256xf32>
    %25 = tpu.matmul %23, %24, %cst_11 {dimension_numbers = #tpu.dot_dimension_numbers<[1], [0], [0], [1], [0, 0, 1, 1], [], []>} : vector<64x128xbf16>, vector<128x256xbf16>, vector<64x256xf32> -> vector<64x256xf32>
    %c0_12 = arith.constant 0 : index
    %c0_13 = arith.constant 0 : index
    %26 = vector.load %arg6[%c0_12, %c0_13] : memref<1x256xf32, #tpu.memory_space<vmem>>, vector<1x256xf32>
    %27 = vector.broadcast %26 : vector<1x256xf32> to vector<64x256xf32>
    %28 = arith.addf %25, %27 : vector<64x256xf32>
    %cst_14 = arith.constant 5.000000e-01 : f32
    %29 = vector.broadcast %cst_14 : f32 to vector<64x256xf32>
    %30 = arith.mulf %29, %28 : vector<64x256xf32>
    %cst_15 = arith.constant 4.471500e-02 : f32
    %31 = vector.broadcast %cst_15 : f32 to vector<64x256xf32>
    %32 = arith.mulf %31, %28 : vector<64x256xf32>
    %33 = arith.mulf %32, %28 : vector<64x256xf32>
    %34 = arith.mulf %33, %28 : vector<64x256xf32>
    %35 = arith.addf %28, %34 : vector<64x256xf32>
    %cst_16 = arith.constant 0.797884583 : f32
    %36 = vector.broadcast %cst_16 : f32 to vector<64x256xf32>
    %37 = arith.mulf %36, %35 : vector<64x256xf32>
    %38 = math.tanh %37 : vector<64x256xf32>
    %cst_17 = arith.constant 1.000000e+00 : f32
    %39 = vector.broadcast %cst_17 : f32 to vector<64x256xf32>
    %40 = arith.addf %39, %38 : vector<64x256xf32>
    %41 = arith.mulf %30, %40 : vector<64x256xf32>
    %42 = arith.truncf %41 : vector<64x256xf32> to vector<64x256xbf16>
    %c0_18 = arith.constant 0 : index
    %c0_19 = arith.constant 0 : index
    %43 = vector.load %arg7[%c0_18, %c0_19] : memref<64x256xbf16, #tpu.memory_space<vmem>>, vector<64x256xbf16>
    tpu.vector_store %arg7[%c0_18, %c0_19], %42 {strides = array<i32>} : memref<64x256xbf16, #tpu.memory_space<vmem>>, vector<64x256xbf16>,
    return
  }
  func.func @transform_0(%arg0: i32, %arg1: i32) -> (i32, i32) {
    %c0_i32 = arith.constant 0 : i32
    %c0_i32_0 = arith.constant 0 : i32
    return %arg0, %c0_i32 : i32, i32
  }
  func.func @transform_1(%arg0: i32, %arg1: i32) -> (i32, i32) {
    %c0_i32 = arith.constant 0 : i32
    %c0_i32_0 = arith.constant 0 : i32
    return %c0_i32, %arg1 : i32, i32
  }
  func.func @transform_2(%arg0: i32, %arg1: i32) -> (i32, i32) {
    %c0_i32 = arith.constant 0 : i32
    %c0_i32_0 = arith.constant 0 : i32
    %c0_i32_1 = arith.constant 0 : i32
    return %c0_i32, %c0_i32_0 : i32, i32
  }
  func.func @transform_3(%arg0: i32, %arg1: i32) -> (i32, i32) {
    %c0_i32 = arith.constant 0 : i32
    %c0_i32_0 = arith.constant 0 : i32
    %c0_i32_1 = arith.constant 0 : i32
    return %c0_i32, %c0_i32_0 : i32, i32
  }
  func.func @transform_4(%arg0: i32, %arg1: i32) -> (i32, i32) {
    %c0_i32 = arith.constant 0 : i32
    %c0_i32_0 = arith.constant 0 : i32
    return %c0_i32, %arg1 : i32, i32
  }
  func.func @transform_5(%arg0: i32, %arg1: i32) -> (i32, i32) {
    %c0_i32 = arith.constant 0 : i32
    return %arg0, %arg1 : i32, i32
  }
}

module attributes {stable_mosaic.version = 11 : i64} {
  func.func @_fused_linear_kernel(%arg0: i32, %arg1: i32, %arg2: memref<64x128xf32, #tpu.memory_space<vmem>>, %arg3: memref<128x128xbf16, #tpu.memory_space<vmem>>, %arg4: memref<1x128xf32, #tpu.memory_space<vmem>>, %arg5: memref<1x128xf32, #tpu.memory_space<vmem>>, %arg6: memref<1x128xf32, #tpu.memory_space<vmem>>, %arg7: memref<64x128xbf16, #tpu.memory_space<vmem>>) attributes {dimension_semantics = [#tpu.dimension_semantics<parallel>, #tpu.dimension_semantics<parallel>], iteration_bounds = array<i64: 1, 3>, scalar_prefetch = 0 : i64, scratch_operands = 0 : i64, tpu.core_type = #tpu.core_type<tc>, window_params = [{transform_indices = @transform_0, window_bounds = array<i64: 64, 128>}, {transform_indices = @transform_1, window_bounds = array<i64: 128, 128>}, {pipeline_mode = #tpu.pipeline_mode<synchronous>, transform_indices = @transform_2, window_bounds = array<i64: 1, 128>}, {pipeline_mode = #tpu.pipeline_mode<synchronous>, transform_indices = @transform_3, window_bounds = array<i64: 1, 128>}, {transform_indices = @transform_4, window_bounds = array<i64: 1, 128>}, {transform_indices = @transform_5, window_bounds = array<i64: 64, 128>}]} {
    %c0 = arith.constant 0 : index
    %c0_0 = arith.constant 0 : index
    %0 = vector.load %arg2[%c0, %c0_0] : memref<64x128xf32, #tpu.memory_space<vmem>>, vector<64x128xf32>
    %cst = arith.constant dense<0.000000e+00> : vector<64xf32>
    %1 = vector.multi_reduction <add>, %0, %cst [1] : vector<64x128xf32> to vector<64xf32>
    %2 = vector.shape_cast %1 : vector<64xf32> to vector<64x1xf32>
    %cst_1 = arith.constant 1.280000e+02 : f32
    %3 = vector.broadcast %cst_1 : f32 to vector<64x1xf32>
    %4 = arith.divf %2, %3 : vector<64x1xf32>
    %5 = vector.broadcast %4 : vector<64x1xf32> to vector<64x128xf32>
    %6 = arith.subf %0, %5 : vector<64x128xf32>
    %7 = arith.mulf %6, %6 : vector<64x128xf32>
    %cst_2 = arith.constant dense<0.000000e+00> : vector<64xf32>
    %8 = vector.multi_reduction <add>, %7, %cst_2 [1] : vector<64x128xf32> to vector<64xf32>
    %9 = vector.shape_cast %8 : vector<64xf32> to vector<64x1xf32>
    %cst_3 = arith.constant 1.280000e+02 : f32
    %10 = vector.broadcast %cst_3 : f32 to vector<64x1xf32>
    %11 = arith.divf %9, %10 : vector<64x1xf32>
    %cst_4 = arith.constant 9.99999974E-6 : f32
    %12 = vector.broadcast %cst_4 : f32 to vector<64x1xf32>
    %13 = arith.addf %11, %12 : vector<64x1xf32>
    %14 = math.rsqrt %13 : vector<64x1xf32>
    %15 = vector.broadcast %14 : vector<64x1xf32> to vector<64x128xf32>
    %16 = arith.mulf %6, %15 : vector<64x128xf32>
    %c0_5 = arith.constant 0 : index
    %c0_6 = arith.constant 0 : index
    %17 = vector.load %arg4[%c0_5, %c0_6] : memref<1x128xf32, #tpu.memory_space<vmem>>, vector<1x128xf32>
    %18 = vector.broadcast %17 : vector<1x128xf32> to vector<64x128xf32>
    %19 = arith.mulf %16, %18 : vector<64x128xf32>
    %c0_7 = arith.constant 0 : index
    %c0_8 = arith.constant 0 : index
    %20 = vector.load %arg5[%c0_7, %c0_8] : memref<1x128xf32, #tpu.memory_space<vmem>>, vector<1x128xf32>
    %21 = vector.broadcast %20 : vector<1x128xf32> to vector<64x128xf32>
    %22 = arith.addf %19, %21 : vector<64x128xf32>
    %23 = arith.truncf %22 : vector<64x128xf32> to vector<64x128xbf16>
    %c0_9 = arith.constant 0 : index
    %c0_10 = arith.constant 0 : index
    %24 = vector.load %arg3[%c0_9, %c0_10] : memref<128x128xbf16, #tpu.memory_space<vmem>>, vector<128x128xbf16>
    %cst_11 = arith.constant dense<0.000000e+00> : vector<64x128xf32>
    %25 = tpu.matmul %23, %24, %cst_11 {dimension_numbers = #tpu.dot_dimension_numbers<[1], [0], [0], [1], [0, 0, 1, 1], [], []>} : vector<64x128xbf16>, vector<128x128xbf16>, vector<64x128xf32> -> vector<64x128xf32>
    %c0_12 = arith.constant 0 : index
    %c0_13 = arith.constant 0 : index
    %26 = vector.load %arg6[%c0_12, %c0_13] : memref<1x128xf32, #tpu.memory_space<vmem>>, vector<1x128xf32>
    %27 = vector.broadcast %26 : vector<1x128xf32> to vector<64x128xf32>
    %28 = arith.addf %25, %27 : vector<64x128xf32>
    %29 = arith.truncf %28 : vector<64x128xf32> to vector<64x128xbf16>
    %c0_14 = arith.constant 0 : index
    %c0_15 = arith.constant 0 : index
    %30 = vector.load %arg7[%c0_14, %c0_15] : memref<64x128xbf16, #tpu.memory_space<vmem>>, vector<64x128xbf16>
    tpu.vector_store %arg7[%c0_14, %c0_15], %29 {strides = array<i32>} : memref<64x128xbf16, #tpu.memory_space<vmem>>, vector<64x128xbf16>,
    return
  }
  func.func @transform_0(%arg0: i32, %arg1: i32) -> (i32, i32) {
    %c0_i32 = arith.constant 0 : i32
    %c0_i32_0 = arith.constant 0 : i32
    return %arg0, %c0_i32 : i32, i32
  }
  func.func @transform_1(%arg0: i32, %arg1: i32) -> (i32, i32) {
    %c0_i32 = arith.constant 0 : i32
    %c0_i32_0 = arith.constant 0 : i32
    return %c0_i32, %arg1 : i32, i32
  }
  func.func @transform_2(%arg0: i32, %arg1: i32) -> (i32, i32) {
    %c0_i32 = arith.constant 0 : i32
    %c0_i32_0 = arith.constant 0 : i32
    %c0_i32_1 = arith.constant 0 : i32
    return %c0_i32, %c0_i32_0 : i32, i32
  }
  func.func @transform_3(%arg0: i32, %arg1: i32) -> (i32, i32) {
    %c0_i32 = arith.constant 0 : i32
    %c0_i32_0 = arith.constant 0 : i32
    %c0_i32_1 = arith.constant 0 : i32
    return %c0_i32, %c0_i32_0 : i32, i32
  }
  func.func @transform_4(%arg0: i32, %arg1: i32) -> (i32, i32) {
    %c0_i32 = arith.constant 0 : i32
    %c0_i32_0 = arith.constant 0 : i32
    return %c0_i32, %arg1 : i32, i32
  }
  func.func @transform_5(%arg0: i32, %arg1: i32) -> (i32, i32) {
    %c0_i32 = arith.constant 0 : i32
    return %arg0, %arg1 : i32, i32
  }
}

module attributes {stable_mosaic.version = 11 : i64} {
  func.func @_fused_linear_kernel(%arg0: i32, %arg1: i32, %arg2: memref<64x128xbf16, #tpu.memory_space<vmem>>, %arg3: memref<128x128xbf16, #tpu.memory_space<vmem>>, %arg4: memref<1x128xf32, #tpu.memory_space<vmem>>, %arg5: memref<64x128xf32, #tpu.memory_space<vmem>>, %arg6: memref<64x128xf32, #tpu.memory_space<vmem>>) attributes {dimension_semantics = [#tpu.dimension_semantics<parallel>, #tpu.dimension_semantics<parallel>], iteration_bounds = array<i64: 1, 1>, scalar_prefetch = 0 : i64, scratch_operands = 0 : i64, tpu.core_type = #tpu.core_type<tc>, window_params = [{transform_indices = @transform_0, window_bounds = array<i64: 64, 128>}, {transform_indices = @transform_1, window_bounds = array<i64: 128, 128>}, {transform_indices = @transform_2, window_bounds = array<i64: 1, 128>}, {transform_indices = @transform_3, window_bounds = array<i64: 64, 128>}, {transform_indices = @transform_4, window_bounds = array<i64: 64, 128>}]} {
    %c0 = arith.constant 0 : index
    %c0_0 = arith.constant 0 : index
    %0 = vector.load %arg2[%c0, %c0_0] : memref<64x128xbf16, #tpu.memory_space<vmem>>, vector<64x128xbf16>
    %c0_1 = arith.constant 0 : index
    %c0_2 = arith.constant 0 : index
    %1 = vector.load %arg3[%c0_1, %c0_2] : memref<128x128xbf16, #tpu.memory_space<vmem>>, vector<128x128xbf16>
    %cst = arith.constant dense<0.000000e+00> : vector<64x128xf32>
    %2 = tpu.matmul %0, %1, %cst {dimension_numbers = #tpu.dot_dimension_numbers<[1], [0], [0], [1], [0, 0, 1, 1], [], []>} : vector<64x128xbf16>, vector<128x128xbf16>, vector<64x128xf32> -> vector<64x128xf32>
    %c0_3 = arith.constant 0 : index
    %c0_4 = arith.constant 0 : index
    %3 = vector.load %arg4[%c0_3, %c0_4] : memref<1x128xf32, #tpu.memory_space<vmem>>, vector<1x128xf32>
    %4 = vector.broadcast %3 : vector<1x128xf32> to vector<64x128xf32>
    %5 = arith.addf %2, %4 : vector<64x128xf32>
    %c0_5 = arith.constant 0 : index
    %c0_6 = arith.constant 0 : index
    %6 = vector.load %arg5[%c0_5, %c0_6] : memref<64x128xf32, #tpu.memory_space<vmem>>, vector<64x128xf32>
    %7 = arith.addf %5, %6 : vector<64x128xf32>
    %c0_7 = arith.constant 0 : index
    %c0_8 = arith.constant 0 : index
    %8 = vector.load %arg6[%c0_7, %c0_8] : memref<64x128xf32, #tpu.memory_space<vmem>>, vector<64x128xf32>
    tpu.vector_store %arg6[%c0_7, %c0_8], %7 {strides = array<i32>} : memref<64x128xf32, #tpu.memory_space<vmem>>, vector<64x128xf32>,
    return
  }
  func.func @transform_0(%arg0: i32, %arg1: i32) -> (i32, i32) {
    %c0_i32 = arith.constant 0 : i32
    %c0_i32_0 = arith.constant 0 : i32
    return %arg0, %c0_i32 : i32, i32
  }
  func.func @transform_1(%arg0: i32, %arg1: i32) -> (i32, i32) {
    %c0_i32 = arith.constant 0 : i32
    %c0_i32_0 = arith.constant 0 : i32
    return %c0_i32, %arg1 : i32, i32
  }
  func.func @transform_2(%arg0: i32, %arg1: i32) -> (i32, i32) {
    %c0_i32 = arith.constant 0 : i32
    %c0_i32_0 = arith.constant 0 : i32
    return %c0_i32, %arg1 : i32, i32
  }
  func.func @transform_3(%arg0: i32, %arg1: i32) -> (i32, i32) {
    %c0_i32 = arith.constant 0 : i32
    return %arg0, %arg1 : i32, i32
  }
  func.func @transform_4(%arg0: i32, %arg1: i32) -> (i32, i32) {
    %c0_i32 = arith.constant 0 : i32
    return %arg0, %arg1 : i32, i32
  }
}

module attributes {stable_mosaic.version = 11 : i64} {
  func.func @_attention_kernel(%arg0: i32, %arg1: memref<1x32x384xbf16, #tpu.memory_space<vmem>>, %arg2: memref<1x32x128xbf16, #tpu.memory_space<vmem>>) attributes {dimension_semantics = [#tpu.dimension_semantics<parallel>], iteration_bounds = array<i64: 2>, scalar_prefetch = 0 : i64, scratch_operands = 0 : i64, tpu.core_type = #tpu.core_type<tc>, window_params = [{transform_indices = @transform_0, window_bounds = array<i64: 1, 32, 384>}, {transform_indices = @transform_1, window_bounds = array<i64: 1, 32, 128>}]} {
    %c0 = arith.constant 0 : index
    %c0_0 = arith.constant 0 : index
    %c0_1 = arith.constant 0 : index
    %0 = vector.load %arg1[%c0, %c0_0, %c0_1] : memref<1x32x384xbf16, #tpu.memory_space<vmem>>, vector<1x32x128xbf16>
    %1 = vector.shape_cast %0 : vector<1x32x128xbf16> to vector<32x128xbf16>
    %c0_2 = arith.constant 0 : index
    %c0_3 = arith.constant 0 : index
    %c128 = arith.constant 128 : index
    %2 = vector.load %arg1[%c0_2, %c0_3, %c128] : memref<1x32x384xbf16, #tpu.memory_space<vmem>>, vector<1x32x128xbf16>
    %3 = vector.shape_cast %2 : vector<1x32x128xbf16> to vector<32x128xbf16>
    %c0_4 = arith.constant 0 : index
    %c0_5 = arith.constant 0 : index
    %c256 = arith.constant 256 : index
    %4 = vector.load %arg1[%c0_4, %c0_5, %c256] : memref<1x32x384xbf16, #tpu.memory_space<vmem>>, vector<1x32x128xbf16>
    %5 = vector.shape_cast %4 : vector<1x32x128xbf16> to vector<32x128xbf16>
    %6 = tpu.iota {dimensions = array<i32: 0>} : vector<32x32xi32>
    %7 = tpu.iota {dimensions = array<i32: 1>} : vector<32x32xi32>
    %8 = arith.cmpi sle, %7, %6 : vector<32x32xi32>
    %9 = vector.extract_strided_slice %1 {offsets = [0, 0], sizes = [32, 32], strides = [1, 1]} : vector<32x128xbf16> to vector<32x32xbf16>
    %10 = vector.extract_strided_slice %3 {offsets = [0, 0], sizes = [32, 32], strides = [1, 1]} : vector<32x128xbf16> to vector<32x32xbf16>
    %11 = vector.extract_strided_slice %5 {offsets = [0, 0], sizes = [32, 32], strides = [1, 1]} : vector<32x128xbf16> to vector<32x32xbf16>
    %cst = arith.constant dense<0.000000e+00> : vector<32x32xf32>
    %12 = tpu.matmul %9, %10, %cst {dimension_numbers = #tpu.dot_dimension_numbers<[1], [1], [0], [0], [0, 0, 1, 0], [], []>} : vector<32x32xbf16>, vector<32x32xbf16>, vector<32x32xf32> -> vector<32x32xf32>
    %cst_6 = arith.constant 0.176776692 : f32
    %13 = vector.broadcast %cst_6 : f32 to vector<32x32xf32>
    %14 = arith.mulf %12, %13 : vector<32x32xf32>
    %cst_7 = arith.constant 0xFF800000 : f32
    %15 = vector.broadcast %cst_7 : f32 to vector<32x32xf32>
    %16 = arith.select %8, %14, %15 : vector<32x32xi1>, vector<32x32xf32>
    %cst_8 = arith.constant dense<0xFF800000> : vector<32xf32>
    %17 = vector.multi_reduction <maximumf>, %16, %cst_8 [1] : vector<32x32xf32> to vector<32xf32>
    %18 = vector.shape_cast %17 : vector<32xf32> to vector<32x1xf32>
    %19 = vector.broadcast %18 : vector<32x1xf32> to vector<32x32xf32>
    %20 = arith.subf %16, %19 : vector<32x32xf32>
    %21 = math.exp %20 : vector<32x32xf32>
    %cst_9 = arith.constant dense<0.000000e+00> : vector<32xf32>
    %22 = vector.multi_reduction <add>, %21, %cst_9 [1] : vector<32x32xf32> to vector<32xf32>
    %23 = vector.shape_cast %22 : vector<32xf32> to vector<32x1xf32>
    %24 = arith.truncf %21 : vector<32x32xf32> to vector<32x32xbf16>
    %cst_10 = arith.constant dense<0.000000e+00> : vector<32x32xf32>
    %25 = tpu.matmul %24, %11, %cst_10 {dimension_numbers = #tpu.dot_dimension_numbers<[1], [0], [0], [1], [0, 0, 1, 1], [], []>} : vector<32x32xbf16>, vector<32x32xbf16>, vector<32x32xf32> -> vector<32x32xf32>
    %26 = tpu.reciprocal %23 {approx = true} : vector<32x1xf32> -> vector<32x1xf32>
    %27 = vector.broadcast %26 : vector<32x1xf32> to vector<32x32xf32>
    %28 = arith.mulf %25, %27 : vector<32x32xf32>
    %29 = vector.extract_strided_slice %1 {offsets = [0, 32], sizes = [32, 32], strides = [1, 1]} : vector<32x128xbf16> to vector<32x32xbf16>
    %30 = vector.extract_strided_slice %3 {offsets = [0, 32], sizes = [32, 32], strides = [1, 1]} : vector<32x128xbf16> to vector<32x32xbf16>
    %31 = vector.extract_strided_slice %5 {offsets = [0, 32], sizes = [32, 32], strides = [1, 1]} : vector<32x128xbf16> to vector<32x32xbf16>
    %cst_11 = arith.constant dense<0.000000e+00> : vector<32x32xf32>
    %32 = tpu.matmul %29, %30, %cst_11 {dimension_numbers = #tpu.dot_dimension_numbers<[1], [1], [0], [0], [0, 0, 1, 0], [], []>} : vector<32x32xbf16>, vector<32x32xbf16>, vector<32x32xf32> -> vector<32x32xf32>
    %cst_12 = arith.constant 0.176776692 : f32
    %33 = vector.broadcast %cst_12 : f32 to vector<32x32xf32>
    %34 = arith.mulf %32, %33 : vector<32x32xf32>
    %cst_13 = arith.constant 0xFF800000 : f32
    %35 = vector.broadcast %cst_13 : f32 to vector<32x32xf32>
    %36 = arith.select %8, %34, %35 : vector<32x32xi1>, vector<32x32xf32>
    %cst_14 = arith.constant dense<0xFF800000> : vector<32xf32>
    %37 = vector.multi_reduction <maximumf>, %36, %cst_14 [1] : vector<32x32xf32> to vector<32xf32>
    %38 = vector.shape_cast %37 : vector<32xf32> to vector<32x1xf32>
    %39 = vector.broadcast %38 : vector<32x1xf32> to vector<32x32xf32>
    %40 = arith.subf %36, %39 : vector<32x32xf32>
    %41 = math.exp %40 : vector<32x32xf32>
    %cst_15 = arith.constant dense<0.000000e+00> : vector<32xf32>
    %42 = vector.multi_reduction <add>, %41, %cst_15 [1] : vector<32x32xf32> to vector<32xf32>
    %43 = vector.shape_cast %42 : vector<32xf32> to vector<32x1xf32>
    %44 = arith.truncf %41 : vector<32x32xf32> to vector<32x32xbf16>
    %cst_16 = arith.constant dense<0.000000e+00> : vector<32x32xf32>
    %45 = tpu.matmul %44, %31, %cst_16 {dimension_numbers = #tpu.dot_dimension_numbers<[1], [0], [0], [1], [0, 0, 1, 1], [], []>} : vector<32x32xbf16>, vector<32x32xbf16>, vector<32x32xf32> -> vector<32x32xf32>
    %46 = tpu.reciprocal %43 {approx = true} : vector<32x1xf32> -> vector<32x1xf32>
    %47 = vector.broadcast %46 : vector<32x1xf32> to vector<32x32xf32>
    %48 = arith.mulf %45, %47 : vector<32x32xf32>
    %49 = vector.extract_strided_slice %1 {offsets = [0, 64], sizes = [32, 32], strides = [1, 1]} : vector<32x128xbf16> to vector<32x32xbf16>
    %50 = vector.extract_strided_slice %3 {offsets = [0, 64], sizes = [32, 32], strides = [1, 1]} : vector<32x128xbf16> to vector<32x32xbf16>
    %51 = vector.extract_strided_slice %5 {offsets = [0, 64], sizes = [32, 32], strides = [1, 1]} : vector<32x128xbf16> to vector<32x32xbf16>
    %cst_17 = arith.constant dense<0.000000e+00> : vector<32x32xf32>
    %52 = tpu.matmul %49, %50, %cst_17 {dimension_numbers = #tpu.dot_dimension_numbers<[1], [1], [0], [0], [0, 0, 1, 0], [], []>} : vector<32x32xbf16>, vector<32x32xbf16>, vector<32x32xf32> -> vector<32x32xf32>
    %cst_18 = arith.constant 0.176776692 : f32
    %53 = vector.broadcast %cst_18 : f32 to vector<32x32xf32>
    %54 = arith.mulf %52, %53 : vector<32x32xf32>
    %cst_19 = arith.constant 0xFF800000 : f32
    %55 = vector.broadcast %cst_19 : f32 to vector<32x32xf32>
    %56 = arith.select %8, %54, %55 : vector<32x32xi1>, vector<32x32xf32>
    %cst_20 = arith.constant dense<0xFF800000> : vector<32xf32>
    %57 = vector.multi_reduction <maximumf>, %56, %cst_20 [1] : vector<32x32xf32> to vector<32xf32>
    %58 = vector.shape_cast %57 : vector<32xf32> to vector<32x1xf32>
    %59 = vector.broadcast %58 : vector<32x1xf32> to vector<32x32xf32>
    %60 = arith.subf %56, %59 : vector<32x32xf32>
    %61 = math.exp %60 : vector<32x32xf32>
    %cst_21 = arith.constant dense<0.000000e+00> : vector<32xf32>
    %62 = vector.multi_reduction <add>, %61, %cst_21 [1] : vector<32x32xf32> to vector<32xf32>
    %63 = vector.shape_cast %62 : vector<32xf32> to vector<32x1xf32>
    %64 = arith.truncf %61 : vector<32x32xf32> to vector<32x32xbf16>
    %cst_22 = arith.constant dense<0.000000e+00> : vector<32x32xf32>
    %65 = tpu.matmul %64, %51, %cst_22 {dimension_numbers = #tpu.dot_dimension_numbers<[1], [0], [0], [1], [0, 0, 1, 1], [], []>} : vector<32x32xbf16>, vector<32x32xbf16>, vector<32x32xf32> -> vector<32x32xf32>
    %66 = tpu.reciprocal %63 {approx = true} : vector<32x1xf32> -> vector<32x1xf32>
    %67 = vector.broadcast %66 : vector<32x1xf32> to vector<32x32xf32>
    %68 = arith.mulf %65, %67 : vector<32x32xf32>
    %69 = vector.extract_strided_slice %1 {offsets = [0, 96], sizes = [32, 32], strides = [1, 1]} : vector<32x128xbf16> to vector<32x32xbf16>
    %70 = vector.extract_strided_slice %3 {offsets = [0, 96], sizes = [32, 32], strides = [1, 1]} : vector<32x128xbf16> to vector<32x32xbf16>
    %71 = vector.extract_strided_slice %5 {offsets = [0, 96], sizes = [32, 32], strides = [1, 1]} : vector<32x128xbf16> to vector<32x32xbf16>
    %cst_23 = arith.constant dense<0.000000e+00> : vector<32x32xf32>
    %72 = tpu.matmul %69, %70, %cst_23 {dimension_numbers = #tpu.dot_dimension_numbers<[1], [1], [0], [0], [0, 0, 1, 0], [], []>} : vector<32x32xbf16>, vector<32x32xbf16>, vector<32x32xf32> -> vector<32x32xf32>
    %cst_24 = arith.constant 0.176776692 : f32
    %73 = vector.broadcast %cst_24 : f32 to vector<32x32xf32>
    %74 = arith.mulf %72, %73 : vector<32x32xf32>
    %cst_25 = arith.constant 0xFF800000 : f32
    %75 = vector.broadcast %cst_25 : f32 to vector<32x32xf32>
    %76 = arith.select %8, %74, %75 : vector<32x32xi1>, vector<32x32xf32>
    %cst_26 = arith.constant dense<0xFF800000> : vector<32xf32>
    %77 = vector.multi_reduction <maximumf>, %76, %cst_26 [1] : vector<32x32xf32> to vector<32xf32>
    %78 = vector.shape_cast %77 : vector<32xf32> to vector<32x1xf32>
    %79 = vector.broadcast %78 : vector<32x1xf32> to vector<32x32xf32>
    %80 = arith.subf %76, %79 : vector<32x32xf32>
    %81 = math.exp %80 : vector<32x32xf32>
    %cst_27 = arith.constant dense<0.000000e+00> : vector<32xf32>
    %82 = vector.multi_reduction <add>, %81, %cst_27 [1] : vector<32x32xf32> to vector<32xf32>
    %83 = vector.shape_cast %82 : vector<32xf32> to vector<32x1xf32>
    %84 = arith.truncf %81 : vector<32x32xf32> to vector<32x32xbf16>
    %cst_28 = arith.constant dense<0.000000e+00> : vector<32x32xf32>
    %85 = tpu.matmul %84, %71, %cst_28 {dimension_numbers = #tpu.dot_dimension_numbers<[1], [0], [0], [1], [0, 0, 1, 1], [], []>} : vector<32x32xbf16>, vector<32x32xbf16>, vector<32x32xf32> -> vector<32x32xf32>
    %86 = tpu.reciprocal %83 {approx = true} : vector<32x1xf32> -> vector<32x1xf32>
    %87 = vector.broadcast %86 : vector<32x1xf32> to vector<32x32xf32>
    %88 = arith.mulf %85, %87 : vector<32x32xf32>
    %89 = tpu.concatenate %28, %48, %68, %88 in 1 : vector<32x32xf32>, vector<32x32xf32>, vector<32x32xf32>, vector<32x32xf32> -> vector<32x128xf32>
    %90 = arith.truncf %89 : vector<32x128xf32> to vector<32x128xbf16>
    %c0_29 = arith.constant 0 : index
    %c0_30 = arith.constant 0 : index
    %c0_31 = arith.constant 0 : index
    %91 = vector.load %arg2[%c0_29, %c0_30, %c0_31] : memref<1x32x128xbf16, #tpu.memory_space<vmem>>, vector<1x32x128xbf16>
    %92 = vector.shape_cast %91 : vector<1x32x128xbf16> to vector<32x128xbf16>
    %93 = vector.shape_cast %90 : vector<32x128xbf16> to vector<1x32x128xbf16>
    tpu.vector_store %arg2[%c0_29, %c0_30, %c0_31], %93 {strides = array<i32>} : memref<1x32x128xbf16, #tpu.memory_space<vmem>>, vector<1x32x128xbf16>,
    return
  }
  func.func @transform_0(%arg0: i32) -> (i32, i32, i32) {
    %c0_i32 = arith.constant 0 : i32
    %c0_i32_0 = arith.constant 0 : i32
    %c0_i32_1 = arith.constant 0 : i32
    return %arg0, %c0_i32, %c0_i32_0 : i32, i32, i32
  }
  func.func @transform_1(%arg0: i32) -> (i32, i32, i32) {
    %c0_i32 = arith.constant 0 : i32
    %c0_i32_0 = arith.constant 0 : i32
    %c0_i32_1 = arith.constant 0 : i32
    return %arg0, %c0_i32, %c0_i32_0 : i32, i32, i32
  }
}

module attributes {stable_mosaic.version = 11 : i64} {
  func.func @_fused_linear_kernel(%arg0: i32, %arg1: i32, %arg2: memref<64x512xbf16, #tpu.memory_space<vmem>>, %arg3: memref<512x128xbf16, #tpu.memory_space<vmem>>, %arg4: memref<1x128xf32, #tpu.memory_space<vmem>>, %arg5: memref<64x128xf32, #tpu.memory_space<vmem>>, %arg6: memref<64x128xf32, #tpu.memory_space<vmem>>) attributes {dimension_semantics = [#tpu.dimension_semantics<parallel>, #tpu.dimension_semantics<parallel>], iteration_bounds = array<i64: 1, 1>, scalar_prefetch = 0 : i64, scratch_operands = 0 : i64, tpu.core_type = #tpu.core_type<tc>, window_params = [{transform_indices = @transform_0, window_bounds = array<i64: 64, 512>}, {transform_indices = @transform_1, window_bounds = array<i64: 512, 128>}, {transform_indices = @transform_2, window_bounds = array<i64: 1, 128>}, {transform_indices = @transform_3, window_bounds = array<i64: 64, 128>}, {transform_indices = @transform_4, window_bounds = array<i64: 64, 128>}]} {
    %c0 = arith.constant 0 : index
    %c0_0 = arith.constant 0 : index
    %0 = vector.load %arg2[%c0, %c0_0] : memref<64x512xbf16, #tpu.memory_space<vmem>>, vector<64x512xbf16>
    %c0_1 = arith.constant 0 : index
    %c0_2 = arith.constant 0 : index
    %1 = vector.load %arg3[%c0_1, %c0_2] : memref<512x128xbf16, #tpu.memory_space<vmem>>, vector<512x128xbf16>
    %cst = arith.constant dense<0.000000e+00> : vector<64x128xf32>
    %2 = tpu.matmul %0, %1, %cst {dimension_numbers = #tpu.dot_dimension_numbers<[1], [0], [0], [1], [0, 0, 1, 1], [], []>} : vector<64x512xbf16>, vector<512x128xbf16>, vector<64x128xf32> -> vector<64x128xf32>
    %c0_3 = arith.constant 0 : index
    %c0_4 = arith.constant 0 : index
    %3 = vector.load %arg4[%c0_3, %c0_4] : memref<1x128xf32, #tpu.memory_space<vmem>>, vector<1x128xf32>
    %4 = vector.broadcast %3 : vector<1x128xf32> to vector<64x128xf32>
    %5 = arith.addf %2, %4 : vector<64x128xf32>
    %c0_5 = arith.constant 0 : index
    %c0_6 = arith.constant 0 : index
    %6 = vector.load %arg5[%c0_5, %c0_6] : memref<64x128xf32, #tpu.memory_space<vmem>>, vector<64x128xf32>
    %7 = arith.addf %5, %6 : vector<64x128xf32>
    %c0_7 = arith.constant 0 : index
    %c0_8 = arith.constant 0 : index
    %8 = vector.load %arg6[%c0_7, %c0_8] : memref<64x128xf32, #tpu.memory_space<vmem>>, vector<64x128xf32>
    tpu.vector_store %arg6[%c0_7, %c0_8], %7 {strides = array<i32>} : memref<64x128xf32, #tpu.memory_space<vmem>>, vector<64x128xf32>,
    return
  }
  func.func @transform_0(%arg0: i32, %arg1: i32) -> (i32, i32) {
    %c0_i32 = arith.constant 0 : i32
    %c0_i32_0 = arith.constant 0 : i32
    return %arg0, %c0_i32 : i32, i32
  }
  func.func @transform_1(%arg0: i32, %arg1: i32) -> (i32, i32) {
    %c0_i32 = arith.constant 0 : i32
    %c0_i32_0 = arith.constant 0 : i32
    return %c0_i32, %arg1 : i32, i32
  }
  func.func @transform_2(%arg0: i32, %arg1: i32) -> (i32, i32) {
    %c0_i32 = arith.constant 0 : i32
    %c0_i32_0 = arith.constant 0 : i32
    return %c0_i32, %arg1 : i32, i32
  }
  func.func @transform_3(%arg0: i32, %arg1: i32) -> (i32, i32) {
    %c0_i32 = arith.constant 0 : i32
    return %arg0, %arg1 : i32, i32
  }
  func.func @transform_4(%arg0: i32, %arg1: i32) -> (i32, i32) {
    %c0_i32 = arith.constant 0 : i32
    return %arg0, %arg1 : i32, i32
  }
}

module attributes {stable_mosaic.version = 11 : i64} {
  func.func @_layernorm_kernel(%arg0: i32, %arg1: memref<64x128xf32, #tpu.memory_space<vmem>>, %arg2: memref<1x128xf32, #tpu.memory_space<vmem>>, %arg3: memref<1x128xf32, #tpu.memory_space<vmem>>, %arg4: memref<64x128xbf16, #tpu.memory_space<vmem>>) attributes {dimension_semantics = [#tpu.dimension_semantics<parallel>], iteration_bounds = array<i64: 1>, scalar_prefetch = 0 : i64, scratch_operands = 0 : i64, tpu.core_type = #tpu.core_type<tc>, window_params = [{transform_indices = @transform_0, window_bounds = array<i64: 64, 128>}, {pipeline_mode = #tpu.pipeline_mode<synchronous>, transform_indices = @transform_1, window_bounds = array<i64: 1, 128>}, {pipeline_mode = #tpu.pipeline_mode<synchronous>, transform_indices = @transform_2, window_bounds = array<i64: 1, 128>}, {transform_indices = @transform_3, window_bounds = array<i64: 64, 128>}]} {
    %c0 = arith.constant 0 : index
    %c0_0 = arith.constant 0 : index
    %0 = vector.load %arg1[%c0, %c0_0] : memref<64x128xf32, #tpu.memory_space<vmem>>, vector<64x128xf32>
    %cst = arith.constant dense<0.000000e+00> : vector<64xf32>
    %1 = vector.multi_reduction <add>, %0, %cst [1] : vector<64x128xf32> to vector<64xf32>
    %2 = vector.shape_cast %1 : vector<64xf32> to vector<64x1xf32>
    %cst_1 = arith.constant 1.280000e+02 : f32
    %3 = vector.broadcast %cst_1 : f32 to vector<64x1xf32>
    %4 = arith.divf %2, %3 : vector<64x1xf32>
    %5 = vector.broadcast %4 : vector<64x1xf32> to vector<64x128xf32>
    %6 = arith.subf %0, %5 : vector<64x128xf32>
    %7 = arith.mulf %6, %6 : vector<64x128xf32>
    %cst_2 = arith.constant dense<0.000000e+00> : vector<64xf32>
    %8 = vector.multi_reduction <add>, %7, %cst_2 [1] : vector<64x128xf32> to vector<64xf32>
    %9 = vector.shape_cast %8 : vector<64xf32> to vector<64x1xf32>
    %cst_3 = arith.constant 1.280000e+02 : f32
    %10 = vector.broadcast %cst_3 : f32 to vector<64x1xf32>
    %11 = arith.divf %9, %10 : vector<64x1xf32>
    %cst_4 = arith.constant 9.99999974E-6 : f32
    %12 = vector.broadcast %cst_4 : f32 to vector<64x1xf32>
    %13 = arith.addf %11, %12 : vector<64x1xf32>
    %14 = math.rsqrt %13 : vector<64x1xf32>
    %15 = vector.broadcast %14 : vector<64x1xf32> to vector<64x128xf32>
    %16 = arith.mulf %6, %15 : vector<64x128xf32>
    %c0_5 = arith.constant 0 : index
    %c0_6 = arith.constant 0 : index
    %17 = vector.load %arg2[%c0_5, %c0_6] : memref<1x128xf32, #tpu.memory_space<vmem>>, vector<1x128xf32>
    %18 = vector.broadcast %17 : vector<1x128xf32> to vector<64x128xf32>
    %19 = arith.mulf %16, %18 : vector<64x128xf32>
    %c0_7 = arith.constant 0 : index
    %c0_8 = arith.constant 0 : index
    %20 = vector.load %arg3[%c0_7, %c0_8] : memref<1x128xf32, #tpu.memory_space<vmem>>, vector<1x128xf32>
    %21 = vector.broadcast %20 : vector<1x128xf32> to vector<64x128xf32>
    %22 = arith.addf %19, %21 : vector<64x128xf32>
    %23 = arith.truncf %22 : vector<64x128xf32> to vector<64x128xbf16>
    %c0_9 = arith.constant 0 : index
    %c0_10 = arith.constant 0 : index
    %24 = vector.load %arg4[%c0_9, %c0_10] : memref<64x128xbf16, #tpu.memory_space<vmem>>, vector<64x128xbf16>
    tpu.vector_store %arg4[%c0_9, %c0_10], %23 {strides = array<i32>} : memref<64x128xbf16, #tpu.memory_space<vmem>>, vector<64x128xbf16>,
    return
  }
  func.func @transform_0(%arg0: i32) -> (i32, i32) {
    %c0_i32 = arith.constant 0 : i32
    %c0_i32_0 = arith.constant 0 : i32
    return %arg0, %c0_i32 : i32, i32
  }
  func.func @transform_1(%arg0: i32) -> (i32, i32) {
    %c0_i32 = arith.constant 0 : i32
    %c0_i32_0 = arith.constant 0 : i32
    %c0_i32_1 = arith.constant 0 : i32
    return %c0_i32, %c0_i32_0 : i32, i32
  }
  func.func @transform_2(%arg0: i32) -> (i32, i32) {
    %c0_i32 = arith.constant 0 : i32
    %c0_i32_0 = arith.constant 0 : i32
    %c0_i32_1 = arith.constant 0 : i32
    return %c0_i32, %c0_i32_0 : i32, i32
  }
  func.func @transform_3(%arg0: i32) -> (i32, i32) {
    %c0_i32 = arith.constant 0 : i32
    %c0_i32_0 = arith.constant 0 : i32
    return %arg0, %c0_i32 : i32, i32
  }
}

module attributes {stable_mosaic.version = 11 : i64} {
  func.func @_fused_linear_kernel(%arg0: i32, %arg1: i32, %arg2: memref<64x512xbf16, #tpu.memory_space<vmem>>, %arg3: memref<512x128xbf16, #tpu.memory_space<vmem>>, %arg4: memref<1x128xf32, #tpu.memory_space<vmem>>, %arg5: memref<64x128xf32, #tpu.memory_space<vmem>>, %arg6: memref<64x128xf32, #tpu.memory_space<vmem>>) attributes {dimension_semantics = [#tpu.dimension_semantics<parallel>, #tpu.dimension_semantics<parallel>], iteration_bounds = array<i64: 1, 1>, scalar_prefetch = 0 : i64, scratch_operands = 0 : i64, tpu.core_type = #tpu.core_type<tc>, window_params = [{transform_indices = @transform_0, window_bounds = array<i64: 64, 512>}, {transform_indices = @transform_1, window_bounds = array<i64: 512, 128>}, {transform_indices = @transform_2, window_bounds = array<i64: 1, 128>}, {transform_indices = @transform_3, window_bounds = array<i64: 64, 128>}, {transform_indices = @transform_4, window_bounds = array<i64: 64, 128>}]} {
    %c0 = arith.constant 0 : index
    %c0_0 = arith.constant 0 : index
    %0 = vector.load %arg2[%c0, %c0_0] : memref<64x512xbf16, #tpu.memory_space<vmem>>, vector<64x512xbf16>
    %c0_1 = arith.constant 0 : index
    %c0_2 = arith.constant 0 : index
    %1 = vector.load %arg3[%c0_1, %c0_2] : memref<512x128xbf16, #tpu.memory_space<vmem>>, vector<512x128xbf16>
    %cst = arith.constant dense<0.000000e+00> : vector<64x128xf32>
    %2 = tpu.matmul %0, %1, %cst {dimension_numbers = #tpu.dot_dimension_numbers<[1], [0], [0], [1], [0, 0, 1, 1], [], []>} : vector<64x512xbf16>, vector<512x128xbf16>, vector<64x128xf32> -> vector<64x128xf32>
    %c0_3 = arith.constant 0 : index
    %c0_4 = arith.constant 0 : index
    %3 = vector.load %arg4[%c0_3, %c0_4] : memref<1x128xf32, #tpu.memory_space<vmem>>, vector<1x128xf32>
    %4 = vector.broadcast %3 : vector<1x128xf32> to vector<64x128xf32>
    %5 = arith.addf %2, %4 : vector<64x128xf32>
    %c0_5 = arith.constant 0 : index
    %c0_6 = arith.constant 0 : index
    %6 = vector.load %arg5[%c0_5, %c0_6] : memref<64x128xf32, #tpu.memory_space<vmem>>, vector<64x128xf32>
    %7 = arith.addf %5, %6 : vector<64x128xf32>
    %c0_7 = arith.constant 0 : index
    %c0_8 = arith.constant 0 : index
    %8 = vector.load %arg6[%c0_7, %c0_8] : memref<64x128xf32, #tpu.memory_space<vmem>>, vector<64x128xf32>
    tpu.vector_store %arg6[%c0_7, %c0_8], %7 {strides = array<i32>} : memref<64x128xf32, #tpu.memory_space<vmem>>, vector<64x128xf32>,
    return
  }
  func.func @transform_0(%arg0: i32, %arg1: i32) -> (i32, i32) {
    %c0_i32 = arith.constant 0 : i32
    %c0_i32_0 = arith.constant 0 : i32
    return %arg0, %c0_i32 : i32, i32
  }
  func.func @transform_1(%arg0: i32, %arg1: i32) -> (i32, i32) {
    %c0_i32 = arith.constant 0 : i32
    %c0_i32_0 = arith.constant 0 : i32
    return %c0_i32, %arg1 : i32, i32
  }
  func.func @transform_2(%arg0: i32, %arg1: i32) -> (i32, i32) {
    %c0_i32 = arith.constant 0 : i32
    %c0_i32_0 = arith.constant 0 : i32
    return %c0_i32, %arg1 : i32, i32
  }
  func.func @transform_3(%arg0: i32, %arg1: i32) -> (i32, i32) {
    %c0_i32 = arith.constant 0 : i32
    return %arg0, %arg1 : i32, i32
  }
  func.func @transform_4(%arg0: i32, %arg1: i32) -> (i32, i32) {
    %c0_i32 = arith.constant 0 : i32
    return %arg0, %arg1 : i32, i32
  }
}

module attributes {stable_mosaic.version = 11 : i64} {
  func.func @_fused_linear_kernel(%arg0: i32, %arg1: i32, %arg2: memref<64x128xbf16, #tpu.memory_space<vmem>>, %arg3: memref<128x256xbf16, #tpu.memory_space<vmem>>, %arg4: memref<64x256xf32, #tpu.memory_space<vmem>>) attributes {dimension_semantics = [#tpu.dimension_semantics<parallel>, #tpu.dimension_semantics<parallel>], iteration_bounds = array<i64: 1, 2>, scalar_prefetch = 0 : i64, scratch_operands = 0 : i64, tpu.core_type = #tpu.core_type<tc>, window_params = [{transform_indices = @transform_0, window_bounds = array<i64: 64, 128>}, {transform_indices = @transform_1, window_bounds = array<i64: 128, 256>}, {transform_indices = @transform_2, window_bounds = array<i64: 64, 256>}]} {
    %c0 = arith.constant 0 : index
    %c0_0 = arith.constant 0 : index
    %0 = vector.load %arg2[%c0, %c0_0] : memref<64x128xbf16, #tpu.memory_space<vmem>>, vector<64x128xbf16>
    %c0_1 = arith.constant 0 : index
    %c0_2 = arith.constant 0 : index
    %1 = vector.load %arg3[%c0_1, %c0_2] : memref<128x256xbf16, #tpu.memory_space<vmem>>, vector<128x256xbf16>
    %cst = arith.constant dense<0.000000e+00> : vector<64x256xf32>
    %2 = tpu.matmul %0, %1, %cst {dimension_numbers = #tpu.dot_dimension_numbers<[1], [0], [0], [1], [0, 0, 1, 1], [], []>} : vector<64x128xbf16>, vector<128x256xbf16>, vector<64x256xf32> -> vector<64x256xf32>
    %c0_3 = arith.constant 0 : index
    %c0_4 = arith.constant 0 : index
    %3 = vector.load %arg4[%c0_3, %c0_4] : memref<64x256xf32, #tpu.memory_space<vmem>>, vector<64x256xf32>
    tpu.vector_store %arg4[%c0_3, %c0_4], %2 {strides = array<i32>} : memref<64x256xf32, #tpu.memory_space<vmem>>, vector<64x256xf32>,
    return
  }
  func.func @transform_0(%arg0: i32, %arg1: i32) -> (i32, i32) {
    %c0_i32 = arith.constant 0 : i32
    %c0_i32_0 = arith.constant 0 : i32
    return %arg0, %c0_i32 : i32, i32
  }
  func.func @transform_1(%arg0: i32, %arg1: i32) -> (i32, i32) {
    %c0_i32 = arith.constant 0 : i32
    %c0_i32_0 = arith.constant 0 : i32
    return %c0_i32, %arg1 : i32, i32
  }
  func.func @transform_2(%arg0: i32, %arg1: i32) -> (i32, i32) {
    %c0_i32 = arith.constant 0 : i32
    return %arg0, %arg1 : i32, i32
  }
}

</mosaic_0001>

<llo_original>
// kernel: gpt_forward.15
$region0: #{gpt_forward.15}
  #allocation0 [shape = 'u32[]', space=smem, size = 0x4, offset = 0x4, fixed_abs, tag = 'smem constant byte address 0x4 - core index']
  #allocation1 [shape = 'u32[72,128]{1,0:T(1,128)}', space=vmem, size = 0x9000, scoped, tag = 'internal scratch']
  %s0 = inlined_call_operand.vmem [shape: f32[64,128], index: 0, kind: input, shape index: {}]
  %s1 = inlined_call_operand.vmem [shape: bf16[128,512], index: 1, kind: input, shape index: {}]
  %s2 = inlined_call_operand.vmem [shape: f32[1,128], index: 2, kind: input, shape index: {}]
  %s3 = inlined_call_operand.vmem [shape: f32[1,128], index: 3, kind: input, shape index: {}]
  %s4 = inlined_call_operand.vmem [shape: f32[1,512], index: 4, kind: input, shape index: {}]
  %s5 = inlined_call_operand.vmem [shape: bf16[64,512], index: 5, kind: output, shape index: {}]
  %s6 = sld [smem:[#allocation0]]
  $region125: #{gpt_forward.15} parent=0
    _
  %s8 = ssub.s32 1, %s6
  %s9 = scalar_select 0, %s8, %s6
  $region1: #{gpt_forward.15} parent=0
    #allocation2 [shape = 'u8[131072]{0}', space=vmem, size = 0x20000, scoped, tag = 'input window, operand 1']
    #allocation3 [shape = 'u8[65536]{0}', space=vmem, size = 0x10000, scoped, tag = 'output window, operand 0']
    loop: start=0, step=1, limit=4
    $region2: #{gpt_forward.15} parent=1 // loop_pre_header
      _
    $region3: #{gpt_forward.15} parent=1 // loop_header
      %s11 = sphi 0, %s15
      %p12 = scmp.ge.s32.totalorder %s11, 4
      %s18 = sphi 0, %s30
      %s19 = sphi 0, %s26
      %s20 = sphi 0, %s18
      %s21 = sphi 0, %s19
      %s22 = sphi 0, %s20
      %s23 = sphi 0, %s21
      %s33 = sphi 0, %s35
      %s36 = sphi 0, %s33
      %s37 = sphi 0, %s36
      %s53 = sphi 0, %s37
      %s59 = sphi 0, %s61
      %s62 = sphi 0, %s59
      %s63 = sphi 0, %s62
      %s79 = sphi 0, %s63
      %s83 = sphi 0, %s83
      %s85 = sphi 0, %s83
      %s86 = sphi 0, %s85
      %s100 = sphi 0, %s86
      %s104 = sphi 0, %s104
      %s106 = sphi 0, %s104
      %s107 = sphi 0, %s106
      %s121 = sphi 0, %s107
      %s127 = sphi 0, %s129
      %s130 = sphi 0, %s127
      %s131 = sphi 0, %s130
      %s147 = sphi 0, %s131
      %s155 = sphi 0, %s157
      %s158 = sphi 0, %s155
      %s159 = sphi 0, %s158
      %s175 = sphi 0, %s159
    $region4: #{gpt_forward.15} parent=1 // loop_header_branch
      %14 = sbr.rel (%p12) target = $region8
    $region5: #{gpt_forward.15} parent=1 // loop_body
      %s16 = ssub.s32 %s11, 1
      %s17 = ssub.s32 %s11, 2
      %s24 = sadd.s32 1, %s19
      %p25 = scmp.ge.s32.totalorder %s24, 2
      %s26 = scalar_select %p25, 0, %s24
      %s27 = sadd.s32 1, %s18
      %s28 = scalar_select %p25, %s27, %s18
      %p29 = scmp.ge.s32.totalorder %s28, 1
      %s30 = scalar_select %p29, 0, %s28
      %s31 = ssub.s32 %s18, %s30
      %p32 = scmp.eq.s32.totalorder %s31, 0
      %s34 = sadd.s32 %s33, 1
      %s35 = scalar_select %p32, %s33, %s34
      %p38 = pneg %p32
      %p39 = scmp.eq.s32.totalorder %s11, 1
      %p40 = por %p38, %p39
      %p41 = scmp.ne.s32.totalorder %s33, %s36
      %p42 = scmp.eq.s32.totalorder %s11, 0
      %p43 = por %p41, %p42
      %p44 = scmp.ne.s32.totalorder %s33, %s36
      %p45 = scmp.eq.s32.totalorder %s16, 1
      %p46 = por %p44, %p45
      %p47 = scmp.ne.s32.totalorder %s36, %s37
      %p48 = scmp.eq.s32.totalorder %s16, 0
      %p49 = por %p47, %p48
      %p50 = scmp.ne.s32.totalorder %s36, %s37
      %p51 = scmp.eq.s32.totalorder %s17, 1
      %p52 = por %p50, %p51
      %p54 = scmp.ne.s32.totalorder %s37, %s53
      %p55 = scmp.eq.s32.totalorder %s17, 0
      %p56 = por %p54, %p55
      %s57 = ssub.s32 %s19, %s26
      %p58 = scmp.eq.s32.totalorder %s57, 0
      %s60 = sadd.s32 %s59, 1
      %s61 = scalar_select %p58, %s59, %s60
      %p64 = pneg %p58
      %p65 = scmp.eq.s32.totalorder %s11, 1
      %p66 = por %p64, %p65
      %p67 = scmp.ne.s32.totalorder %s59, %s62
      %p68 = scmp.eq.s32.totalorder %s11, 0
      %p69 = por %p67, %p68
      %p70 = scmp.ne.s32.totalorder %s59, %s62
      %p71 = scmp.eq.s32.totalorder %s16, 1
      %p72 = por %p70, %p71
      %p73 = scmp.ne.s32.totalorder %s62, %s63
      %p74 = scmp.eq.s32.totalorder %s16, 0
      %p75 = por %p73, %p74
      %p76 = scmp.ne.s32.totalorder %s62, %s63
      %p77 = scmp.eq.s32.totalorder %s17, 1
      %p78 = por %p76, %p77
      %p80 = scmp.ne.s32.totalorder %s63, %s79
      %p81 = scmp.eq.s32.totalorder %s17, 0
      %p82 = por %p80, %p81
      %s84 = sadd.s32 %s83, 1
      %p87 = scmp.eq.s32.totalorder %s11, 1
      %p88 = scmp.ne.s32.totalorder %s83, %s85
      %p89 = scmp.eq.s32.totalorder %s11, 0
      %p90 = por %p88, %p89
      %p91 = scmp.ne.s32.totalorder %s83, %s85
      %p92 = scmp.eq.s32.totalorder %s16, 1
      %p93 = por %p91, %p92
      %p94 = scmp.ne.s32.totalorder %s85, %s86
      %p95 = scmp.eq.s32.totalorder %s16, 0
      %p96 = por %p94, %p95
      %p97 = scmp.ne.s32.totalorder %s85, %s86
      %p98 = scmp.eq.s32.totalorder %s17, 1
      %p99 = por %p97, %p98
      %p101 = scmp.ne.s32.totalorder %s86, %s100
      %p102 = scmp.eq.s32.totalorder %s17, 0
      %p103 = por %p101, %p102
      %s105 = sadd.s32 %s104, 1
      %p108 = scmp.eq.s32.totalorder %s11, 1
      %p109 = scmp.ne.s32.totalorder %s104, %s106
      %p110 = scmp.eq.s32.totalorder %s11, 0
      %p111 = por %p109, %p110
      %p112 = scmp.ne.s32.totalorder %s104, %s106
      %p113 = scmp.eq.s32.totalorder %s16, 1
      %p114 = por %p112, %p113
      %p115 = scmp.ne.s32.totalorder %s106, %s107
      %p116 = scmp.eq.s32.totalorder %s16, 0
      %p117 = por %p115, %p116
      %p118 = scmp.ne.s32.totalorder %s106, %s107
      %p119 = scmp.eq.s32.totalorder %s17, 1
      %p120 = por %p118, %p119
      %p122 = scmp.ne.s32.totalorder %s107, %s121
      %p123 = scmp.eq.s32.totalorder %s17, 0
      %p124 = por %p122, %p123
      %s125 = ssub.s32 %s19, %s26
      %p126 = scmp.eq.s32.totalorder %s125, 0
      %s128 = sadd.s32 %s127, 1
      %s129 = scalar_select %p126, %s127, %s128
      %p132 = pneg %p126
      %p133 = scmp.eq.s32.totalorder %s11, 1
      %p134 = por %p132, %p133
      %p135 = scmp.ne.s32.totalorder %s127, %s130
      %p136 = scmp.eq.s32.totalorder %s11, 0
      %p137 = por %p135, %p136
      %p138 = scmp.ne.s32.totalorder %s127, %s130
      %p139 = scmp.eq.s32.totalorder %s16, 1
      %p140 = por %p138, %p139
      %p141 = scmp.ne.s32.totalorder %s130, %s131
      %p142 = scmp.eq.s32.totalorder %s16, 0
      %p143 = por %p141, %p142
      %p144 = scmp.ne.s32.totalorder %s130, %s131
      %p145 = scmp.eq.s32.totalorder %s17, 1
      %p146 = por %p144, %p145
      %p148 = scmp.ne.s32.totalorder %s131, %s147
      %p149 = scmp.eq.s32.totalorder %s17, 0
      %p150 = por %p148, %p149
      %s151 = ssub.s32 %s18, %s30
      %s152 = ssub.s32 %s19, %s26
      %s153 = sor.u32 %s151, %s152
      %p154 = scmp.eq.s32.totalorder %s153, 0
      %s156 = sadd.s32 %s155, 1
      %s157 = scalar_select %p154, %s155, %s156
      %p160 = pneg %p154
      %p161 = scmp.eq.s32.totalorder %s11, 1
      %p162 = por %p160, %p161
      %p163 = scmp.ne.s32.totalorder %s155, %s158
      %p164 = scmp.eq.s32.totalorder %s11, 0
      %p165 = por %p163, %p164
      %p166 = scmp.ne.s32.totalorder %s155, %s158
      %p167 = scmp.eq.s32.totalorder %s16, 1
      %p168 = por %p166, %p167
      %p169 = scmp.ne.s32.totalorder %s158, %s159
      %p170 = scmp.eq.s32.totalorder %s16, 0
      %p171 = por %p169, %p170
      %p172 = scmp.ne.s32.totalorder %s158, %s159
      %p173 = scmp.eq.s32.totalorder %s17, 1
      %p174 = por %p172, %p173
      %p176 = scmp.ne.s32.totalorder %s159, %s175
      %p177 = scmp.eq.s32.totalorder %s17, 0
      %p178 = por %p176, %p177
      %p179 = scmp.le.s32.totalorder 1, %s11
      %p180 = scmp.lt.s32.totalorder %s11, 3
      %p181 = pnand %p179, %p180
      %p182 = pneg %p181
      // Predicated region
      $region9: #{gpt_forward.15} parent=5 // pred_check
        _
      $region10: #{gpt_forward.15} parent=5 // pred_check_branch
        %184 = sbr.rel (%p181) target = $region12
      $region11: #{gpt_forward.15} parent=5 // pred_region
        %s185 = ssub.s32 %s11, 1
        // Predicated region
        $region13: #{gpt_forward.15} parent=11 // pred_check
          %p186 = pneg %p49
        $region14: #{gpt_forward.15} parent=11 // pred_check_branch
          %188 = sbr.rel (%p186) target = $region16
        $region15: #{gpt_forward.15} parent=11 // pred_region
          %s189 = smul.u32 8, %s20
          %p190 = scmp.lt.s32.totalorder %s189, 7
          %s191 = scalar_select %p190, %s189, 7
          %s192 = smul.addr %s191, 8
          %s193 = scalar_lea.vmem %s0, %s192
          %s194 = smul.u32 8, %s20
        $region16: #{gpt_forward.15} parent=11 // pred_fallthru
          _
        // Predicated region
        $region17: #{gpt_forward.15} parent=11 // pred_check
          %p195 = pneg %p96
        $region18: #{gpt_forward.15} parent=11 // pred_check_branch
          %197 = sbr.rel (%p195) target = $region20
        $region19: #{gpt_forward.15} parent=11 // pred_region
          _
        $region20: #{gpt_forward.15} parent=11 // pred_fallthru
          _
        // Predicated region
        $region21: #{gpt_forward.15} parent=11 // pred_check
          %p198 = pneg %p117
        $region22: #{gpt_forward.15} parent=11 // pred_check_branch
          %200 = sbr.rel (%p198) target = $region24
        $region23: #{gpt_forward.15} parent=11 // pred_region
          _
        $region24: #{gpt_forward.15} parent=11 // pred_fallthru
          _
      $region12: #{gpt_forward.15} parent=5 // pred_fallthru
        _
      %p201 = scmp.lt.s32.totalorder %s11, 2
      // Predicated region
      $region25: #{gpt_forward.15} parent=5 // pred_check
        %p202 = pneg %p201
      $region26: #{gpt_forward.15} parent=5 // pred_check_branch
        %204 = sbr.rel (%p202) target = $region28
      $region27: #{gpt_forward.15} parent=5 // pred_region
        // Predicated region
        $region29: #{gpt_forward.15} parent=27 // pred_check
          %p205 = pneg %p69
        $region30: #{gpt_forward.15} parent=27 // pred_check_branch
          %207 = sbr.rel (%p205) target = $region32
        $region31: #{gpt_forward.15} parent=27 // pred_region
          %s208 = sand.u32 %s59, 1
          %s209 = sand.u32 %s59, 1
          %s210 = smul.addr %s209, 128
          %s211 = scalar_lea.vmem [#allocation2], %s210
          %s212 = smul.u32 2, %s19
          %s213 = smul.addr %s212, 4
          %s214 = scalar_lea.vmem %s1, %s213
          // Predicated region
          $region33: #{gpt_forward.15} parent=31 // pred_check
            _
          $region34: #{gpt_forward.15} parent=31 // pred_check_branch
            %216 = sbr.rel (0) target = $region36
          $region35: #{gpt_forward.15} parent=31 // pred_region
            // Predicated region
            $region37: #{gpt_forward.15} parent=35 // pred_check
              _
            $region38: #{gpt_forward.15} parent=35 // pred_check_branch
              %218 = sbr.rel (0) target = $region40
            $region39: #{gpt_forward.15} parent=35 // pred_region
              // Predicated region
              $region52: #{gpt_forward.15} parent=39 // pred_check
                _
              $region53: #{gpt_forward.15} parent=39 // pred_check_branch
                %264 = sbr.rel (0) target = $region55
              $region54: #{gpt_forward.15} parent=39 // pred_region
                loop: start=0, step=1, limit=1
                $region56: #{gpt_forward.15} parent=54 // loop_pre_header
                  _
                $region57: #{gpt_forward.15} parent=54 // loop_header
                  %s266 = sphi 0, %s270
                  %p267 = scmp.ge.s32.totalorder %s266, 1
                  %s271 = sphi %s214, %s214
                  %s272 = sphi %s211, %s211
                $region58: #{gpt_forward.15} parent=54 // loop_header_branch
                  %269 = sbr.rel (%p267) target = $region62
                $region59: #{gpt_forward.15} parent=54 // loop_body
                  %v273 = vld [vmem:[%s271] sm:$0xff]
                  %274 = vst [vmem:[%s272] sm:$0xff] %v273
                  %v275 = vld [vmem:[%s271 + $0x10] sm:$0xff]
                  %276 = vst [vmem:[%s272 + $0x8] sm:$0xff] %v275
                  %v277 = vld [vmem:[%s271 + $0x20] sm:$0xff]
                  %278 = vst [vmem:[%s272 + $0x10] sm:$0xff] %v277
                  %v279 = vld [vmem:[%s271 + $0x30] sm:$0xff]
                  %280 = vst [vmem:[%s272 + $0x18] sm:$0xff] %v279
                  %v281 = vld [vmem:[%s271 + $0x40] sm:$0xff]
                  %282 = vst [vmem:[%s272 + $0x20] sm:$0xff] %v281
                  %v283 = vld [vmem:[%s271 + $0x50] sm:$0xff]
                  %284 = vst [vmem:[%s272 + $0x28] sm:$0xff] %v283
                  %v285 = vld [vmem:[%s271 + $0x60] sm:$0xff]
                  %286 = vst [vmem:[%s272 + $0x30] sm:$0xff] %v285
                  %v287 = vld [vmem:[%s271 + $0x70] sm:$0xff]
                  %288 = vst [vmem:[%s272 + $0x38] sm:$0xff] %v287
                  %v289 = vld [vmem:[%s271 + $0x80] sm:$0xff]
                  %290 = vst [vmem:[%s272 + $0x40] sm:$0xff] %v289
                  %v291 = vld [vmem:[%s271 + $0x90] sm:$0xff]
                  %292 = vst [vmem:[%s272 + $0x48] sm:$0xff] %v291
                  %v293 = vld [vmem:[%s271 + $0xa0] sm:$0xff]
                  %294 = vst [vmem:[%s272 + $0x50] sm:$0xff] %v293
                  %v295 = vld [vmem:[%s271 + $0xb0] sm:$0xff]
                  %296 = vst [vmem:[%s272 + $0x58] sm:$0xff] %v295
                  %v297 = vld [vmem:[%s271 + $0xc0] sm:$0xff]
                  %298 = vst [vmem:[%s272 + $0x60] sm:$0xff] %v297
                  %v299 = vld [vmem:[%s271 + $0xd0] sm:$0xff]
                  %300 = vst [vmem:[%s272 + $0x68] sm:$0xff] %v299
                  %v301 = vld [vmem:[%s271 + $0xe0] sm:$0xff]
                  %302 = vst [vmem:[%s272 + $0x70] sm:$0xff] %v301
                  %v303 = vld [vmem:[%s271 + $0xf0] sm:$0xff]
                  %304 = vst [vmem:[%s272 + $0x78] sm:$0xff] %v303
                $region60: #{gpt_forward.15} parent=54 // loop_footer
                  %s270 = sadd.s32 1, %s266
                $region61: #{gpt_forward.15} parent=54 // loop_footer_branch
                  %265 = sbr.rel target = $region57
                $region62: #{gpt_forward.15} parent=54 // loop_exit
                  _
              $region55: #{gpt_forward.15} parent=39 // pred_fallthru
                _
              // Predicated region
              $region63: #{gpt_forward.15} parent=39 // pred_check
                _
              $region64: #{gpt_forward.15} parent=39 // pred_check_branch
                %306 = sbr.rel target = $region66
              $region65: #{gpt_forward.15} parent=39 // pred_region
                _
              $region66: #{gpt_forward.15} parent=39 // pred_fallthru
                _
            $region40: #{gpt_forward.15} parent=35 // pred_fallthru
              _
            // Predicated region
            $region41: #{gpt_forward.15} parent=35 // pred_check
              _
            $region42: #{gpt_forward.15} parent=35 // pred_check_branch
              %220 = sbr.rel target = $region44
            $region43: #{gpt_forward.15} parent=35 // pred_region
              %s222 = ssub.s32 256, 1
              loop: start=0, step=1, limit=1
              $region45: #{gpt_forward.15} parent=43 // loop_pre_header
                _
              $region46: #{gpt_forward.15} parent=43 // loop_header
                %s224 = sphi 0, %s228
                %p225 = scmp.ge.s32.totalorder %s224, 1
                %s229 = sphi %s214, %s214
                %s230 = sphi %s211, %s211
              $region47: #{gpt_forward.15} parent=43 // loop_header_branch
                %227 = sbr.rel (%p225) target = $region51
              $region48: #{gpt_forward.15} parent=43 // loop_body
                %v231 = vld [vmem:[%s229] sm:%s222]
                %232 = vst [vmem:[%s230] sm:%s222] %v231
                %v233 = vld [vmem:[%s229 + $0x10] sm:%s222]
                %234 = vst [vmem:[%s230 + $0x8] sm:%s222] %v233
                %v235 = vld [vmem:[%s229 + $0x20] sm:%s222]
                %236 = vst [vmem:[%s230 + $0x10] sm:%s222] %v235
                %v237 = vld [vmem:[%s229 + $0x30] sm:%s222]
                %238 = vst [vmem:[%s230 + $0x18] sm:%s222] %v237
                %v239 = vld [vmem:[%s229 + $0x40] sm:%s222]
                %240 = vst [vmem:[%s230 + $0x20] sm:%s222] %v239
                %v241 = vld [vmem:[%s229 + $0x50] sm:%s222]
                %242 = vst [vmem:[%s230 + $0x28] sm:%s222] %v241
                %v243 = vld [vmem:[%s229 + $0x60] sm:%s222]
                %244 = vst [vmem:[%s230 + $0x30] sm:%s222] %v243
                %v245 = vld [vmem:[%s229 + $0x70] sm:%s222]
                %246 = vst [vmem:[%s230 + $0x38] sm:%s222] %v245
                %v247 = vld [vmem:[%s229 + $0x80] sm:%s222]
                %248 = vst [vmem:[%s230 + $0x40] sm:%s222] %v247
                %v249 = vld [vmem:[%s229 + $0x90] sm:%s222]
                %250 = vst [vmem:[%s230 + $0x48] sm:%s222] %v249
                %v251 = vld [vmem:[%s229 + $0xa0] sm:%s222]
                %252 = vst [vmem:[%s230 + $0x50] sm:%s222] %v251
                %v253 = vld [vmem:[%s229 + $0xb0] sm:%s222]
                %254 = vst [vmem:[%s230 + $0x58] sm:%s222] %v253
                %v255 = vld [vmem:[%s229 + $0xc0] sm:%s222]
                %256 = vst [vmem:[%s230 + $0x60] sm:%s222] %v255
                %v257 = vld [vmem:[%s229 + $0xd0] sm:%s222]
                %258 = vst [vmem:[%s230 + $0x68] sm:%s222] %v257
                %v259 = vld [vmem:[%s229 + $0xe0] sm:%s222]
                %260 = vst [vmem:[%s230 + $0x70] sm:%s222] %v259
                %v261 = vld [vmem:[%s229 + $0xf0] sm:%s222]
                %262 = vst [vmem:[%s230 + $0x78] sm:%s222] %v261
              $region49: #{gpt_forward.15} parent=43 // loop_footer
                %s228 = sadd.s32 1, %s224
              $region50: #{gpt_forward.15} parent=43 // loop_footer_branch
                %223 = sbr.rel target = $region46
              $region51: #{gpt_forward.15} parent=43 // loop_exit
                _
            $region44: #{gpt_forward.15} parent=35 // pred_fallthru
              _
          $region36: #{gpt_forward.15} parent=31 // pred_fallthru
            _
          %307 = vnop
        $region32: #{gpt_forward.15} parent=27 // pred_fallthru
          _
        // Predicated region
        $region67: #{gpt_forward.15} parent=27 // pred_check
          %p308 = pneg %p137
        $region68: #{gpt_forward.15} parent=27 // pred_check_branch
          %310 = sbr.rel (%p308) target = $region70
        $region69: #{gpt_forward.15} parent=27 // pred_region
          %s311 = smul.u32 2, %s19
          %p312 = scmp.lt.s32.totalorder %s311, 3
          %s313 = scalar_select %p312, %s311, 3
          %s314 = scalar_lea.vmem %s4, %s313
          %s315 = smul.u32 2, %s19
        $region70: #{gpt_forward.15} parent=27 // pred_fallthru
          _
      $region28: #{gpt_forward.15} parent=5 // pred_fallthru
        _
      %p316 = scmp.le.s32.totalorder 1, %s11
      %p317 = scmp.lt.s32.totalorder %s11, 3
      %p318 = pnand %p316, %p317
      %p319 = pneg %p318
      // Predicated region
      $region71: #{gpt_forward.15} parent=5 // pred_check
        _
      $region72: #{gpt_forward.15} parent=5 // pred_check_branch
        %321 = sbr.rel (%p318) target = $region74
      $region73: #{gpt_forward.15} parent=5 // pred_region
        %s322 = ssub.s32 %s11, 1
        %s323 = sand.u32 %s62, 1
        %s324 = sand.u32 %s62, 1
        %s325 = smul.addr %s324, 128
        %s326 = scalar_lea.vmem [#allocation2], %s325
        // Predicated region
        $region75: #{gpt_forward.15} parent=73 // pred_check
          %p327 = pneg %p75
        $region76: #{gpt_forward.15} parent=73 // pred_check_branch
          %329 = sbr.rel (%p327) target = $region78
        $region77: #{gpt_forward.15} parent=73 // pred_region
          _
        $region78: #{gpt_forward.15} parent=73 // pred_fallthru
          _
        %s330 = smul.u32 8, %s20
        %p331 = scmp.lt.s32.totalorder %s330, 7
        %s332 = scalar_select %p331, %s330, 7
        %s333 = smul.addr %s332, 8
        %s334 = scalar_lea.vmem %s0, %s333
        %p335 = pneg %p49
        %p336 = pneg %p46
        %s337 = sand.u32 %s62, 1
        %s338 = sand.u32 %s62, 1
        %s339 = smul.addr %s338, 128
        %s340 = scalar_lea.vmem [#allocation2], %s339
        %p341 = pneg %p75
        %p342 = pneg %p72
        %p343 = pneg %p96
        %p344 = pneg %p93
        %p345 = pneg %p117
        %p346 = pneg %p114
        %s347 = smul.u32 2, %s21
        %p348 = scmp.lt.s32.totalorder %s347, 3
        %s349 = scalar_select %p348, %s347, 3
        %s350 = scalar_lea.vmem %s4, %s349
        %p351 = pneg %p143
        %p352 = pneg %p140
        %p353 = pneg %p171
        %p354 = pneg %p168
        %s355 = sand.u32 %s158, 1
        %s356 = sand.u32 %s158, 1
        %s357 = smul.addr %s356, 64
        %s358 = scalar_lea.vmem [#allocation3], %s357
        %s359 = smul.u32 8, %s20
        %p360 = scmp.lt.s32.totalorder %s359, 7
        %s361 = scalar_select %p360, %s359, 7
        %s362 = smul.addr %s361, 8
        %s363 = scalar_lea.vmem %s0, %s362
        %s364 = smul.u32 8, %s20
        %s365 = smul.u32 2, %s21
        %s366 = smul.u32 2, %s21
        %p367 = scmp.lt.s32.totalorder %s366, 3
        %s368 = scalar_select %p367, %s366, 3
        %s369 = scalar_lea.vmem %s4, %s368
        %s370 = smul.u32 2, %s21
        %s371 = smul.u32 8, %s20
        %s372 = smul.u32 2, %s21
        %v373 = vld [vmem:[%s363] sm:$0xff]
        %v374 = vld [vmem:[%s363 + $0x8] sm:$0xff]
        %v375 = vld [vmem:[%s363 + $0x10] sm:$0xff]
        %v376 = vld [vmem:[%s363 + $0x18] sm:$0xff]
        %v377 = vld [vmem:[%s363 + $0x20] sm:$0xff]
        %v378 = vld [vmem:[%s363 + $0x28] sm:$0xff]
        %v379 = vld [vmem:[%s363 + $0x30] sm:$0xff]
        %v380 = vld [vmem:[%s363 + $0x38] sm:$0xff]
        %381 = vadd.xlane.f32.xlu0 %v373
        %v382 = vpop.xlane.xlu0 %381
        %383 = vadd.xlane.f32.xlu0 %v374
        %v384 = vpop.xlane.xlu0 %383
        %385 = vadd.xlane.f32.xlu0 %v375
        %v386 = vpop.xlane.xlu0 %385
        %387 = vadd.xlane.f32.xlu0 %v376
        %v388 = vpop.xlane.xlu0 %387
        %389 = vadd.xlane.f32.xlu0 %v377
        %v390 = vpop.xlane.xlu0 %389
        %391 = vadd.xlane.f32.xlu0 %v378
        %v392 = vpop.xlane.xlu0 %391
        %393 = vadd.xlane.f32.xlu0 %v379
        %v394 = vpop.xlane.xlu0 %393
        %395 = vadd.xlane.f32.xlu0 %v380
        %v396 = vpop.xlane.xlu0 %395
        %v397 = vrcp.pop 128.0
        %v398 = vmul.f32 128.0, %v397
        %v399 = vsub.f32 1.0, %v398
        %v400 = vmul.f32 %v397, %v399
        %v401 = vadd.f32 %v397, %v400
        %vm402 = vweird.f32 %v397
        %v403 = vsel %vm402, %v397, %v401
        %v404 = vmul.f32 %v382, %v403
        %v405 = vmul.f32 %v384, %v403
        %v406 = vmul.f32 %v386, %v403
        %v407 = vmul.f32 %v388, %v403
        %v408 = vmul.f32 %v390, %v403
        %v409 = vmul.f32 %v392, %v403
        %v410 = vmul.f32 %v394, %v403
        %v411 = vmul.f32 %v396, %v403
        %v412 = vsub.f32 %v373, %v404
        %v413 = vsub.f32 %v374, %v405
        %v414 = vsub.f32 %v375, %v406
        %v415 = vsub.f32 %v376, %v407
        %v416 = vsub.f32 %v377, %v408
        %v417 = vsub.f32 %v378, %v409
        %v418 = vsub.f32 %v379, %v410
        %v419 = vsub.f32 %v380, %v411
        %v420 = vmul.f32 %v412, %v412
        %v421 = vmul.f32 %v413, %v413
        %v422 = vmul.f32 %v414, %v414
        %v423 = vmul.f32 %v415, %v415
        %v424 = vmul.f32 %v416, %v416
        %v425 = vmul.f32 %v417, %v417
        %v426 = vmul.f32 %v418, %v418
        %v427 = vmul.f32 %v419, %v419
        %428 = vadd.xlane.f32.xlu0 %v420
        %v429 = vpop.xlane.xlu0 %428
        %430 = vadd.xlane.f32.xlu0 %v421
        %v431 = vpop.xlane.xlu0 %430
        %432 = vadd.xlane.f32.xlu0 %v422
        %v433 = vpop.xlane.xlu0 %432
        %434 = vadd.xlane.f32.xlu0 %v423
        %v435 = vpop.xlane.xlu0 %434
        %436 = vadd.xlane.f32.xlu0 %v424
        %v437 = vpop.xlane.xlu0 %436
        %438 = vadd.xlane.f32.xlu0 %v425
        %v439 = vpop.xlane.xlu0 %438
        %440 = vadd.xlane.f32.xlu0 %v426
        %v441 = vpop.xlane.xlu0 %440
        %442 = vadd.xlane.f32.xlu0 %v427
        %v443 = vpop.xlane.xlu0 %442
        %v444 = vmul.f32 %v429, %v403
        %v445 = vmul.f32 %v431, %v403
        %v446 = vmul.f32 %v433, %v403
        %v447 = vmul.f32 %v435, %v403
        %v448 = vmul.f32 %v437, %v403
        %v449 = vmul.f32 %v439, %v403
        %v450 = vmul.f32 %v441, %v403
        %v451 = vmul.f32 %v443, %v403
        %v452 = vadd.f32 %v444, 1e-05
        %v453 = vadd.f32 %v445, 1e-05
        %v454 = vadd.f32 %v446, 1e-05
        %v455 = vadd.f32 %v447, 1e-05
        %v456 = vadd.f32 %v448, 1e-05
        %v457 = vadd.f32 %v449, 1e-05
        %v458 = vadd.f32 %v450, 1e-05
        %v459 = vadd.f32 %v451, 1e-05
        %v460 = vrsqrt.pop %v452
        %v461 = vmul.f32 %v460, %v452
        %v462 = vmul.f32 %v461, %v460
        %v463 = vmul.f32 0.5, %v462
        %v464 = vsub.f32 1.5, %v463
        %v465 = vmul.f32 %v460, %v464
        %vm466 = vweird.f32 %v452
        %vm467 = vweird.f32 %v460
        %vm468 = vmor %vm466, %vm467
        %v469 = vsel %vm468, %v460, %v465
        %v470 = vrsqrt.pop %v453
        %v471 = vmul.f32 %v470, %v453
        %v472 = vmul.f32 %v471, %v470
        %v473 = vmul.f32 0.5, %v472
        %v474 = vsub.f32 1.5, %v473
        %v475 = vmul.f32 %v470, %v474
        %vm476 = vweird.f32 %v453
        %vm477 = vweird.f32 %v470
        %vm478 = vmor %vm476, %vm477
        %v479 = vsel %vm478, %v470, %v475
        %v480 = vrsqrt.pop %v454
        %v481 = vmul.f32 %v480, %v454
        %v482 = vmul.f32 %v481, %v480
        %v483 = vmul.f32 0.5, %v482
        %v484 = vsub.f32 1.5, %v483
        %v485 = vmul.f32 %v480, %v484
        %vm486 = vweird.f32 %v454
        %vm487 = vweird.f32 %v480
        %vm488 = vmor %vm486, %vm487
        %v489 = vsel %vm488, %v480, %v485
        %v490 = vrsqrt.pop %v455
        %v491 = vmul.f32 %v490, %v455
        %v492 = vmul.f32 %v491, %v490
        %v493 = vmul.f32 0.5, %v492
        %v494 = vsub.f32 1.5, %v493
        %v495 = vmul.f32 %v490, %v494
        %vm496 = vweird.f32 %v455
        %vm497 = vweird.f32 %v490
        %vm498 = vmor %vm496, %vm497
        %v499 = vsel %vm498, %v490, %v495
        %v500 = vrsqrt.pop %v456
        %v501 = vmul.f32 %v500, %v456
        %v502 = vmul.f32 %v501, %v500
        %v503 = vmul.f32 0.5, %v502
        %v504 = vsub.f32 1.5, %v503
        %v505 = vmul.f32 %v500, %v504
        %vm506 = vweird.f32 %v456
        %vm507 = vweird.f32 %v500
        %vm508 = vmor %vm506, %vm507
        %v509 = vsel %vm508, %v500, %v505
        %v510 = vrsqrt.pop %v457
        %v511 = vmul.f32 %v510, %v457
        %v512 = vmul.f32 %v511, %v510
        %v513 = vmul.f32 0.5, %v512
        %v514 = vsub.f32 1.5, %v513
        %v515 = vmul.f32 %v510, %v514
        %vm516 = vweird.f32 %v457
        %vm517 = vweird.f32 %v510
        %vm518 = vmor %vm516, %vm517
        %v519 = vsel %vm518, %v510, %v515
        %v520 = vrsqrt.pop %v458
        %v521 = vmul.f32 %v520, %v458
        %v522 = vmul.f32 %v521, %v520
        %v523 = vmul.f32 0.5, %v522
        %v524 = vsub.f32 1.5, %v523
        %v525 = vmul.f32 %v520, %v524
        %vm526 = vweird.f32 %v458
        %vm527 = vweird.f32 %v520
        %vm528 = vmor %vm526, %vm527
        %v529 = vsel %vm528, %v520, %v525
        %v530 = vrsqrt.pop %v459
        %v531 = vmul.f32 %v530, %v459
        %v532 = vmul.f32 %v531, %v530
        %v533 = vmul.f32 0.5, %v532
        %v534 = vsub.f32 1.5, %v533
        %v535 = vmul.f32 %v530, %v534
        %vm536 = vweird.f32 %v459
        %vm537 = vweird.f32 %v530
        %vm538 = vmor %vm536, %vm537
        %v539 = vsel %vm538, %v530, %v535
        %v540 = vmul.f32 %v412, %v469
        %v541 = vmul.f32 %v413, %v479
        %v542 = vmul.f32 %v414, %v489
        %v543 = vmul.f32 %v415, %v499
        %v544 = vmul.f32 %v416, %v509
        %v545 = vmul.f32 %v417, %v519
        %v546 = vmul.f32 %v418, %v529
        %v547 = vmul.f32 %v419, %v539
        %v548 = vld [vmem:[%s2] sm:$0x1]
        %v550 = vperm.slane %v548, 0
        %v552 = vmul.f32 %v540, %v550
        %v553 = vmul.f32 %v541, %v550
        %v554 = vmul.f32 %v542, %v550
        %v555 = vmul.f32 %v543, %v550
        %v556 = vmul.f32 %v544, %v550
        %v557 = vmul.f32 %v545, %v550
        %v558 = vmul.f32 %v546, %v550
        %v559 = vmul.f32 %v547, %v550
        %v560 = vld [vmem:[%s3] sm:$0x1]
        %v562 = vperm.slane %v560, 0
        %v564 = vadd.f32 %v552, %v562
        %v565 = vadd.f32 %v553, %v562
        %v566 = vadd.f32 %v554, %v562
        %v567 = vadd.f32 %v555, %v562
        %v568 = vadd.f32 %v556, %v562
        %v569 = vadd.f32 %v557, %v562
        %v570 = vadd.f32 %v558, %v562
        %v571 = vadd.f32 %v559, %v562
        %v572 = vpack.c.bf16 %v565, %v564
        %v573 = vpack.c.bf16 %v567, %v566
        %v574 = vpack.c.bf16 %v569, %v568
        %v575 = vpack.c.bf16 %v571, %v570
        %v576 = vld [vmem:[%s326] sm:$0xff]
        %v577 = vld [vmem:[%s326 + $0x8] sm:$0xff]
        %v578 = vld [vmem:[%s326 + $0x10] sm:$0xff]
        %v579 = vld [vmem:[%s326 + $0x18] sm:$0xff]
        %v580 = vld [vmem:[%s326 + $0x20] sm:$0xff]
        %v581 = vld [vmem:[%s326 + $0x28] sm:$0xff]
        %v582 = vld [vmem:[%s326 + $0x30] sm:$0xff]
        %v583 = vld [vmem:[%s326 + $0x38] sm:$0xff]
        %v584 = vld [vmem:[%s326 + $0x40] sm:$0xff]
        %v585 = vld [vmem:[%s326 + $0x48] sm:$0xff]
        %v586 = vld [vmem:[%s326 + $0x50] sm:$0xff]
        %v587 = vld [vmem:[%s326 + $0x58] sm:$0xff]
        %v588 = vld [vmem:[%s326 + $0x60] sm:$0xff]
        %v589 = vld [vmem:[%s326 + $0x68] sm:$0xff]
        %v590 = vld [vmem:[%s326 + $0x70] sm:$0xff]
        %v591 = vld [vmem:[%s326 + $0x78] sm:$0xff]
        %v592 = vld [vmem:[%s369] sm:$0x3]
        %v594 = vperm.slane %v592, 0
        %v595 = vperm.slane %v592, 1
        %v614 = vunpack.c.l.b16 %v576
        %v615 = vunpack.c.h.b16 %v576
        %v616 = vunpack.c.l.b16 %v577
        %v617 = vunpack.c.h.b16 %v577
        %v618 = vunpack.c.l.b16 %v578
        %v619 = vunpack.c.h.b16 %v578
        %v620 = vunpack.c.l.b16 %v579
        %v621 = vunpack.c.h.b16 %v579
        %v622 = vunpack.c.l.b16 %v580
        %v623 = vunpack.c.h.b16 %v580
        %v624 = vunpack.c.l.b16 %v581
        %v625 = vunpack.c.h.b16 %v581
        %v626 = vunpack.c.l.b16 %v582
        %v627 = vunpack.c.h.b16 %v582
        %v628 = vunpack.c.l.b16 %v583
        %v629 = vunpack.c.h.b16 %v583
        %v630 = vunpack.c.l.b16 %v584
        %v631 = vunpack.c.h.b16 %v584
        %v632 = vunpack.c.l.b16 %v585
        %v633 = vunpack.c.h.b16 %v585
        %v634 = vunpack.c.l.b16 %v586
        %v635 = vunpack.c.h.b16 %v586
        %v636 = vunpack.c.l.b16 %v587
        %v637 = vunpack.c.h.b16 %v587
        %v638 = vunpack.c.l.b16 %v588
        %v639 = vunpack.c.h.b16 %v588
        %v640 = vunpack.c.l.b16 %v589
        %v641 = vunpack.c.h.b16 %v589
        %v642 = vunpack.c.l.b16 %v590
        %v643 = vunpack.c.h.b16 %v590
        %v644 = vunpack.c.l.b16 %v591
        %v645 = vunpack.c.h.b16 %v591
        %v646 = vpack.c.b16 %v616, %v614
        %v647 = vpack.c.b16 %v617, %v615
        %v648 = vpack.c.b16 %v620, %v618
        %v649 = vpack.c.b16 %v621, %v619
        %v650 = vpack.c.b16 %v624, %v622
        %v651 = vpack.c.b16 %v625, %v623
        %v652 = vpack.c.b16 %v628, %v626
        %v653 = vpack.c.b16 %v629, %v627
        %v654 = vpack.c.b16 %v632, %v630
        %v655 = vpack.c.b16 %v633, %v631
        %v656 = vpack.c.b16 %v636, %v634
        %v657 = vpack.c.b16 %v637, %v635
        %v658 = vpack.c.b16 %v640, %v638
        %v659 = vpack.c.b16 %v641, %v639
        %v660 = vpack.c.b16 %v644, %v642
        %v661 = vpack.c.b16 %v645, %v643
        %678 = vmatpush.bf16.msra.mxu0 %v660
        %679 = vmatpush.bf16.msra.mxu0 %v658
        %680 = vmatpush.bf16.msra.mxu0 %v656
        %681 = vmatpush.bf16.msra.mxu0 %v654
        %682 = vmatpush.bf16.msra.mxu0 %v652
        %683 = vmatpush.bf16.msra.mxu0 %v650
        %684 = vmatpush.bf16.msra.mxu0 %v648
        %685 = vmatpush.bf16.msra.mxu0 %v646
        %686 = vmatmul.bf16.gmra.mxu0 %v572
        %v687 = vpop.f32.mrf.mxu0
        %v688 = vadd.f32 %v594, %v687
        %v689 = vpop.f32.mrf.mxu0
        %v690 = vadd.f32 %v594, %v689
        %691 = vmatmul.bf16.gmra.mxu0 %v573
        %v692 = vpop.f32.mrf.mxu0
        %v693 = vadd.f32 %v594, %v692
        %v694 = vpop.f32.mrf.mxu0
        %v695 = vadd.f32 %v594, %v694
        %696 = vmatmul.bf16.gmra.mxu0 %v574
        %v697 = vpop.f32.mrf.mxu0
        %v698 = vadd.f32 %v594, %v697
        %v699 = vpop.f32.mrf.mxu0
        %v700 = vadd.f32 %v594, %v699
        %701 = vmatmul.bf16.gmra.mxu0 %v575
        %v702 = vpop.f32.mrf.mxu0
        %v703 = vadd.f32 %v594, %v702
        %v704 = vpop.f32.mrf.mxu0
        %v705 = vadd.f32 %v594, %v704
        %706 = vdwg.mxu0
        %707 = vmatpush.bf16.msra.mxu0 %v661
        %708 = vmatpush.bf16.msra.mxu0 %v659
        %709 = vmatpush.bf16.msra.mxu0 %v657
        %710 = vmatpush.bf16.msra.mxu0 %v655
        %711 = vmatpush.bf16.msra.mxu0 %v653
        %712 = vmatpush.bf16.msra.mxu0 %v651
        %713 = vmatpush.bf16.msra.mxu0 %v649
        %714 = vmatpush.bf16.msra.mxu0 %v647
        %715 = vmatmul.bf16.gmra.mxu0 %v572
        %v716 = vpop.f32.mrf.mxu0
        %v717 = vadd.f32 %v595, %v716
        %v718 = vpop.f32.mrf.mxu0
        %v719 = vadd.f32 %v595, %v718
        %720 = vmatmul.bf16.gmra.mxu0 %v573
        %v721 = vpop.f32.mrf.mxu0
        %v722 = vadd.f32 %v595, %v721
        %v723 = vpop.f32.mrf.mxu0
        %v724 = vadd.f32 %v595, %v723
        %725 = vmatmul.bf16.gmra.mxu0 %v574
        %v726 = vpop.f32.mrf.mxu0
        %v727 = vadd.f32 %v595, %v726
        %v728 = vpop.f32.mrf.mxu0
        %v729 = vadd.f32 %v595, %v728
        %730 = vmatmul.bf16.gmra.mxu0 %v575
        %v731 = vpop.f32.mrf.mxu0
        %v732 = vadd.f32 %v595, %v731
        %v733 = vpop.f32.mrf.mxu0
        %v734 = vadd.f32 %v595, %v733
        %735 = vdwg.mxu0
        %v736 = vmul.f32 %v688, 0.5
        %v737 = vmul.f32 %v717, 0.5
        %v738 = vmul.f32 %v690, 0.5
        %v739 = vmul.f32 %v719, 0.5
        %v740 = vmul.f32 %v693, 0.5
        %v741 = vmul.f32 %v722, 0.5
        %v742 = vmul.f32 %v695, 0.5
        %v743 = vmul.f32 %v724, 0.5
        %v744 = vmul.f32 %v698, 0.5
        %v745 = vmul.f32 %v727, 0.5
        %v746 = vmul.f32 %v700, 0.5
        %v747 = vmul.f32 %v729, 0.5
        %v748 = vmul.f32 %v703, 0.5
        %v749 = vmul.f32 %v732, 0.5
        %v750 = vmul.f32 %v705, 0.5
        %v751 = vmul.f32 %v734, 0.5
        %v752 = vmul.f32 %v688, 0.044715
        %v753 = vmul.f32 %v717, 0.044715
        %v754 = vmul.f32 %v690, 0.044715
        %v755 = vmul.f32 %v719, 0.044715
        %v756 = vmul.f32 %v693, 0.044715
        %v757 = vmul.f32 %v722, 0.044715
        %v758 = vmul.f32 %v695, 0.044715
        %v759 = vmul.f32 %v724, 0.044715
        %v760 = vmul.f32 %v698, 0.044715
        %v761 = vmul.f32 %v727, 0.044715
        %v762 = vmul.f32 %v700, 0.044715
        %v763 = vmul.f32 %v729, 0.044715
        %v764 = vmul.f32 %v703, 0.044715
        %v765 = vmul.f32 %v732, 0.044715
        %v766 = vmul.f32 %v705, 0.044715
        %v767 = vmul.f32 %v734, 0.044715
        %v768 = vmul.f32 %v752, %v688
        %v769 = vmul.f32 %v753, %v717
        %v770 = vmul.f32 %v754, %v690
        %v771 = vmul.f32 %v755, %v719
        %v772 = vmul.f32 %v756, %v693
        %v773 = vmul.f32 %v757, %v722
        %v774 = vmul.f32 %v758, %v695
        %v775 = vmul.f32 %v759, %v724
        %v776 = vmul.f32 %v760, %v698
        %v777 = vmul.f32 %v761, %v727
        %v778 = vmul.f32 %v762, %v700
        %v779 = vmul.f32 %v763, %v729
        %v780 = vmul.f32 %v764, %v703
        %v781 = vmul.f32 %v765, %v732
        %v782 = vmul.f32 %v766, %v705
        %v783 = vmul.f32 %v767, %v734
        %v784 = vmul.f32 %v768, %v688
        %v785 = vmul.f32 %v769, %v717
        %v786 = vmul.f32 %v770, %v690
        %v787 = vmul.f32 %v771, %v719
        %v788 = vmul.f32 %v772, %v693
        %v789 = vmul.f32 %v773, %v722
        %v790 = vmul.f32 %v774, %v695
        %v791 = vmul.f32 %v775, %v724
        %v792 = vmul.f32 %v776, %v698
        %v793 = vmul.f32 %v777, %v727
        %v794 = vmul.f32 %v778, %v700
        %v795 = vmul.f32 %v779, %v729
        %v796 = vmul.f32 %v780, %v703
        %v797 = vmul.f32 %v781, %v732
        %v798 = vmul.f32 %v782, %v705
        %v799 = vmul.f32 %v783, %v734
        %v800 = vadd.f32 %v688, %v784
        %v801 = vadd.f32 %v717, %v785
        %v802 = vadd.f32 %v690, %v786
        %v803 = vadd.f32 %v719, %v787
        %v804 = vadd.f32 %v693, %v788
        %v805 = vadd.f32 %v722, %v789
        %v806 = vadd.f32 %v695, %v790
        %v807 = vadd.f32 %v724, %v791
        %v808 = vadd.f32 %v698, %v792
        %v809 = vadd.f32 %v727, %v793
        %v810 = vadd.f32 %v700, %v794
        %v811 = vadd.f32 %v729, %v795
        %v812 = vadd.f32 %v703, %v796
        %v813 = vadd.f32 %v732, %v797
        %v814 = vadd.f32 %v705, %v798
        %v815 = vadd.f32 %v734, %v799
        %v816 = vmul.f32 %v800, 0.7978846
        %v817 = vmul.f32 %v801, 0.7978846
        %v818 = vmul.f32 %v802, 0.7978846
        %v819 = vmul.f32 %v803, 0.7978846
        %v820 = vmul.f32 %v804, 0.7978846
        %v821 = vmul.f32 %v805, 0.7978846
        %v822 = vmul.f32 %v806, 0.7978846
        %v823 = vmul.f32 %v807, 0.7978846
        %v824 = vmul.f32 %v808, 0.7978846
        %v825 = vmul.f32 %v809, 0.7978846
        %v826 = vmul.f32 %v810, 0.7978846
        %v827 = vmul.f32 %v811, 0.7978846
        %v828 = vmul.f32 %v812, 0.7978846
        %v829 = vmul.f32 %v813, 0.7978846
        %v830 = vmul.f32 %v814, 0.7978846
        %v831 = vmul.f32 %v815, 0.7978846
        %v832 = vtanh.pop %v816
        %v833 = vtanh.pop %v817
        %v834 = vtanh.pop %v818
        %v835 = vtanh.pop %v819
        %v836 = vtanh.pop %v820
        %v837 = vtanh.pop %v821
        %v838 = vtanh.pop %v822
        %v839 = vtanh.pop %v823
        %v840 = vtanh.pop %v824
        %v841 = vtanh.pop %v825
        %v842 = vtanh.pop %v826
        %v843 = vtanh.pop %v827
        %v844 = vtanh.pop %v828
        %v845 = vtanh.pop %v829
        %v846 = vtanh.pop %v830
        %v847 = vtanh.pop %v831
        %v848 = vadd.f32 %v832, 1.0
        %v849 = vadd.f32 %v833, 1.0
        %v850 = vadd.f32 %v834, 1.0
        %v851 = vadd.f32 %v835, 1.0
        %v852 = vadd.f32 %v836, 1.0
        %v853 = vadd.f32 %v837, 1.0
        %v854 = vadd.f32 %v838, 1.0
        %v855 = vadd.f32 %v839, 1.0
        %v856 = vadd.f32 %v840, 1.0
        %v857 = vadd.f32 %v841, 1.0
        %v858 = vadd.f32 %v842, 1.0
        %v859 = vadd.f32 %v843, 1.0
        %v860 = vadd.f32 %v844, 1.0
        %v861 = vadd.f32 %v845, 1.0
        %v862 = vadd.f32 %v846, 1.0
        %v863 = vadd.f32 %v847, 1.0
        %v864 = vmul.f32 %v736, %v848
        %v865 = vmul.f32 %v737, %v849
        %v866 = vmul.f32 %v738, %v850
        %v867 = vmul.f32 %v739, %v851
        %v868 = vmul.f32 %v740, %v852
        %v869 = vmul.f32 %v741, %v853
        %v870 = vmul.f32 %v742, %v854
        %v871 = vmul.f32 %v743, %v855
        %v872 = vmul.f32 %v744, %v856
        %v873 = vmul.f32 %v745, %v857
        %v874 = vmul.f32 %v746, %v858
        %v875 = vmul.f32 %v747, %v859
        %v876 = vmul.f32 %v748, %v860
        %v877 = vmul.f32 %v749, %v861
        %v878 = vmul.f32 %v750, %v862
        %v879 = vmul.f32 %v751, %v863
        %v880 = vpack.c.bf16 %v865, %v864
        %v881 = vpack.c.bf16 %v867, %v866
        %v882 = vpack.c.bf16 %v869, %v868
        %v883 = vpack.c.bf16 %v871, %v870
        %v884 = vpack.c.bf16 %v873, %v872
        %v885 = vpack.c.bf16 %v875, %v874
        %v886 = vpack.c.bf16 %v877, %v876
        %v887 = vpack.c.bf16 %v879, %v878
        %888 = vst [vmem:[%s358] sm:$0xff] %v880
        %889 = vst [vmem:[%s358 + $0x8] sm:$0xff] %v881
        %890 = vst [vmem:[%s358 + $0x10] sm:$0xff] %v882
        %891 = vst [vmem:[%s358 + $0x18] sm:$0xff] %v883
        %892 = vst [vmem:[%s358 + $0x20] sm:$0xff] %v884
        %893 = vst [vmem:[%s358 + $0x28] sm:$0xff] %v885
        %894 = vst [vmem:[%s358 + $0x30] sm:$0xff] %v886
        %895 = vst [vmem:[%s358 + $0x38] sm:$0xff] %v887
        %s896 = sand.u32 %s158, 1
        %s897 = sand.u32 %s158, 1
        %s898 = smul.addr %s897, 64
        %s899 = scalar_lea.vmem [#allocation3], %s898
        // Predicated region
        $region79: #{gpt_forward.15} parent=73 // pred_check
          %p900 = pneg %p168
        $region80: #{gpt_forward.15} parent=73 // pred_check_branch
          %902 = sbr.rel (%p900) target = $region82
        $region81: #{gpt_forward.15} parent=73 // pred_region
          %s903 = smul.u32 8, %s20
          %s904 = smul.u32 2, %s21
          %s905 = smul.addr %s903, 4
          %s906 = sadd.s32 %s904, %s905
          %s907 = smul.addr %s906, 4
          %s908 = scalar_lea.vmem %s5, %s907
          // Predicated region
          $region83: #{gpt_forward.15} parent=81 // pred_check
            _
          $region84: #{gpt_forward.15} parent=81 // pred_check_branch
            %910 = sbr.rel (0) target = $region86
          $region85: #{gpt_forward.15} parent=81 // pred_region
            // Predicated region
            $region87: #{gpt_forward.15} parent=85 // pred_check
              _
            $region88: #{gpt_forward.15} parent=85 // pred_check_branch
              %912 = sbr.rel (0) target = $region90
            $region89: #{gpt_forward.15} parent=85 // pred_region
              // Predicated region
              $region102: #{gpt_forward.15} parent=89 // pred_check
                _
              $region103: #{gpt_forward.15} parent=89 // pred_check_branch
                %942 = sbr.rel (0) target = $region105
              $region104: #{gpt_forward.15} parent=89 // pred_region
                loop: start=0, step=1, limit=1
                $region106: #{gpt_forward.15} parent=104 // loop_pre_header
                  _
                $region107: #{gpt_forward.15} parent=104 // loop_header
                  %s944 = sphi 0, %s948
                  %p945 = scmp.ge.s32.totalorder %s944, 1
                  %s949 = sphi %s899, %s899
                  %s950 = sphi %s908, %s908
                $region108: #{gpt_forward.15} parent=104 // loop_header_branch
                  %947 = sbr.rel (%p945) target = $region112
                $region109: #{gpt_forward.15} parent=104 // loop_body
                  %v951 = vld [vmem:[%s949] sm:$0xff]
                  %952 = vst [vmem:[%s950] sm:$0xff] %v951
                  %v953 = vld [vmem:[%s949 + $0x8] sm:$0xff]
                  %954 = vst [vmem:[%s950 + $0x10] sm:$0xff] %v953
                  %v955 = vld [vmem:[%s949 + $0x10] sm:$0xff]
                  %956 = vst [vmem:[%s950 + $0x20] sm:$0xff] %v955
                  %v957 = vld [vmem:[%s949 + $0x18] sm:$0xff]
                  %958 = vst [vmem:[%s950 + $0x30] sm:$0xff] %v957
                  %v959 = vld [vmem:[%s949 + $0x20] sm:$0xff]
                  %960 = vst [vmem:[%s950 + $0x40] sm:$0xff] %v959
                  %v961 = vld [vmem:[%s949 + $0x28] sm:$0xff]
                  %962 = vst [vmem:[%s950 + $0x50] sm:$0xff] %v961
                  %v963 = vld [vmem:[%s949 + $0x30] sm:$0xff]
                  %964 = vst [vmem:[%s950 + $0x60] sm:$0xff] %v963
                  %v965 = vld [vmem:[%s949 + $0x38] sm:$0xff]
                  %966 = vst [vmem:[%s950 + $0x70] sm:$0xff] %v965
                $region110: #{gpt_forward.15} parent=104 // loop_footer
                  %s948 = sadd.s32 1, %s944
                $region111: #{gpt_forward.15} parent=104 // loop_footer_branch
                  %943 = sbr.rel target = $region107
                $region112: #{gpt_forward.15} parent=104 // loop_exit
                  _
              $region105: #{gpt_forward.15} parent=89 // pred_fallthru
                _
              // Predicated region
              $region113: #{gpt_forward.15} parent=89 // pred_check
                _
              $region114: #{gpt_forward.15} parent=89 // pred_check_branch
                %968 = sbr.rel target = $region116
              $region115: #{gpt_forward.15} parent=89 // pred_region
                _
              $region116: #{gpt_forward.15} parent=89 // pred_fallthru
                _
            $region90: #{gpt_forward.15} parent=85 // pred_fallthru
              _
            // Predicated region
            $region91: #{gpt_forward.15} parent=85 // pred_check
              _
            $region92: #{gpt_forward.15} parent=85 // pred_check_branch
              %914 = sbr.rel target = $region94
            $region93: #{gpt_forward.15} parent=85 // pred_region
              %s916 = ssub.s32 256, 1
              loop: start=0, step=1, limit=1
              $region95: #{gpt_forward.15} parent=93 // loop_pre_header
                _
              $region96: #{gpt_forward.15} parent=93 // loop_header
                %s918 = sphi 0, %s922
                %p919 = scmp.ge.s32.totalorder %s918, 1
                %s923 = sphi %s899, %s899
                %s924 = sphi %s908, %s908
              $region97: #{gpt_forward.15} parent=93 // loop_header_branch
                %921 = sbr.rel (%p919) target = $region101
              $region98: #{gpt_forward.15} parent=93 // loop_body
                %v925 = vld [vmem:[%s923] sm:%s916]
                %926 = vst [vmem:[%s924] sm:%s916] %v925
                %v927 = vld [vmem:[%s923 + $0x8] sm:%s916]
                %928 = vst [vmem:[%s924 + $0x10] sm:%s916] %v927
                %v929 = vld [vmem:[%s923 + $0x10] sm:%s916]
                %930 = vst [vmem:[%s924 + $0x20] sm:%s916] %v929
                %v931 = vld [vmem:[%s923 + $0x18] sm:%s916]
                %932 = vst [vmem:[%s924 + $0x30] sm:%s916] %v931
                %v933 = vld [vmem:[%s923 + $0x20] sm:%s916]
                %934 = vst [vmem:[%s924 + $0x40] sm:%s916] %v933
                %v935 = vld [vmem:[%s923 + $0x28] sm:%s916]
                %936 = vst [vmem:[%s924 + $0x50] sm:%s916] %v935
                %v937 = vld [vmem:[%s923 + $0x30] sm:%s916]
                %938 = vst [vmem:[%s924 + $0x60] sm:%s916] %v937
                %v939 = vld [vmem:[%s923 + $0x38] sm:%s916]
                %940 = vst [vmem:[%s924 + $0x70] sm:%s916] %v939
              $region99: #{gpt_forward.15} parent=93 // loop_footer
                %s922 = sadd.s32 1, %s918
              $region100: #{gpt_forward.15} parent=93 // loop_footer_branch
                %917 = sbr.rel target = $region96
              $region101: #{gpt_forward.15} parent=93 // loop_exit
                _
            $region94: #{gpt_forward.15} parent=85 // pred_fallthru
              _
          $region86: #{gpt_forward.15} parent=81 // pred_fallthru
            _
          %969 = vnop
        $region82: #{gpt_forward.15} parent=73 // pred_fallthru
          _
      $region74: #{gpt_forward.15} parent=5 // pred_fallthru
        _
      %p970 = scmp.le.s32.totalorder 2, %s11
      // Predicated region
      $region117: #{gpt_forward.15} parent=5 // pred_check
        %p971 = pneg %p970
      $region118: #{gpt_forward.15} parent=5 // pred_check_branch
        %973 = sbr.rel (%p971) target = $region120
      $region119: #{gpt_forward.15} parent=5 // pred_region
        %s974 = ssub.s32 %s11, 2
        // Predicated region
        $region121: #{gpt_forward.15} parent=119 // pred_check
          %p975 = pneg %p174
        $region122: #{gpt_forward.15} parent=119 // pred_check_branch
          %977 = sbr.rel (%p975) target = $region124
        $region123: #{gpt_forward.15} parent=119 // pred_region
          %s978 = sand.u32 %s159, 1
          %s979 = sand.u32 %s159, 1
          %s980 = smul.addr %s979, 64
          %s981 = scalar_lea.vmem [#allocation3], %s980
        $region124: #{gpt_forward.15} parent=119 // pred_fallthru
          _
      $region120: #{gpt_forward.15} parent=5 // pred_fallthru
        _
    $region6: #{gpt_forward.15} parent=1 // loop_footer
      %s15 = sadd.s32 1, %s11
    $region7: #{gpt_forward.15} parent=1 // loop_footer_branch
      %10 = sbr.rel target = $region3
    $region8: #{gpt_forward.15} parent=1 // loop_exit
      _

// kernel: gpt_forward.12
$region0: #{gpt_forward.12}
  #allocation0 [shape = 'u32[]', space=smem, size = 0x4, offset = 0x4, fixed_abs, tag = 'smem constant byte address 0x4 - core index']
  #allocation1 [shape = 'u32[72,128]{1,0:T(1,128)}', space=vmem, size = 0x9000, scoped, tag = 'internal scratch']
  %s0 = inlined_call_operand.vmem [shape: f32[64,128], index: 0, kind: input, shape index: {}]
  %s1 = inlined_call_operand.hbm [shape: bf16[128,384], index: 1, kind: input, shape index: {}]
  %s2 = inlined_call_operand.vmem [shape: f32[1,128], index: 2, kind: input, shape index: {}]
  %s3 = inlined_call_operand.vmem [shape: f32[1,128], index: 3, kind: input, shape index: {}]
  %s4 = inlined_call_operand.vmem [shape: f32[1,384], index: 4, kind: input, shape index: {}]
  %s5 = inlined_call_operand.vmem [shape: bf16[64,384], index: 5, kind: output, shape index: {}]
  %s6 = sld [smem:[#allocation0]]
  $region94: #{gpt_forward.12} parent=0
    _
  %s8 = ssub.s32 1, %s6
  %s9 = scalar_select 0, %s8, %s6
  $region1: #{gpt_forward.12} parent=0
    #allocation2 [shape = 'u8[65536]{0}', space=vmem, size = 0x10000, scoped, tag = 'input window, operand 1']
    #allocation3 [shape = 's32[2]{0}', space=sflag, size = 0x8, scoped, tag = 'scoped memory for gpt_forward.12']
    #allocation4 [shape = 'u8[32768]{0}', space=vmem, size = 0x8000, scoped, tag = 'output window, operand 0']
    %10 = vsyncpa [#allocation3], 0
    %s11 = scalar_lea.sflag [#allocation3], 1
    %12 = vsyncpa %s11, 0
    loop: start=0, step=1, limit=5
    $region2: #{gpt_forward.12} parent=1 // loop_pre_header
      _
    $region3: #{gpt_forward.12} parent=1 // loop_header
      %s14 = sphi 0, %s18
      %p15 = scmp.ge.s32.totalorder %s14, 5
      %s21 = sphi 0, %s33
      %s22 = sphi 0, %s29
      %s23 = sphi 0, %s21
      %s24 = sphi 0, %s22
      %s25 = sphi 0, %s23
      %s26 = sphi 0, %s24
      %s36 = sphi 0, %s38
      %s39 = sphi 0, %s36
      %s40 = sphi 0, %s39
      %s56 = sphi 0, %s40
      %s62 = sphi 0, %s64
      %s65 = sphi 0, %s62
      %s66 = sphi 0, %s65
      %s82 = sphi 0, %s66
      %s86 = sphi 0, %s86
      %s88 = sphi 0, %s86
      %s89 = sphi 0, %s88
      %s103 = sphi 0, %s89
      %s107 = sphi 0, %s107
      %s109 = sphi 0, %s107
      %s110 = sphi 0, %s109
      %s124 = sphi 0, %s110
      %s130 = sphi 0, %s132
      %s133 = sphi 0, %s130
      %s134 = sphi 0, %s133
      %s150 = sphi 0, %s134
      %s158 = sphi 0, %s160
      %s161 = sphi 0, %s158
      %s162 = sphi 0, %s161
      %s178 = sphi 0, %s162
    $region4: #{gpt_forward.12} parent=1 // loop_header_branch
      %17 = sbr.rel (%p15) target = $region8
    $region5: #{gpt_forward.12} parent=1 // loop_body
      %s19 = ssub.s32 %s14, 1
      %s20 = ssub.s32 %s14, 2
      %s27 = sadd.s32 1, %s22
      %p28 = scmp.ge.s32.totalorder %s27, 3
      %s29 = scalar_select %p28, 0, %s27
      %s30 = sadd.s32 1, %s21
      %s31 = scalar_select %p28, %s30, %s21
      %p32 = scmp.ge.s32.totalorder %s31, 1
      %s33 = scalar_select %p32, 0, %s31
      %s34 = ssub.s32 %s21, %s33
      %p35 = scmp.eq.s32.totalorder %s34, 0
      %s37 = sadd.s32 %s36, 1
      %s38 = scalar_select %p35, %s36, %s37
      %p41 = pneg %p35
      %p42 = scmp.eq.s32.totalorder %s14, 2
      %p43 = por %p41, %p42
      %p44 = scmp.ne.s32.totalorder %s36, %s39
      %p45 = scmp.eq.s32.totalorder %s14, 0
      %p46 = por %p44, %p45
      %p47 = scmp.ne.s32.totalorder %s36, %s39
      %p48 = scmp.eq.s32.totalorder %s19, 2
      %p49 = por %p47, %p48
      %p50 = scmp.ne.s32.totalorder %s39, %s40
      %p51 = scmp.eq.s32.totalorder %s19, 0
      %p52 = por %p50, %p51
      %p53 = scmp.ne.s32.totalorder %s39, %s40
      %p54 = scmp.eq.s32.totalorder %s20, 2
      %p55 = por %p53, %p54
      %p57 = scmp.ne.s32.totalorder %s40, %s56
      %p58 = scmp.eq.s32.totalorder %s20, 0
      %p59 = por %p57, %p58
      %s60 = ssub.s32 %s22, %s29
      %p61 = scmp.eq.s32.totalorder %s60, 0
      %s63 = sadd.s32 %s62, 1
      %s64 = scalar_select %p61, %s62, %s63
      %p67 = pneg %p61
      %p68 = scmp.eq.s32.totalorder %s14, 2
      %p69 = por %p67, %p68
      %p70 = scmp.ne.s32.totalorder %s62, %s65
      %p71 = scmp.eq.s32.totalorder %s14, 0
      %p72 = por %p70, %p71
      %p73 = scmp.ne.s32.totalorder %s62, %s65
      %p74 = scmp.eq.s32.totalorder %s19, 2
      %p75 = por %p73, %p74
      %p76 = scmp.ne.s32.totalorder %s65, %s66
      %p77 = scmp.eq.s32.totalorder %s19, 0
      %p78 = por %p76, %p77
      %p79 = scmp.ne.s32.totalorder %s65, %s66
      %p80 = scmp.eq.s32.totalorder %s20, 2
      %p81 = por %p79, %p80
      %p83 = scmp.ne.s32.totalorder %s66, %s82
      %p84 = scmp.eq.s32.totalorder %s20, 0
      %p85 = por %p83, %p84
      %s87 = sadd.s32 %s86, 1
      %p90 = scmp.eq.s32.totalorder %s14, 2
      %p91 = scmp.ne.s32.totalorder %s86, %s88
      %p92 = scmp.eq.s32.totalorder %s14, 0
      %p93 = por %p91, %p92
      %p94 = scmp.ne.s32.totalorder %s86, %s88
      %p95 = scmp.eq.s32.totalorder %s19, 2
      %p96 = por %p94, %p95
      %p97 = scmp.ne.s32.totalorder %s88, %s89
      %p98 = scmp.eq.s32.totalorder %s19, 0
      %p99 = por %p97, %p98
      %p100 = scmp.ne.s32.totalorder %s88, %s89
      %p101 = scmp.eq.s32.totalorder %s20, 2
      %p102 = por %p100, %p101
      %p104 = scmp.ne.s32.totalorder %s89, %s103
      %p105 = scmp.eq.s32.totalorder %s20, 0
      %p106 = por %p104, %p105
      %s108 = sadd.s32 %s107, 1
      %p111 = scmp.eq.s32.totalorder %s14, 2
      %p112 = scmp.ne.s32.totalorder %s107, %s109
      %p113 = scmp.eq.s32.totalorder %s14, 0
      %p114 = por %p112, %p113
      %p115 = scmp.ne.s32.totalorder %s107, %s109
      %p116 = scmp.eq.s32.totalorder %s19, 2
      %p117 = por %p115, %p116
      %p118 = scmp.ne.s32.totalorder %s109, %s110
      %p119 = scmp.eq.s32.totalorder %s19, 0
      %p120 = por %p118, %p119
      %p121 = scmp.ne.s32.totalorder %s109, %s110
      %p122 = scmp.eq.s32.totalorder %s20, 2
      %p123 = por %p121, %p122
      %p125 = scmp.ne.s32.totalorder %s110, %s124
      %p126 = scmp.eq.s32.totalorder %s20, 0
      %p127 = por %p125, %p126
      %s128 = ssub.s32 %s22, %s29
      %p129 = scmp.eq.s32.totalorder %s128, 0
      %s131 = sadd.s32 %s130, 1
      %s132 = scalar_select %p129, %s130, %s131
      %p135 = pneg %p129
      %p136 = scmp.eq.s32.totalorder %s14, 2
      %p137 = por %p135, %p136
      %p138 = scmp.ne.s32.totalorder %s130, %s133
      %p139 = scmp.eq.s32.totalorder %s14, 0
      %p140 = por %p138, %p139
      %p141 = scmp.ne.s32.totalorder %s130, %s133
      %p142 = scmp.eq.s32.totalorder %s19, 2
      %p143 = por %p141, %p142
      %p144 = scmp.ne.s32.totalorder %s133, %s134
      %p145 = scmp.eq.s32.totalorder %s19, 0
      %p146 = por %p144, %p145
      %p147 = scmp.ne.s32.totalorder %s133, %s134
      %p148 = scmp.eq.s32.totalorder %s20, 2
      %p149 = por %p147, %p148
      %p151 = scmp.ne.s32.totalorder %s134, %s150
      %p152 = scmp.eq.s32.totalorder %s20, 0
      %p153 = por %p151, %p152
      %s154 = ssub.s32 %s21, %s33
      %s155 = ssub.s32 %s22, %s29
      %s156 = sor.u32 %s154, %s155
      %p157 = scmp.eq.s32.totalorder %s156, 0
      %s159 = sadd.s32 %s158, 1
      %s160 = scalar_select %p157, %s158, %s159
      %p163 = pneg %p157
      %p164 = scmp.eq.s32.totalorder %s14, 2
      %p165 = por %p163, %p164
      %p166 = scmp.ne.s32.totalorder %s158, %s161
      %p167 = scmp.eq.s32.totalorder %s14, 0
      %p168 = por %p166, %p167
      %p169 = scmp.ne.s32.totalorder %s158, %s161
      %p170 = scmp.eq.s32.totalorder %s19, 2
      %p171 = por %p169, %p170
      %p172 = scmp.ne.s32.totalorder %s161, %s162
      %p173 = scmp.eq.s32.totalorder %s19, 0
      %p174 = por %p172, %p173
      %p175 = scmp.ne.s32.totalorder %s161, %s162
      %p176 = scmp.eq.s32.totalorder %s20, 2
      %p177 = por %p175, %p176
      %p179 = scmp.ne.s32.totalorder %s162, %s178
      %p180 = scmp.eq.s32.totalorder %s20, 0
      %p181 = por %p179, %p180
      %p182 = scmp.le.s32.totalorder 1, %s14
      %p183 = scmp.lt.s32.totalorder %s14, 4
      %p184 = pnand %p182, %p183
      %p185 = pneg %p184
      // Predicated region
      $region9: #{gpt_forward.12} parent=5 // pred_check
        _
      $region10: #{gpt_forward.12} parent=5 // pred_check_branch
        %187 = sbr.rel (%p184) target = $region12
      $region11: #{gpt_forward.12} parent=5 // pred_region
        %s188 = ssub.s32 %s14, 1
        // Predicated region
        $region13: #{gpt_forward.12} parent=11 // pred_check
          %p189 = pneg %p52
        $region14: #{gpt_forward.12} parent=11 // pred_check_branch
          %191 = sbr.rel (%p189) target = $region16
        $region15: #{gpt_forward.12} parent=11 // pred_region
          %s192 = smul.u32 8, %s23
          %p193 = scmp.lt.s32.totalorder %s192, 7
          %s194 = scalar_select %p193, %s192, 7
          %s195 = smul.addr %s194, 8
          %s196 = scalar_lea.vmem %s0, %s195
          %s197 = smul.u32 8, %s23
        $region16: #{gpt_forward.12} parent=11 // pred_fallthru
          _
        // Predicated region
        $region17: #{gpt_forward.12} parent=11 // pred_check
          %p198 = pneg %p99
        $region18: #{gpt_forward.12} parent=11 // pred_check_branch
          %200 = sbr.rel (%p198) target = $region20
        $region19: #{gpt_forward.12} parent=11 // pred_region
          _
        $region20: #{gpt_forward.12} parent=11 // pred_fallthru
          _
        // Predicated region
        $region21: #{gpt_forward.12} parent=11 // pred_check
          %p201 = pneg %p120
        $region22: #{gpt_forward.12} parent=11 // pred_check_branch
          %203 = sbr.rel (%p201) target = $region24
        $region23: #{gpt_forward.12} parent=11 // pred_region
          _
        $region24: #{gpt_forward.12} parent=11 // pred_fallthru
          _
      $region12: #{gpt_forward.12} parent=5 // pred_fallthru
        _
      %p204 = scmp.lt.s32.totalorder %s14, 3
      // Predicated region
      $region25: #{gpt_forward.12} parent=5 // pred_check
        %p205 = pneg %p204
      $region26: #{gpt_forward.12} parent=5 // pred_check_branch
        %207 = sbr.rel (%p205) target = $region28
      $region27: #{gpt_forward.12} parent=5 // pred_region
        // Predicated region
        $region29: #{gpt_forward.12} parent=27 // pred_check
          %p208 = pneg %p72
        $region30: #{gpt_forward.12} parent=27 // pred_check_branch
          %210 = sbr.rel (%p208) target = $region32
        $region31: #{gpt_forward.12} parent=27 // pred_region
          %s211 = sand.u32 %s62, 1
          %s212 = scalar_lea.sflag [#allocation3], %s211
          %s213 = sand.u32 %s62, 1
          %s214 = smul.addr %s213, 64
          %s215 = scalar_lea.vmem [#allocation2], %s214
          %217 = vsyncadd %s212, 0
          %s218 = smul.addr %s22, 4
          %s219 = scalar_lea.hbm %s1, %s218
          %s220 = sshll.u32 %s219, 4
          %s221 = int_to_ptr.hbm [resolvable:$true] %s220
          %s222 = sshll.u32 %s215, 4
          %s223 = int_to_ptr.vmem [resolvable:$true] %s222
          %228 = dma.hbm_to_vmem [thread:$0]  %s221, 1024, %s223, %s212, 192, 64, 4
        $region32: #{gpt_forward.12} parent=27 // pred_fallthru
          _
        // Predicated region
        $region33: #{gpt_forward.12} parent=27 // pred_check
          %p229 = pneg %p140
        $region34: #{gpt_forward.12} parent=27 // pred_check_branch
          %231 = sbr.rel (%p229) target = $region36
        $region35: #{gpt_forward.12} parent=27 // pred_region
          %p232 = scmp.lt.s32.totalorder %s22, 2
          %s233 = scalar_select %p232, %s22, 2
          %s234 = scalar_lea.vmem %s4, %s233
        $region36: #{gpt_forward.12} parent=27 // pred_fallthru
          _
      $region28: #{gpt_forward.12} parent=5 // pred_fallthru
        _
      %p235 = scmp.le.s32.totalorder 1, %s14
      %p236 = scmp.lt.s32.totalorder %s14, 4
      %p237 = pnand %p235, %p236
      %p238 = pneg %p237
      // Predicated region
      $region37: #{gpt_forward.12} parent=5 // pred_check
        _
      $region38: #{gpt_forward.12} parent=5 // pred_check_branch
        %240 = sbr.rel (%p237) target = $region40
      $region39: #{gpt_forward.12} parent=5 // pred_region
        %s241 = ssub.s32 %s14, 1
        %s242 = sand.u32 %s65, 1
        %s243 = scalar_lea.sflag [#allocation3], %s242
        %s244 = sand.u32 %s65, 1
        %s245 = smul.addr %s244, 64
        %s246 = scalar_lea.vmem [#allocation2], %s245
        // Predicated region
        $region41: #{gpt_forward.12} parent=39 // pred_check
          %p247 = pneg %p78
        $region42: #{gpt_forward.12} parent=39 // pred_check_branch
          %249 = sbr.rel (%p247) target = $region44
        $region43: #{gpt_forward.12} parent=39 // pred_region
          %251 = dma.done %s243, 1024
        $region44: #{gpt_forward.12} parent=39 // pred_fallthru
          _
        %s252 = smul.u32 8, %s23
        %p253 = scmp.lt.s32.totalorder %s252, 7
        %s254 = scalar_select %p253, %s252, 7
        %s255 = smul.addr %s254, 8
        %s256 = scalar_lea.vmem %s0, %s255
        %p257 = pneg %p52
        %p258 = pneg %p49
        %s259 = sand.u32 %s65, 1
        %s260 = scalar_lea.sflag [#allocation3], %s259
        %s261 = sand.u32 %s65, 1
        %s262 = smul.addr %s261, 64
        %s263 = scalar_lea.vmem [#allocation2], %s262
        %p264 = pneg %p78
        %p265 = pneg %p75
        %p266 = pneg %p99
        %p267 = pneg %p96
        %p268 = pneg %p120
        %p269 = pneg %p117
        %p270 = scmp.lt.s32.totalorder %s24, 2
        %s271 = scalar_select %p270, %s24, 2
        %s272 = scalar_lea.vmem %s4, %s271
        %p273 = pneg %p146
        %p274 = pneg %p143
        %p275 = pneg %p174
        %p276 = pneg %p171
        %s277 = sand.u32 %s161, 1
        %s278 = sand.u32 %s161, 1
        %s279 = smul.addr %s278, 32
        %s280 = scalar_lea.vmem [#allocation4], %s279
        %s281 = smul.u32 8, %s23
        %p282 = scmp.lt.s32.totalorder %s281, 7
        %s283 = scalar_select %p282, %s281, 7
        %s284 = smul.addr %s283, 8
        %s285 = scalar_lea.vmem %s0, %s284
        %s286 = smul.u32 8, %s23
        %p287 = scmp.lt.s32.totalorder %s24, 2
        %s288 = scalar_select %p287, %s24, 2
        %s289 = scalar_lea.vmem %s4, %s288
        %s290 = smul.u32 8, %s23
        %v291 = vld [vmem:[%s285] sm:$0xff]
        %v292 = vld [vmem:[%s285 + $0x8] sm:$0xff]
        %v293 = vld [vmem:[%s285 + $0x10] sm:$0xff]
        %v294 = vld [vmem:[%s285 + $0x18] sm:$0xff]
        %v295 = vld [vmem:[%s285 + $0x20] sm:$0xff]
        %v296 = vld [vmem:[%s285 + $0x28] sm:$0xff]
        %v297 = vld [vmem:[%s285 + $0x30] sm:$0xff]
        %v298 = vld [vmem:[%s285 + $0x38] sm:$0xff]
        %299 = vadd.xlane.f32.xlu0 %v291
        %v300 = vpop.xlane.xlu0 %299
        %301 = vadd.xlane.f32.xlu0 %v292
        %v302 = vpop.xlane.xlu0 %301
        %303 = vadd.xlane.f32.xlu0 %v293
        %v304 = vpop.xlane.xlu0 %303
        %305 = vadd.xlane.f32.xlu0 %v294
        %v306 = vpop.xlane.xlu0 %305
        %307 = vadd.xlane.f32.xlu0 %v295
        %v308 = vpop.xlane.xlu0 %307
        %309 = vadd.xlane.f32.xlu0 %v296
        %v310 = vpop.xlane.xlu0 %309
        %311 = vadd.xlane.f32.xlu0 %v297
        %v312 = vpop.xlane.xlu0 %311
        %313 = vadd.xlane.f32.xlu0 %v298
        %v314 = vpop.xlane.xlu0 %313
        %v315 = vrcp.pop 128.0
        %v316 = vmul.f32 128.0, %v315
        %v317 = vsub.f32 1.0, %v316
        %v318 = vmul.f32 %v315, %v317
        %v319 = vadd.f32 %v315, %v318
        %vm320 = vweird.f32 %v315
        %v321 = vsel %vm320, %v315, %v319
        %v322 = vmul.f32 %v300, %v321
        %v323 = vmul.f32 %v302, %v321
        %v324 = vmul.f32 %v304, %v321
        %v325 = vmul.f32 %v306, %v321
        %v326 = vmul.f32 %v308, %v321
        %v327 = vmul.f32 %v310, %v321
        %v328 = vmul.f32 %v312, %v321
        %v329 = vmul.f32 %v314, %v321
        %v330 = vsub.f32 %v291, %v322
        %v331 = vsub.f32 %v292, %v323
        %v332 = vsub.f32 %v293, %v324
        %v333 = vsub.f32 %v294, %v325
        %v334 = vsub.f32 %v295, %v326
        %v335 = vsub.f32 %v296, %v327
        %v336 = vsub.f32 %v297, %v328
        %v337 = vsub.f32 %v298, %v329
        %v338 = vmul.f32 %v330, %v330
        %v339 = vmul.f32 %v331, %v331
        %v340 = vmul.f32 %v332, %v332
        %v341 = vmul.f32 %v333, %v333
        %v342 = vmul.f32 %v334, %v334
        %v343 = vmul.f32 %v335, %v335
        %v344 = vmul.f32 %v336, %v336
        %v345 = vmul.f32 %v337, %v337
        %346 = vadd.xlane.f32.xlu0 %v338
        %v347 = vpop.xlane.xlu0 %346
        %348 = vadd.xlane.f32.xlu0 %v339
        %v349 = vpop.xlane.xlu0 %348
        %350 = vadd.xlane.f32.xlu0 %v340
        %v351 = vpop.xlane.xlu0 %350
        %352 = vadd.xlane.f32.xlu0 %v341
        %v353 = vpop.xlane.xlu0 %352
        %354 = vadd.xlane.f32.xlu0 %v342
        %v355 = vpop.xlane.xlu0 %354
        %356 = vadd.xlane.f32.xlu0 %v343
        %v357 = vpop.xlane.xlu0 %356
        %358 = vadd.xlane.f32.xlu0 %v344
        %v359 = vpop.xlane.xlu0 %358
        %360 = vadd.xlane.f32.xlu0 %v345
        %v361 = vpop.xlane.xlu0 %360
        %v362 = vmul.f32 %v347, %v321
        %v363 = vmul.f32 %v349, %v321
        %v364 = vmul.f32 %v351, %v321
        %v365 = vmul.f32 %v353, %v321
        %v366 = vmul.f32 %v355, %v321
        %v367 = vmul.f32 %v357, %v321
        %v368 = vmul.f32 %v359, %v321
        %v369 = vmul.f32 %v361, %v321
        %v370 = vadd.f32 %v362, 1e-05
        %v371 = vadd.f32 %v363, 1e-05
        %v372 = vadd.f32 %v364, 1e-05
        %v373 = vadd.f32 %v365, 1e-05
        %v374 = vadd.f32 %v366, 1e-05
        %v375 = vadd.f32 %v367, 1e-05
        %v376 = vadd.f32 %v368, 1e-05
        %v377 = vadd.f32 %v369, 1e-05
        %v378 = vrsqrt.pop %v370
        %v379 = vmul.f32 %v378, %v370
        %v380 = vmul.f32 %v379, %v378
        %v381 = vmul.f32 0.5, %v380
        %v382 = vsub.f32 1.5, %v381
        %v383 = vmul.f32 %v378, %v382
        %vm384 = vweird.f32 %v370
        %vm385 = vweird.f32 %v378
        %vm386 = vmor %vm384, %vm385
        %v387 = vsel %vm386, %v378, %v383
        %v388 = vrsqrt.pop %v371
        %v389 = vmul.f32 %v388, %v371
        %v390 = vmul.f32 %v389, %v388
        %v391 = vmul.f32 0.5, %v390
        %v392 = vsub.f32 1.5, %v391
        %v393 = vmul.f32 %v388, %v392
        %vm394 = vweird.f32 %v371
        %vm395 = vweird.f32 %v388
        %vm396 = vmor %vm394, %vm395
        %v397 = vsel %vm396, %v388, %v393
        %v398 = vrsqrt.pop %v372
        %v399 = vmul.f32 %v398, %v372
        %v400 = vmul.f32 %v399, %v398
        %v401 = vmul.f32 0.5, %v400
        %v402 = vsub.f32 1.5, %v401
        %v403 = vmul.f32 %v398, %v402
        %vm404 = vweird.f32 %v372
        %vm405 = vweird.f32 %v398
        %vm406 = vmor %vm404, %vm405
        %v407 = vsel %vm406, %v398, %v403
        %v408 = vrsqrt.pop %v373
        %v409 = vmul.f32 %v408, %v373
        %v410 = vmul.f32 %v409, %v408
        %v411 = vmul.f32 0.5, %v410
        %v412 = vsub.f32 1.5, %v411
        %v413 = vmul.f32 %v408, %v412
        %vm414 = vweird.f32 %v373
        %vm415 = vweird.f32 %v408
        %vm416 = vmor %vm414, %vm415
        %v417 = vsel %vm416, %v408, %v413
        %v418 = vrsqrt.pop %v374
        %v419 = vmul.f32 %v418, %v374
        %v420 = vmul.f32 %v419, %v418
        %v421 = vmul.f32 0.5, %v420
        %v422 = vsub.f32 1.5, %v421
        %v423 = vmul.f32 %v418, %v422
        %vm424 = vweird.f32 %v374
        %vm425 = vweird.f32 %v418
        %vm426 = vmor %vm424, %vm425
        %v427 = vsel %vm426, %v418, %v423
        %v428 = vrsqrt.pop %v375
        %v429 = vmul.f32 %v428, %v375
        %v430 = vmul.f32 %v429, %v428
        %v431 = vmul.f32 0.5, %v430
        %v432 = vsub.f32 1.5, %v431
        %v433 = vmul.f32 %v428, %v432
        %vm434 = vweird.f32 %v375
        %vm435 = vweird.f32 %v428
        %vm436 = vmor %vm434, %vm435
        %v437 = vsel %vm436, %v428, %v433
        %v438 = vrsqrt.pop %v376
        %v439 = vmul.f32 %v438, %v376
        %v440 = vmul.f32 %v439, %v438
        %v441 = vmul.f32 0.5, %v440
        %v442 = vsub.f32 1.5, %v441
        %v443 = vmul.f32 %v438, %v442
        %vm444 = vweird.f32 %v376
        %vm445 = vweird.f32 %v438
        %vm446 = vmor %vm444, %vm445
        %v447 = vsel %vm446, %v438, %v443
        %v448 = vrsqrt.pop %v377
        %v449 = vmul.f32 %v448, %v377
        %v450 = vmul.f32 %v449, %v448
        %v451 = vmul.f32 0.5, %v450
        %v452 = vsub.f32 1.5, %v451
        %v453 = vmul.f32 %v448, %v452
        %vm454 = vweird.f32 %v377
        %vm455 = vweird.f32 %v448
        %vm456 = vmor %vm454, %vm455
        %v457 = vsel %vm456, %v448, %v453
        %v458 = vmul.f32 %v330, %v387
        %v459 = vmul.f32 %v331, %v397
        %v460 = vmul.f32 %v332, %v407
        %v461 = vmul.f32 %v333, %v417
        %v462 = vmul.f32 %v334, %v427
        %v463 = vmul.f32 %v335, %v437
        %v464 = vmul.f32 %v336, %v447
        %v465 = vmul.f32 %v337, %v457
        %v466 = vld [vmem:[%s2] sm:$0x1]
        %v468 = vperm.slane %v466, 0
        %v470 = vmul.f32 %v458, %v468
        %v471 = vmul.f32 %v459, %v468
        %v472 = vmul.f32 %v460, %v468
        %v473 = vmul.f32 %v461, %v468
        %v474 = vmul.f32 %v462, %v468
        %v475 = vmul.f32 %v463, %v468
        %v476 = vmul.f32 %v464, %v468
        %v477 = vmul.f32 %v465, %v468
        %v478 = vld [vmem:[%s3] sm:$0x1]
        %v480 = vperm.slane %v478, 0
        %v482 = vadd.f32 %v470, %v480
        %v483 = vadd.f32 %v471, %v480
        %v484 = vadd.f32 %v472, %v480
        %v485 = vadd.f32 %v473, %v480
        %v486 = vadd.f32 %v474, %v480
        %v487 = vadd.f32 %v475, %v480
        %v488 = vadd.f32 %v476, %v480
        %v489 = vadd.f32 %v477, %v480
        %v490 = vpack.c.bf16 %v483, %v482
        %v491 = vpack.c.bf16 %v485, %v484
        %v492 = vpack.c.bf16 %v487, %v486
        %v493 = vpack.c.bf16 %v489, %v488
        %v494 = vld [vmem:[%s246] sm:$0xf]
        %v495 = vld [vmem:[%s246 + $0x4] sm:$0xf]
        %v496 = vld [vmem:[%s246 + $0x8] sm:$0xf]
        %v497 = vld [vmem:[%s246 + $0xc] sm:$0xf]
        %v498 = vld [vmem:[%s246 + $0x10] sm:$0xf]
        %v499 = vld [vmem:[%s246 + $0x14] sm:$0xf]
        %v500 = vld [vmem:[%s246 + $0x18] sm:$0xf]
        %v501 = vld [vmem:[%s246 + $0x1c] sm:$0xf]
        %v502 = vld [vmem:[%s246 + $0x20] sm:$0xf]
        %v503 = vld [vmem:[%s246 + $0x24] sm:$0xf]
        %v504 = vld [vmem:[%s246 + $0x28] sm:$0xf]
        %v505 = vld [vmem:[%s246 + $0x2c] sm:$0xf]
        %v506 = vld [vmem:[%s246 + $0x30] sm:$0xf]
        %v507 = vld [vmem:[%s246 + $0x34] sm:$0xf]
        %v508 = vld [vmem:[%s246 + $0x38] sm:$0xf]
        %v509 = vld [vmem:[%s246 + $0x3c] sm:$0xf]
        %v510 = vld [vmem:[%s289] sm:$0x1]
        %v512 = vperm.slane %v510, 0
        %v530 = vunpack.c.l.b16 %v494
        %v531 = vunpack.c.l.b16 %v495
        %v532 = vunpack.c.l.b16 %v496
        %v533 = vunpack.c.l.b16 %v497
        %v534 = vunpack.c.l.b16 %v498
        %v535 = vunpack.c.l.b16 %v499
        %v536 = vunpack.c.l.b16 %v500
        %v537 = vunpack.c.l.b16 %v501
        %v538 = vunpack.c.l.b16 %v502
        %v539 = vunpack.c.l.b16 %v503
        %v540 = vunpack.c.l.b16 %v504
        %v541 = vunpack.c.l.b16 %v505
        %v542 = vunpack.c.l.b16 %v506
        %v543 = vunpack.c.l.b16 %v507
        %v544 = vunpack.c.l.b16 %v508
        %v545 = vunpack.c.l.b16 %v509
        %v546 = vpack.c.b16 %v531, %v530
        %v547 = vpack.c.b16 %v533, %v532
        %v548 = vpack.c.b16 %v535, %v534
        %v549 = vpack.c.b16 %v537, %v536
        %v550 = vpack.c.b16 %v539, %v538
        %v551 = vpack.c.b16 %v541, %v540
        %v552 = vpack.c.b16 %v543, %v542
        %v553 = vpack.c.b16 %v545, %v544
        %562 = vmatpush.bf16.msra.mxu0 %v553
        %563 = vmatpush.bf16.msra.mxu0 %v552
        %564 = vmatpush.bf16.msra.mxu0 %v551
        %565 = vmatpush.bf16.msra.mxu0 %v550
        %566 = vmatpush.bf16.msra.mxu0 %v549
        %567 = vmatpush.bf16.msra.mxu0 %v548
        %568 = vmatpush.bf16.msra.mxu0 %v547
        %569 = vmatpush.bf16.msra.mxu0 %v546
        %570 = vmatmul.bf16.gmra.mxu0 %v490
        %v571 = vpop.f32.mrf.mxu0
        %v572 = vadd.f32 %v512, %v571
        %v573 = vpop.f32.mrf.mxu0
        %v574 = vadd.f32 %v512, %v573
        %575 = vmatmul.bf16.gmra.mxu0 %v491
        %v576 = vpop.f32.mrf.mxu0
        %v577 = vadd.f32 %v512, %v576
        %v578 = vpop.f32.mrf.mxu0
        %v579 = vadd.f32 %v512, %v578
        %580 = vmatmul.bf16.gmra.mxu0 %v492
        %v581 = vpop.f32.mrf.mxu0
        %v582 = vadd.f32 %v512, %v581
        %v583 = vpop.f32.mrf.mxu0
        %v584 = vadd.f32 %v512, %v583
        %585 = vmatmul.bf16.gmra.mxu0 %v493
        %v586 = vpop.f32.mrf.mxu0
        %v587 = vadd.f32 %v512, %v586
        %v588 = vpop.f32.mrf.mxu0
        %v589 = vadd.f32 %v512, %v588
        %590 = vdwg.mxu0
        %v591 = vpack.c.bf16 %v572, %v572
        %v592 = vpack.c.bf16 %v574, %v574
        %v593 = vpack.c.bf16 %v577, %v577
        %v594 = vpack.c.bf16 %v579, %v579
        %v595 = vpack.c.bf16 %v582, %v582
        %v596 = vpack.c.bf16 %v584, %v584
        %v597 = vpack.c.bf16 %v587, %v587
        %v598 = vpack.c.bf16 %v589, %v589
        %599 = vst [vmem:[%s280] sm:$0xf] %v591
        %600 = vst [vmem:[%s280 + $0x4] sm:$0xf] %v592
        %601 = vst [vmem:[%s280 + $0x8] sm:$0xf] %v593
        %602 = vst [vmem:[%s280 + $0xc] sm:$0xf] %v594
        %603 = vst [vmem:[%s280 + $0x10] sm:$0xf] %v595
        %604 = vst [vmem:[%s280 + $0x14] sm:$0xf] %v596
        %605 = vst [vmem:[%s280 + $0x18] sm:$0xf] %v597
        %606 = vst [vmem:[%s280 + $0x1c] sm:$0xf] %v598
        %s607 = sand.u32 %s161, 1
        %s608 = sand.u32 %s161, 1
        %s609 = smul.addr %s608, 32
        %s610 = scalar_lea.vmem [#allocation4], %s609
        // Predicated region
        $region45: #{gpt_forward.12} parent=39 // pred_check
          %p611 = pneg %p171
        $region46: #{gpt_forward.12} parent=39 // pred_check_branch
          %613 = sbr.rel (%p611) target = $region48
        $region47: #{gpt_forward.12} parent=39 // pred_region
          %s614 = smul.u32 8, %s23
          %s615 = smul.addr %s614, 3
          %s616 = sadd.s32 %s24, %s615
          %s617 = smul.addr %s616, 4
          %s618 = scalar_lea.vmem %s5, %s617
          // Predicated region
          $region49: #{gpt_forward.12} parent=47 // pred_check
            _
          $region50: #{gpt_forward.12} parent=47 // pred_check_branch
            %620 = sbr.rel (0) target = $region52
          $region51: #{gpt_forward.12} parent=47 // pred_region
            // Predicated region
            $region53: #{gpt_forward.12} parent=51 // pred_check
              _
            $region54: #{gpt_forward.12} parent=51 // pred_check_branch
              %622 = sbr.rel target = $region56
            $region55: #{gpt_forward.12} parent=51 // pred_region
              // Predicated region
              $region68: #{gpt_forward.12} parent=55 // pred_check
                _
              $region69: #{gpt_forward.12} parent=55 // pred_check_branch
                %652 = sbr.rel (0) target = $region71
              $region70: #{gpt_forward.12} parent=55 // pred_region
                loop: start=0, step=1, limit=1
                $region72: #{gpt_forward.12} parent=70 // loop_pre_header
                  _
                $region73: #{gpt_forward.12} parent=70 // loop_header
                  %s654 = sphi 0, %s658
                  %p655 = scmp.ge.s32.totalorder %s654, 1
                  %s659 = sphi %s610, %s610
                  %s660 = sphi %s618, %s618
                $region74: #{gpt_forward.12} parent=70 // loop_header_branch
                  %657 = sbr.rel (%p655) target = $region78
                $region75: #{gpt_forward.12} parent=70 // loop_body
                  _
                $region76: #{gpt_forward.12} parent=70 // loop_footer
                  %s658 = sadd.s32 1, %s654
                $region77: #{gpt_forward.12} parent=70 // loop_footer_branch
                  %653 = sbr.rel target = $region73
                $region78: #{gpt_forward.12} parent=70 // loop_exit
                  _
                %s662 = ssub.s32 16, 1
                loop: start=0, step=1, limit=1
                $region79: #{gpt_forward.12} parent=70 // loop_pre_header
                  _
                $region80: #{gpt_forward.12} parent=70 // loop_header
                  %s664 = sphi 0, %s668
                  %p665 = scmp.ge.s32.totalorder %s664, 1
                  %s669 = sphi %s610, %s610
                  %s670 = sphi %s618, %s618
                $region81: #{gpt_forward.12} parent=70 // loop_header_branch
                  %667 = sbr.rel (%p665) target = $region85
                $region82: #{gpt_forward.12} parent=70 // loop_body
                  %v671 = vld [vmem:[%s669] sm:%s662]
                  %672 = vst [vmem:[%s670] sm:%s662] %v671
                  %v673 = vld [vmem:[%s669 + $0x4] sm:%s662]
                  %674 = vst [vmem:[%s670 + $0xc] sm:%s662] %v673
                  %v675 = vld [vmem:[%s669 + $0x8] sm:%s662]
                  %676 = vst [vmem:[%s670 + $0x18] sm:%s662] %v675
                  %v677 = vld [vmem:[%s669 + $0xc] sm:%s662]
                  %678 = vst [vmem:[%s670 + $0x24] sm:%s662] %v677
                  %v679 = vld [vmem:[%s669 + $0x10] sm:%s662]
                  %680 = vst [vmem:[%s670 + $0x30] sm:%s662] %v679
                  %v681 = vld [vmem:[%s669 + $0x14] sm:%s662]
                  %682 = vst [vmem:[%s670 + $0x3c] sm:%s662] %v681
                  %v683 = vld [vmem:[%s669 + $0x18] sm:%s662]
                  %684 = vst [vmem:[%s670 + $0x48] sm:%s662] %v683
                  %v685 = vld [vmem:[%s669 + $0x1c] sm:%s662]
                  %686 = vst [vmem:[%s670 + $0x54] sm:%s662] %v685
                $region83: #{gpt_forward.12} parent=70 // loop_footer
                  %s668 = sadd.s32 1, %s664
                $region84: #{gpt_forward.12} parent=70 // loop_footer_branch
                  %663 = sbr.rel target = $region80
                $region85: #{gpt_forward.12} parent=70 // loop_exit
                  _
              $region71: #{gpt_forward.12} parent=55 // pred_fallthru
                _
            $region56: #{gpt_forward.12} parent=51 // pred_fallthru
              _
            // Predicated region
            $region57: #{gpt_forward.12} parent=51 // pred_check
              _
            $region58: #{gpt_forward.12} parent=51 // pred_check_branch
              %624 = sbr.rel (0) target = $region60
            $region59: #{gpt_forward.12} parent=51 // pred_region
              %s626 = ssub.s32 16, 1
              loop: start=0, step=1, limit=1
              $region61: #{gpt_forward.12} parent=59 // loop_pre_header
                _
              $region62: #{gpt_forward.12} parent=59 // loop_header
                %s628 = sphi 0, %s632
                %p629 = scmp.ge.s32.totalorder %s628, 1
                %s633 = sphi %s610, %s610
                %s634 = sphi %s618, %s618
              $region63: #{gpt_forward.12} parent=59 // loop_header_branch
                %631 = sbr.rel (%p629) target = $region67
              $region64: #{gpt_forward.12} parent=59 // loop_body
                %v635 = vld [vmem:[%s633] sm:%s626]
                %636 = vst [vmem:[%s634] sm:%s626] %v635
                %v637 = vld [vmem:[%s633 + $0x4] sm:%s626]
                %638 = vst [vmem:[%s634 + $0xc] sm:%s626] %v637
                %v639 = vld [vmem:[%s633 + $0x8] sm:%s626]
                %640 = vst [vmem:[%s634 + $0x18] sm:%s626] %v639
                %v641 = vld [vmem:[%s633 + $0xc] sm:%s626]
                %642 = vst [vmem:[%s634 + $0x24] sm:%s626] %v641
                %v643 = vld [vmem:[%s633 + $0x10] sm:%s626]
                %644 = vst [vmem:[%s634 + $0x30] sm:%s626] %v643
                %v645 = vld [vmem:[%s633 + $0x14] sm:%s626]
                %646 = vst [vmem:[%s634 + $0x3c] sm:%s626] %v645
                %v647 = vld [vmem:[%s633 + $0x18] sm:%s626]
                %648 = vst [vmem:[%s634 + $0x48] sm:%s626] %v647
                %v649 = vld [vmem:[%s633 + $0x1c] sm:%s626]
                %650 = vst [vmem:[%s634 + $0x54] sm:%s626] %v649
              $region65: #{gpt_forward.12} parent=59 // loop_footer
                %s632 = sadd.s32 1, %s628
              $region66: #{gpt_forward.12} parent=59 // loop_footer_branch
                %627 = sbr.rel target = $region62
              $region67: #{gpt_forward.12} parent=59 // loop_exit
                _
            $region60: #{gpt_forward.12} parent=51 // pred_fallthru
              _
          $region52: #{gpt_forward.12} parent=47 // pred_fallthru
            _
          %687 = vnop
        $region48: #{gpt_forward.12} parent=39 // pred_fallthru
          _
      $region40: #{gpt_forward.12} parent=5 // pred_fallthru
        _
      %p688 = scmp.le.s32.totalorder 2, %s14
      // Predicated region
      $region86: #{gpt_forward.12} parent=5 // pred_check
        %p689 = pneg %p688
      $region87: #{gpt_forward.12} parent=5 // pred_check_branch
        %691 = sbr.rel (%p689) target = $region89
      $region88: #{gpt_forward.12} parent=5 // pred_region
        %s692 = ssub.s32 %s14, 2
        // Predicated region
        $region90: #{gpt_forward.12} parent=88 // pred_check
          %p693 = pneg %p177
        $region91: #{gpt_forward.12} parent=88 // pred_check_branch
          %695 = sbr.rel (%p693) target = $region93
        $region92: #{gpt_forward.12} parent=88 // pred_region
          %s696 = sand.u32 %s162, 1
          %s697 = sand.u32 %s162, 1
          %s698 = smul.addr %s697, 32
          %s699 = scalar_lea.vmem [#allocation4], %s698
        $region93: #{gpt_forward.12} parent=88 // pred_fallthru
          _
      $region89: #{gpt_forward.12} parent=5 // pred_fallthru
        _
    $region6: #{gpt_forward.12} parent=1 // loop_footer
      %s18 = sadd.s32 1, %s14
    $region7: #{gpt_forward.12} parent=1 // loop_footer_branch
      %13 = sbr.rel target = $region3
    $region8: #{gpt_forward.12} parent=1 // loop_exit
      _
    %700 = vsyncpa [#allocation3], 1
    %s701 = scalar_lea.sflag [#allocation3], 1
    %702 = vsyncpa %s701, 1

// kernel: gpt_forward.14
$region0: #{gpt_forward.14}
  #allocation0 [shape = 'u32[]', space=smem, size = 0x4, offset = 0x4, fixed_abs, tag = 'smem constant byte address 0x4 - core index']
  #allocation1 [shape = 'u32[72,128]{1,0:T(1,128)}', space=vmem, size = 0x9000, scoped, tag = 'internal scratch']
  %s0 = inlined_call_operand.vmem [shape: bf16[64,128], index: 0, kind: input, shape index: {}]
  %s1 = inlined_call_operand.vmem [shape: bf16[128,128], index: 1, kind: input, shape index: {}]
  %s2 = inlined_call_operand.vmem [shape: f32[1,128], index: 2, kind: input, shape index: {}]
  %s3 = inlined_call_operand.vmem [shape: f32[64,128], index: 3, kind: input, shape index: {}]
  %s4 = inlined_call_operand.vmem [shape: f32[64,128], index: 4, kind: output, shape index: {}]
  %s5 = sld [smem:[#allocation0]]
  $region26: #{gpt_forward.14} parent=0
    _
  %s7 = ssub.s32 1, %s5
  %s8 = scalar_select 0, %s7, %s5
  // Predicated region
  $region2: #{gpt_forward.14} parent=0 // pred_check
    _
  $region3: #{gpt_forward.14} parent=0 // pred_check_branch
    %10 = sbr.rel (0) target = $region5
  $region4: #{gpt_forward.14} parent=0 // pred_region
    _
  $region5: #{gpt_forward.14} parent=0 // pred_fallthru
    _
  // Predicated region
  $region6: #{gpt_forward.14} parent=0 // pred_check
    _
  $region7: #{gpt_forward.14} parent=0 // pred_check_branch
    %12 = sbr.rel (0) target = $region9
  $region8: #{gpt_forward.14} parent=0 // pred_region
    _
  $region9: #{gpt_forward.14} parent=0 // pred_fallthru
    _
  // Predicated region
  $region10: #{gpt_forward.14} parent=0 // pred_check
    _
  $region11: #{gpt_forward.14} parent=0 // pred_check_branch
    %14 = sbr.rel (0) target = $region13
  $region12: #{gpt_forward.14} parent=0 // pred_region
    _
  $region13: #{gpt_forward.14} parent=0 // pred_fallthru
    _
  // Predicated region
  $region14: #{gpt_forward.14} parent=0 // pred_check
    _
  $region15: #{gpt_forward.14} parent=0 // pred_check_branch
    %16 = sbr.rel (0) target = $region17
  $region16: #{gpt_forward.14} parent=0 // pred_region
    _
  $region17: #{gpt_forward.14} parent=0 // pred_fallthru
    _
  %v17 = vld [vmem:[%s0] sm:$0xf]
  %v18 = vld [vmem:[%s0 + $0x4] sm:$0xf]
  %v19 = vld [vmem:[%s0 + $0x8] sm:$0xf]
  %v20 = vld [vmem:[%s0 + $0xc] sm:$0xf]
  %v21 = vld [vmem:[%s0 + $0x10] sm:$0xf]
  %v22 = vld [vmem:[%s0 + $0x14] sm:$0xf]
  %v23 = vld [vmem:[%s0 + $0x18] sm:$0xf]
  %v24 = vld [vmem:[%s0 + $0x1c] sm:$0xf]
  %v25 = vld [vmem:[%s1] sm:$0xf]
  %v26 = vld [vmem:[%s1 + $0x4] sm:$0xf]
  %v27 = vld [vmem:[%s1 + $0x8] sm:$0xf]
  %v28 = vld [vmem:[%s1 + $0xc] sm:$0xf]
  %v29 = vld [vmem:[%s1 + $0x10] sm:$0xf]
  %v30 = vld [vmem:[%s1 + $0x14] sm:$0xf]
  %v31 = vld [vmem:[%s1 + $0x18] sm:$0xf]
  %v32 = vld [vmem:[%s1 + $0x1c] sm:$0xf]
  %v33 = vld [vmem:[%s1 + $0x20] sm:$0xf]
  %v34 = vld [vmem:[%s1 + $0x24] sm:$0xf]
  %v35 = vld [vmem:[%s1 + $0x28] sm:$0xf]
  %v36 = vld [vmem:[%s1 + $0x2c] sm:$0xf]
  %v37 = vld [vmem:[%s1 + $0x30] sm:$0xf]
  %v38 = vld [vmem:[%s1 + $0x34] sm:$0xf]
  %v39 = vld [vmem:[%s1 + $0x38] sm:$0xf]
  %v40 = vld [vmem:[%s1 + $0x3c] sm:$0xf]
  %v41 = vld [vmem:[%s2] sm:$0x1]
  %v43 = vperm.slane %v41, 0
  %v53 = vunpack.c.l.b16 %v17
  %v54 = vunpack.c.l.b16 %v18
  %v55 = vunpack.c.l.b16 %v19
  %v56 = vunpack.c.l.b16 %v20
  %v57 = vunpack.c.l.b16 %v21
  %v58 = vunpack.c.l.b16 %v22
  %v59 = vunpack.c.l.b16 %v23
  %v60 = vunpack.c.l.b16 %v24
  %v61 = vpack.c.b16 %v54, %v53
  %v62 = vpack.c.b16 %v56, %v55
  %v63 = vpack.c.b16 %v58, %v57
  %v64 = vpack.c.b16 %v60, %v59
  %v85 = vunpack.c.l.b16 %v25
  %v86 = vunpack.c.l.b16 %v26
  %v87 = vunpack.c.l.b16 %v27
  %v88 = vunpack.c.l.b16 %v28
  %v89 = vunpack.c.l.b16 %v29
  %v90 = vunpack.c.l.b16 %v30
  %v91 = vunpack.c.l.b16 %v31
  %v92 = vunpack.c.l.b16 %v32
  %v93 = vunpack.c.l.b16 %v33
  %v94 = vunpack.c.l.b16 %v34
  %v95 = vunpack.c.l.b16 %v35
  %v96 = vunpack.c.l.b16 %v36
  %v97 = vunpack.c.l.b16 %v37
  %v98 = vunpack.c.l.b16 %v38
  %v99 = vunpack.c.l.b16 %v39
  %v100 = vunpack.c.l.b16 %v40
  %v101 = vpack.c.b16 %v86, %v85
  %v102 = vpack.c.b16 %v88, %v87
  %v103 = vpack.c.b16 %v90, %v89
  %v104 = vpack.c.b16 %v92, %v91
  %v105 = vpack.c.b16 %v94, %v93
  %v106 = vpack.c.b16 %v96, %v95
  %v107 = vpack.c.b16 %v98, %v97
  %v108 = vpack.c.b16 %v100, %v99
  %117 = vmatpush.bf16.msra.mxu0 %v108
  %118 = vmatpush.bf16.msra.mxu0 %v107
  %119 = vmatpush.bf16.msra.mxu0 %v106
  %120 = vmatpush.bf16.msra.mxu0 %v105
  %121 = vmatpush.bf16.msra.mxu0 %v104
  %122 = vmatpush.bf16.msra.mxu0 %v103
  %123 = vmatpush.bf16.msra.mxu0 %v102
  %124 = vmatpush.bf16.msra.mxu0 %v101
  %125 = vmatmul.bf16.gmra.mxu0 %v61
  %v126 = vpop.f32.mrf.mxu0
  %v127 = vadd.f32 %v43, %v126
  %v128 = vpop.f32.mrf.mxu0
  %v129 = vadd.f32 %v43, %v128
  %130 = vmatmul.bf16.gmra.mxu0 %v62
  %v131 = vpop.f32.mrf.mxu0
  %v132 = vadd.f32 %v43, %v131
  %v133 = vpop.f32.mrf.mxu0
  %v134 = vadd.f32 %v43, %v133
  %135 = vmatmul.bf16.gmra.mxu0 %v63
  %v136 = vpop.f32.mrf.mxu0
  %v137 = vadd.f32 %v43, %v136
  %v138 = vpop.f32.mrf.mxu0
  %v139 = vadd.f32 %v43, %v138
  %140 = vmatmul.bf16.gmra.mxu0 %v64
  %v141 = vpop.f32.mrf.mxu0
  %v142 = vadd.f32 %v43, %v141
  %v143 = vpop.f32.mrf.mxu0
  %v144 = vadd.f32 %v43, %v143
  %145 = vdwg.mxu0
  %v146 = vld [vmem:[%s3] sm:$0xff]
  %v147 = vld [vmem:[%s3 + $0x8] sm:$0xff]
  %v148 = vld [vmem:[%s3 + $0x10] sm:$0xff]
  %v149 = vld [vmem:[%s3 + $0x18] sm:$0xff]
  %v150 = vld [vmem:[%s3 + $0x20] sm:$0xff]
  %v151 = vld [vmem:[%s3 + $0x28] sm:$0xff]
  %v152 = vld [vmem:[%s3 + $0x30] sm:$0xff]
  %v153 = vld [vmem:[%s3 + $0x38] sm:$0xff]
  %v154 = vadd.f32 %v127, %v146
  %v155 = vadd.f32 %v129, %v147
  %v156 = vadd.f32 %v132, %v148
  %v157 = vadd.f32 %v134, %v149
  %v158 = vadd.f32 %v137, %v150
  %v159 = vadd.f32 %v139, %v151
  %v160 = vadd.f32 %v142, %v152
  %v161 = vadd.f32 %v144, %v153
  %162 = vst [vmem:[%s4] sm:$0xff] %v154
  %163 = vst [vmem:[%s4 + $0x8] sm:$0xff] %v155
  %164 = vst [vmem:[%s4 + $0x10] sm:$0xff] %v156
  %165 = vst [vmem:[%s4 + $0x18] sm:$0xff] %v157
  %166 = vst [vmem:[%s4 + $0x20] sm:$0xff] %v158
  %167 = vst [vmem:[%s4 + $0x28] sm:$0xff] %v159
  %168 = vst [vmem:[%s4 + $0x30] sm:$0xff] %v160
  %169 = vst [vmem:[%s4 + $0x38] sm:$0xff] %v161
  // Predicated region
  $region18: #{gpt_forward.14} parent=0 // pred_check
    _
  $region19: #{gpt_forward.14} parent=0 // pred_check_branch
    %171 = sbr.rel (0) target = $region21
  $region20: #{gpt_forward.14} parent=0 // pred_region
    _
  $region21: #{gpt_forward.14} parent=0 // pred_fallthru
    _
  // Predicated region
  $region22: #{gpt_forward.14} parent=0 // pred_check
    _
  $region23: #{gpt_forward.14} parent=0 // pred_check_branch
    %173 = sbr.rel (0) target = $region25
  $region24: #{gpt_forward.14} parent=0 // pred_region
    _
  $region25: #{gpt_forward.14} parent=0 // pred_fallthru
    _

// kernel: gpt_forward.13
$region0: #{gpt_forward.13}
  #allocation0 [shape = 'u32[]', space=smem, size = 0x4, offset = 0x4, fixed_abs, tag = 'smem constant byte address 0x4 - core index']
  #allocation1 [shape = 'u32[72,128]{1,0:T(1,128)}', space=vmem, size = 0x9000, scoped, tag = 'internal scratch']
  %s0 = inlined_call_operand.vmem [shape: bf16[2,32,384], index: 0, kind: input, shape index: {}]
  %s1 = inlined_call_operand.vmem [shape: bf16[2,32,128], index: 1, kind: output, shape index: {}]
  %s2 = sld [smem:[#allocation0]]
  $region37: #{gpt_forward.13} parent=0
    _
  %s4 = ssub.s32 1, %s2
  %s5 = scalar_select 0, %s4, %s2
  loop: start=0, step=1, limit=4
  $region2: #{gpt_forward.13} parent=0 // loop_pre_header
    _
  $region3: #{gpt_forward.13} parent=0 // loop_header
    %s7 = sphi 0, %s11
    %p8 = scmp.ge.s32.totalorder %s7, 4
    %s17 = sphi 0, %s19
    %s20 = sphi 0, %s17
    %s21 = sphi 0, %s20
    %s37 = sphi 0, %s21
    %s43 = sphi 0, %s45
    %s46 = sphi 0, %s43
    %s47 = sphi 0, %s46
    %s63 = sphi 0, %s47
  $region4: #{gpt_forward.13} parent=0 // loop_header_branch
    %10 = sbr.rel (%p8) target = $region8
  $region5: #{gpt_forward.13} parent=0 // loop_body
    %s12 = ssub.s32 %s7, 1
    %s13 = ssub.s32 %s7, 2
    %s14 = sadd.s32 %s7, 1
    %s15 = ssub.s32 %s7, %s14
    %p16 = scmp.eq.s32.totalorder %s15, 0
    %s18 = sadd.s32 %s17, 1
    %s19 = scalar_select %p16, %s17, %s18
    %p22 = pneg %p16
    %p23 = scmp.eq.s32.totalorder %s7, 1
    %p24 = por %p22, %p23
    %p25 = scmp.ne.s32.totalorder %s17, %s20
    %p26 = scmp.eq.s32.totalorder %s7, 0
    %p27 = por %p25, %p26
    %p28 = scmp.ne.s32.totalorder %s17, %s20
    %p29 = scmp.eq.s32.totalorder %s12, 1
    %p30 = por %p28, %p29
    %p31 = scmp.ne.s32.totalorder %s20, %s21
    %p32 = scmp.eq.s32.totalorder %s12, 0
    %p33 = por %p31, %p32
    %p34 = scmp.ne.s32.totalorder %s20, %s21
    %p35 = scmp.eq.s32.totalorder %s13, 1
    %p36 = por %p34, %p35
    %p38 = scmp.ne.s32.totalorder %s21, %s37
    %p39 = scmp.eq.s32.totalorder %s13, 0
    %p40 = por %p38, %p39
    %s41 = ssub.s32 %s7, %s14
    %p42 = scmp.eq.s32.totalorder %s41, 0
    %s44 = sadd.s32 %s43, 1
    %s45 = scalar_select %p42, %s43, %s44
    %p48 = pneg %p42
    %p49 = scmp.eq.s32.totalorder %s7, 1
    %p50 = por %p48, %p49
    %p51 = scmp.ne.s32.totalorder %s43, %s46
    %p52 = scmp.eq.s32.totalorder %s7, 0
    %p53 = por %p51, %p52
    %p54 = scmp.ne.s32.totalorder %s43, %s46
    %p55 = scmp.eq.s32.totalorder %s12, 1
    %p56 = por %p54, %p55
    %p57 = scmp.ne.s32.totalorder %s46, %s47
    %p58 = scmp.eq.s32.totalorder %s12, 0
    %p59 = por %p57, %p58
    %p60 = scmp.ne.s32.totalorder %s46, %s47
    %p61 = scmp.eq.s32.totalorder %s13, 1
    %p62 = por %p60, %p61
    %p64 = scmp.ne.s32.totalorder %s47, %s63
    %p65 = scmp.eq.s32.totalorder %s13, 0
    %p66 = por %p64, %p65
    %p67 = scmp.le.s32.totalorder 1, %s7
    %p68 = scmp.lt.s32.totalorder %s7, 3
    %p69 = pnand %p67, %p68
    %p70 = pneg %p69
    // Predicated region
    $region9: #{gpt_forward.13} parent=5 // pred_check
      _
    $region10: #{gpt_forward.13} parent=5 // pred_check_branch
      %72 = sbr.rel (%p69) target = $region12
    $region11: #{gpt_forward.13} parent=5 // pred_region
      %s73 = ssub.s32 %s7, 1
    $region12: #{gpt_forward.13} parent=5 // pred_fallthru
      _
    %p74 = scmp.lt.s32.totalorder %s7, 2
    // Predicated region
    $region13: #{gpt_forward.13} parent=5 // pred_check
      %p75 = pneg %p74
    $region14: #{gpt_forward.13} parent=5 // pred_check_branch
      %77 = sbr.rel (%p75) target = $region16
    $region15: #{gpt_forward.13} parent=5 // pred_region
      // Predicated region
      $region17: #{gpt_forward.13} parent=15 // pred_check
        %p78 = pneg %p27
      $region18: #{gpt_forward.13} parent=15 // pred_check_branch
        %80 = sbr.rel (%p78) target = $region20
      $region19: #{gpt_forward.13} parent=15 // pred_region
        %p81 = scmp.lt.s32.totalorder %s7, 1
        %s82 = scalar_select %p81, %s7, 1
        %s83 = smul.addr %s82, 12
        %s84 = smul.addr %s83, 4
        %s85 = scalar_lea.vmem %s0, %s84
      $region20: #{gpt_forward.13} parent=15 // pred_fallthru
        _
    $region16: #{gpt_forward.13} parent=5 // pred_fallthru
      _
    %p86 = scmp.le.s32.totalorder 1, %s7
    %p87 = scmp.lt.s32.totalorder %s7, 3
    %p88 = pnand %p86, %p87
    %p89 = pneg %p88
    // Predicated region
    $region21: #{gpt_forward.13} parent=5 // pred_check
      _
    $region22: #{gpt_forward.13} parent=5 // pred_check_branch
      %91 = sbr.rel (%p88) target = $region24
    $region23: #{gpt_forward.13} parent=5 // pred_region
      %s92 = ssub.s32 %s7, 1
      %p93 = scmp.lt.s32.totalorder %s12, 1
      %s94 = scalar_select %p93, %s12, 1
      %s95 = smul.addr %s94, 12
      %s96 = smul.addr %s95, 4
      %s97 = scalar_lea.vmem %s0, %s96
      %p98 = pneg %p33
      %p99 = pneg %p30
      %p100 = pneg %p59
      %p101 = pneg %p56
      %p102 = scmp.lt.s32.totalorder %s12, 1
      %s103 = scalar_select %p102, %s12, 1
      %s104 = smul.addr %s103, 4
      %s105 = smul.addr %s104, 4
      %s106 = scalar_lea.vmem %s1, %s105
      %p107 = scmp.lt.s32.totalorder %s12, 1
      %s108 = scalar_select %p107, %s12, 1
      %s109 = smul.addr %s108, 12
      %s110 = smul.addr %s109, 4
      %s111 = scalar_lea.vmem %s0, %s110
      %p112 = scmp.lt.s32.totalorder %s12, 1
      %s113 = scalar_select %p112, %s12, 1
      %s114 = smul.addr %s113, 4
      %s115 = smul.addr %s114, 4
      %s116 = scalar_lea.vmem %s1, %s115
      %v118 = vld [vmem:[%s111] sm:$0xf]
      %v119 = vld [vmem:[%s111 + $0xc] sm:$0xf]
      %v120 = vld [vmem:[%s111 + $0x18] sm:$0xf]
      %v121 = vld [vmem:[%s111 + $0x24] sm:$0xf]
      %v122 = vld [vmem:[%s111 + $0x4] sm:$0xf]
      %v123 = vld [vmem:[%s111 + $0x10] sm:$0xf]
      %v124 = vld [vmem:[%s111 + $0x1c] sm:$0xf]
      %v125 = vld [vmem:[%s111 + $0x28] sm:$0xf]
      %v126 = vld [vmem:[%s111 + $0x8] sm:$0xf]
      %v127 = vld [vmem:[%s111 + $0x14] sm:$0xf]
      %v128 = vld [vmem:[%s111 + $0x20] sm:$0xf]
      %v129 = vld [vmem:[%s111 + $0x2c] sm:$0xf]
      %v130 = vlaneseq
      %v131 = vshrl.u32 %v130, 7
      %v132 = vadd.s32 %v131, 8
      %v133 = vadd.s32 %v131, 16
      %v134 = vadd.s32 %v131, 24
      %v135 = vlaneseq
      %v136 = vand.u32 %v135, 127
      %vm137 = vcmp.le.s32.totalorder %v136, %v131
      %vm138 = vcmp.le.s32.totalorder %v136, %v132
      %vm139 = vcmp.le.s32.totalorder %v136, %v133
      %vm140 = vcmp.le.s32.totalorder %v136, %v134
      %v145 = vunpack.c.l.b16 %v118
      %v146 = vunpack.c.l.b16 %v119
      %v147 = vunpack.c.l.b16 %v120
      %v148 = vunpack.c.l.b16 %v121
      %v149 = vpack.c.b16 %v146, %v145
      %v150 = vpack.c.b16 %v148, %v147
      %v155 = vunpack.c.l.b16 %v122
      %v156 = vunpack.c.l.b16 %v123
      %v157 = vunpack.c.l.b16 %v124
      %v158 = vunpack.c.l.b16 %v125
      %v159 = vpack.c.b16 %v156, %v155
      %v160 = vpack.c.b16 %v158, %v157
      %vm161 = vcmask 261120
      %v163 = vsel %vm161, %v149, 0
      %v166 = vsel %vm161, %v150, 0
      %v169 = vsel %vm161, %v159, 0
      %v172 = vsel %vm161, %v160, 0
      %174 = vmatpush.bf16.xpose.msra.mxu0 0
      %175 = vmatpush.bf16.xpose.msra.mxu0 0
      %176 = vmatpush.bf16.xpose.msra.mxu0 0
      %177 = vmatpush.bf16.xpose.msra.mxu0 0
      %178 = vmatpush.bf16.xpose.msra.mxu0 0
      %179 = vmatpush.bf16.xpose.msra.mxu0 0
      %180 = vmatpush.bf16.xpose.msra.mxu0 %v172
      %181 = vmatpush.bf16.xpose.msra.mxu0 %v169
      %182 = vmatmul.bf16.gmra.mxu0 %v163
      %v183 = vpop.f32.mrf.mxu0
      %v184 = vadd.f32 0.0, %v183
      %v185 = vpop.f32.mrf.mxu0
      %v186 = vadd.f32 0.0, %v185
      %187 = vmatmul.bf16.gmra.mxu0 %v166
      %v188 = vpop.f32.mrf.mxu0
      %v189 = vadd.f32 0.0, %v188
      %v190 = vpop.f32.mrf.mxu0
      %v191 = vadd.f32 0.0, %v190
      %192 = vdwg.mxu0
      %v193 = vmul.f32 %v184, 0.17677669
      %v194 = vmul.f32 %v186, 0.17677669
      %v195 = vmul.f32 %v189, 0.17677669
      %v196 = vmul.f32 %v191, 0.17677669
      %v197 = vsel %vm137, %v193, -inf
      %v198 = vsel %vm138, %v194, -inf
      %v199 = vsel %vm139, %v195, -inf
      %v200 = vsel %vm140, %v196, -inf
      %v201 = vsel %vm161, %v197, -inf
      %202 = vmax.xlane.f32.xlu0 %v201
      %v203 = vpop.xlane.xlu0 %202
      %v204 = vsel %vm161, %v198, -inf
      %205 = vmax.xlane.f32.xlu0 %v204
      %v206 = vpop.xlane.xlu0 %205
      %v207 = vsel %vm161, %v199, -inf
      %208 = vmax.xlane.f32.xlu0 %v207
      %v209 = vpop.xlane.xlu0 %208
      %v210 = vsel %vm161, %v200, -inf
      %211 = vmax.xlane.f32.xlu0 %v210
      %v212 = vpop.xlane.xlu0 %211
      %v213 = vsub.f32 %v197, %v203
      %v214 = vsub.f32 %v198, %v206
      %v215 = vsub.f32 %v199, %v209
      %v216 = vsub.f32 %v200, %v212
      %v217 = vmul.f32 %v213, 1.442695
      %v218 = vpow.pop %v217
      %v219 = vmul.f32 %v214, 1.442695
      %v220 = vpow.pop %v219
      %v221 = vmul.f32 %v215, 1.442695
      %v222 = vpow.pop %v221
      %v223 = vmul.f32 %v216, 1.442695
      %v224 = vpow.pop %v223
      %v225 = vsel %vm161, %v218, 0.0
      %226 = vadd.xlane.f32.xlu0 %v225
      %v227 = vpop.xlane.xlu0 %226
      %v228 = vsel %vm161, %v220, 0.0
      %229 = vadd.xlane.f32.xlu0 %v228
      %v230 = vpop.xlane.xlu0 %229
      %v231 = vsel %vm161, %v222, 0.0
      %232 = vadd.xlane.f32.xlu0 %v231
      %v233 = vpop.xlane.xlu0 %232
      %v234 = vsel %vm161, %v224, 0.0
      %235 = vadd.xlane.f32.xlu0 %v234
      %v236 = vpop.xlane.xlu0 %235
      %v237 = vpack.c.bf16 %v220, %v218
      %v238 = vpack.c.bf16 %v224, %v222
      %v243 = vunpack.c.l.b16 %v126
      %v244 = vunpack.c.l.b16 %v127
      %v245 = vunpack.c.l.b16 %v128
      %v246 = vunpack.c.l.b16 %v129
      %v247 = vpack.c.b16 %v244, %v243
      %v248 = vpack.c.b16 %v246, %v245
      %v252 = vsel %vm161, %v237, 0
      %v255 = vsel %vm161, %v238, 0
      %257 = vmatpush.bf16.msra.mxu0 0
      %258 = vmatpush.bf16.msra.mxu0 0
      %259 = vmatpush.bf16.msra.mxu0 0
      %260 = vmatpush.bf16.msra.mxu0 0
      %261 = vmatpush.bf16.msra.mxu0 0
      %262 = vmatpush.bf16.msra.mxu0 0
      %263 = vmatpush.bf16.msra.mxu0 %v248
      %264 = vmatpush.bf16.msra.mxu0 %v247
      %265 = vmatmul.bf16.gmra.mxu0 %v252
      %v266 = vpop.f32.mrf.mxu0
      %v267 = vadd.f32 0.0, %v266
      %v268 = vpop.f32.mrf.mxu0
      %v269 = vadd.f32 0.0, %v268
      %270 = vmatmul.bf16.gmra.mxu0 %v255
      %v271 = vpop.f32.mrf.mxu0
      %v272 = vadd.f32 0.0, %v271
      %v273 = vpop.f32.mrf.mxu0
      %v274 = vadd.f32 0.0, %v273
      %275 = vdwg.mxu0
      %v276 = vrcp.pop %v227
      %v277 = vrcp.pop %v230
      %v278 = vrcp.pop %v233
      %v279 = vrcp.pop %v236
      %v280 = vmul.f32 %v267, %v276
      %v281 = vmul.f32 %v269, %v277
      %v282 = vmul.f32 %v272, %v278
      %v283 = vmul.f32 %v274, %v279
      %284 = vrot.lane.b32.xlu0 %v149, 96
      %v285 = vpop.permute.xlu0 %284
      %286 = vrot.lane.b32.xlu0 %v150, 96
      %v287 = vpop.permute.xlu0 %286
      %288 = vrot.lane.b32.xlu0 %v159, 96
      %v289 = vpop.permute.xlu0 %288
      %290 = vrot.lane.b32.xlu0 %v160, 96
      %v291 = vpop.permute.xlu0 %290
      %v293 = vsel %vm161, %v285, 0
      %v296 = vsel %vm161, %v287, 0
      %v299 = vsel %vm161, %v289, 0
      %v302 = vsel %vm161, %v291, 0
      %304 = vmatpush.bf16.xpose.msra.mxu0 0
      %305 = vmatpush.bf16.xpose.msra.mxu0 0
      %306 = vmatpush.bf16.xpose.msra.mxu0 0
      %307 = vmatpush.bf16.xpose.msra.mxu0 0
      %308 = vmatpush.bf16.xpose.msra.mxu0 0
      %309 = vmatpush.bf16.xpose.msra.mxu0 0
      %310 = vmatpush.bf16.xpose.msra.mxu0 %v302
      %311 = vmatpush.bf16.xpose.msra.mxu0 %v299
      %312 = vmatmul.bf16.gmra.mxu0 %v293
      %v313 = vpop.f32.mrf.mxu0
      %v314 = vadd.f32 0.0, %v313
      %v315 = vpop.f32.mrf.mxu0
      %v316 = vadd.f32 0.0, %v315
      %317 = vmatmul.bf16.gmra.mxu0 %v296
      %v318 = vpop.f32.mrf.mxu0
      %v319 = vadd.f32 0.0, %v318
      %v320 = vpop.f32.mrf.mxu0
      %v321 = vadd.f32 0.0, %v320
      %322 = vdwg.mxu0
      %v323 = vmul.f32 %v314, 0.17677669
      %v324 = vmul.f32 %v316, 0.17677669
      %v325 = vmul.f32 %v319, 0.17677669
      %v326 = vmul.f32 %v321, 0.17677669
      %v327 = vsel %vm137, %v323, -inf
      %v328 = vsel %vm138, %v324, -inf
      %v329 = vsel %vm139, %v325, -inf
      %v330 = vsel %vm140, %v326, -inf
      %v331 = vsel %vm161, %v327, -inf
      %332 = vmax.xlane.f32.xlu0 %v331
      %v333 = vpop.xlane.xlu0 %332
      %v334 = vsel %vm161, %v328, -inf
      %335 = vmax.xlane.f32.xlu0 %v334
      %v336 = vpop.xlane.xlu0 %335
      %v337 = vsel %vm161, %v329, -inf
      %338 = vmax.xlane.f32.xlu0 %v337
      %v339 = vpop.xlane.xlu0 %338
      %v340 = vsel %vm161, %v330, -inf
      %341 = vmax.xlane.f32.xlu0 %v340
      %v342 = vpop.xlane.xlu0 %341
      %v343 = vsub.f32 %v327, %v333
      %v344 = vsub.f32 %v328, %v336
      %v345 = vsub.f32 %v329, %v339
      %v346 = vsub.f32 %v330, %v342
      %v347 = vmul.f32 %v343, 1.442695
      %v348 = vpow.pop %v347
      %v349 = vmul.f32 %v344, 1.442695
      %v350 = vpow.pop %v349
      %v351 = vmul.f32 %v345, 1.442695
      %v352 = vpow.pop %v351
      %v353 = vmul.f32 %v346, 1.442695
      %v354 = vpow.pop %v353
      %v355 = vsel %vm161, %v348, 0.0
      %356 = vadd.xlane.f32.xlu0 %v355
      %v357 = vpop.xlane.xlu0 %356
      %v358 = vsel %vm161, %v350, 0.0
      %359 = vadd.xlane.f32.xlu0 %v358
      %v360 = vpop.xlane.xlu0 %359
      %v361 = vsel %vm161, %v352, 0.0
      %362 = vadd.xlane.f32.xlu0 %v361
      %v363 = vpop.xlane.xlu0 %362
      %v364 = vsel %vm161, %v354, 0.0
      %365 = vadd.xlane.f32.xlu0 %v364
      %v366 = vpop.xlane.xlu0 %365
      %v367 = vpack.c.bf16 %v350, %v348
      %v368 = vpack.c.bf16 %v354, %v352
      %369 = vrot.lane.b32.xlu0 %v247, 96
      %v370 = vpop.permute.xlu0 %369
      %371 = vrot.lane.b32.xlu0 %v248, 96
      %v372 = vpop.permute.xlu0 %371
      %v376 = vsel %vm161, %v367, 0
      %v379 = vsel %vm161, %v368, 0
      %381 = vmatpush.bf16.msra.mxu0 0
      %382 = vmatpush.bf16.msra.mxu0 0
      %383 = vmatpush.bf16.msra.mxu0 0
      %384 = vmatpush.bf16.msra.mxu0 0
      %385 = vmatpush.bf16.msra.mxu0 0
      %386 = vmatpush.bf16.msra.mxu0 0
      %387 = vmatpush.bf16.msra.mxu0 %v372
      %388 = vmatpush.bf16.msra.mxu0 %v370
      %389 = vmatmul.bf16.gmra.mxu0 %v376
      %v390 = vpop.f32.mrf.mxu0
      %v391 = vadd.f32 0.0, %v390
      %v392 = vpop.f32.mrf.mxu0
      %v393 = vadd.f32 0.0, %v392
      %394 = vmatmul.bf16.gmra.mxu0 %v379
      %v395 = vpop.f32.mrf.mxu0
      %v396 = vadd.f32 0.0, %v395
      %v397 = vpop.f32.mrf.mxu0
      %v398 = vadd.f32 0.0, %v397
      %399 = vdwg.mxu0
      %v400 = vrcp.pop %v357
      %v401 = vrcp.pop %v360
      %v402 = vrcp.pop %v363
      %v403 = vrcp.pop %v366
      %v404 = vmul.f32 %v391, %v400
      %v405 = vmul.f32 %v393, %v401
      %v406 = vmul.f32 %v396, %v402
      %v407 = vmul.f32 %v398, %v403
      %408 = vrot.lane.b32.xlu0 %v149, 64
      %v409 = vpop.permute.xlu0 %408
      %410 = vrot.lane.b32.xlu0 %v150, 64
      %v411 = vpop.permute.xlu0 %410
      %412 = vrot.lane.b32.xlu0 %v159, 64
      %v413 = vpop.permute.xlu0 %412
      %414 = vrot.lane.b32.xlu0 %v160, 64
      %v415 = vpop.permute.xlu0 %414
      %v417 = vsel %vm161, %v409, 0
      %v420 = vsel %vm161, %v411, 0
      %v423 = vsel %vm161, %v413, 0
      %v426 = vsel %vm161, %v415, 0
      %428 = vmatpush.bf16.xpose.msra.mxu0 0
      %429 = vmatpush.bf16.xpose.msra.mxu0 0
      %430 = vmatpush.bf16.xpose.msra.mxu0 0
      %431 = vmatpush.bf16.xpose.msra.mxu0 0
      %432 = vmatpush.bf16.xpose.msra.mxu0 0
      %433 = vmatpush.bf16.xpose.msra.mxu0 0
      %434 = vmatpush.bf16.xpose.msra.mxu0 %v426
      %435 = vmatpush.bf16.xpose.msra.mxu0 %v423
      %436 = vmatmul.bf16.gmra.mxu0 %v417
      %v437 = vpop.f32.mrf.mxu0
      %v438 = vadd.f32 0.0, %v437
      %v439 = vpop.f32.mrf.mxu0
      %v440 = vadd.f32 0.0, %v439
      %441 = vmatmul.bf16.gmra.mxu0 %v420
      %v442 = vpop.f32.mrf.mxu0
      %v443 = vadd.f32 0.0, %v442
      %v444 = vpop.f32.mrf.mxu0
      %v445 = vadd.f32 0.0, %v444
      %446 = vdwg.mxu0
      %v447 = vmul.f32 %v438, 0.17677669
      %v448 = vmul.f32 %v440, 0.17677669
      %v449 = vmul.f32 %v443, 0.17677669
      %v450 = vmul.f32 %v445, 0.17677669
      %v451 = vsel %vm137, %v447, -inf
      %v452 = vsel %vm138, %v448, -inf
      %v453 = vsel %vm139, %v449, -inf
      %v454 = vsel %vm140, %v450, -inf
      %v455 = vsel %vm161, %v451, -inf
      %456 = vmax.xlane.f32.xlu0 %v455
      %v457 = vpop.xlane.xlu0 %456
      %v458 = vsel %vm161, %v452, -inf
      %459 = vmax.xlane.f32.xlu0 %v458
      %v460 = vpop.xlane.xlu0 %459
      %v461 = vsel %vm161, %v453, -inf
      %462 = vmax.xlane.f32.xlu0 %v461
      %v463 = vpop.xlane.xlu0 %462
      %v464 = vsel %vm161, %v454, -inf
      %465 = vmax.xlane.f32.xlu0 %v464
      %v466 = vpop.xlane.xlu0 %465
      %v467 = vsub.f32 %v451, %v457
      %v468 = vsub.f32 %v452, %v460
      %v469 = vsub.f32 %v453, %v463
      %v470 = vsub.f32 %v454, %v466
      %v471 = vmul.f32 %v467, 1.442695
      %v472 = vpow.pop %v471
      %v473 = vmul.f32 %v468, 1.442695
      %v474 = vpow.pop %v473
      %v475 = vmul.f32 %v469, 1.442695
      %v476 = vpow.pop %v475
      %v477 = vmul.f32 %v470, 1.442695
      %v478 = vpow.pop %v477
      %v479 = vsel %vm161, %v472, 0.0
      %480 = vadd.xlane.f32.xlu0 %v479
      %v481 = vpop.xlane.xlu0 %480
      %v482 = vsel %vm161, %v474, 0.0
      %483 = vadd.xlane.f32.xlu0 %v482
      %v484 = vpop.xlane.xlu0 %483
      %v485 = vsel %vm161, %v476, 0.0
      %486 = vadd.xlane.f32.xlu0 %v485
      %v487 = vpop.xlane.xlu0 %486
      %v488 = vsel %vm161, %v478, 0.0
      %489 = vadd.xlane.f32.xlu0 %v488
      %v490 = vpop.xlane.xlu0 %489
      %v491 = vpack.c.bf16 %v474, %v472
      %v492 = vpack.c.bf16 %v478, %v476
      %493 = vrot.lane.b32.xlu0 %v247, 64
      %v494 = vpop.permute.xlu0 %493
      %495 = vrot.lane.b32.xlu0 %v248, 64
      %v496 = vpop.permute.xlu0 %495
      %v500 = vsel %vm161, %v491, 0
      %v503 = vsel %vm161, %v492, 0
      %505 = vmatpush.bf16.msra.mxu0 0
      %506 = vmatpush.bf16.msra.mxu0 0
      %507 = vmatpush.bf16.msra.mxu0 0
      %508 = vmatpush.bf16.msra.mxu0 0
      %509 = vmatpush.bf16.msra.mxu0 0
      %510 = vmatpush.bf16.msra.mxu0 0
      %511 = vmatpush.bf16.msra.mxu0 %v496
      %512 = vmatpush.bf16.msra.mxu0 %v494
      %513 = vmatmul.bf16.gmra.mxu0 %v500
      %v514 = vpop.f32.mrf.mxu0
      %v515 = vadd.f32 0.0, %v514
      %v516 = vpop.f32.mrf.mxu0
      %v517 = vadd.f32 0.0, %v516
      %518 = vmatmul.bf16.gmra.mxu0 %v503
      %v519 = vpop.f32.mrf.mxu0
      %v520 = vadd.f32 0.0, %v519
      %v521 = vpop.f32.mrf.mxu0
      %v522 = vadd.f32 0.0, %v521
      %523 = vdwg.mxu0
      %v524 = vrcp.pop %v481
      %v525 = vrcp.pop %v484
      %v526 = vrcp.pop %v487
      %v527 = vrcp.pop %v490
      %v528 = vmul.f32 %v515, %v524
      %v529 = vmul.f32 %v517, %v525
      %v530 = vmul.f32 %v520, %v526
      %v531 = vmul.f32 %v522, %v527
      %532 = vrot.lane.b32.xlu0 %v149, 32
      %v533 = vpop.permute.xlu0 %532
      %534 = vrot.lane.b32.xlu0 %v150, 32
      %v535 = vpop.permute.xlu0 %534
      %536 = vrot.lane.b32.xlu0 %v159, 32
      %v537 = vpop.permute.xlu0 %536
      %538 = vrot.lane.b32.xlu0 %v160, 32
      %v539 = vpop.permute.xlu0 %538
      %v541 = vsel %vm161, %v533, 0
      %v544 = vsel %vm161, %v535, 0
      %v547 = vsel %vm161, %v537, 0
      %v550 = vsel %vm161, %v539, 0
      %552 = vmatpush.bf16.xpose.msra.mxu0 0
      %553 = vmatpush.bf16.xpose.msra.mxu0 0
      %554 = vmatpush.bf16.xpose.msra.mxu0 0
      %555 = vmatpush.bf16.xpose.msra.mxu0 0
      %556 = vmatpush.bf16.xpose.msra.mxu0 0
      %557 = vmatpush.bf16.xpose.msra.mxu0 0
      %558 = vmatpush.bf16.xpose.msra.mxu0 %v550
      %559 = vmatpush.bf16.xpose.msra.mxu0 %v547
      %560 = vmatmul.bf16.gmra.mxu0 %v541
      %v561 = vpop.f32.mrf.mxu0
      %v562 = vadd.f32 0.0, %v561
      %v563 = vpop.f32.mrf.mxu0
      %v564 = vadd.f32 0.0, %v563
      %565 = vmatmul.bf16.gmra.mxu0 %v544
      %v566 = vpop.f32.mrf.mxu0
      %v567 = vadd.f32 0.0, %v566
      %v568 = vpop.f32.mrf.mxu0
      %v569 = vadd.f32 0.0, %v568
      %570 = vdwg.mxu0
      %v571 = vmul.f32 %v562, 0.17677669
      %v572 = vmul.f32 %v564, 0.17677669
      %v573 = vmul.f32 %v567, 0.17677669
      %v574 = vmul.f32 %v569, 0.17677669
      %v575 = vsel %vm137, %v571, -inf
      %v576 = vsel %vm138, %v572, -inf
      %v577 = vsel %vm139, %v573, -inf
      %v578 = vsel %vm140, %v574, -inf
      %v579 = vsel %vm161, %v575, -inf
      %580 = vmax.xlane.f32.xlu0 %v579
      %v581 = vpop.xlane.xlu0 %580
      %v582 = vsel %vm161, %v576, -inf
      %583 = vmax.xlane.f32.xlu0 %v582
      %v584 = vpop.xlane.xlu0 %583
      %v585 = vsel %vm161, %v577, -inf
      %586 = vmax.xlane.f32.xlu0 %v585
      %v587 = vpop.xlane.xlu0 %586
      %v588 = vsel %vm161, %v578, -inf
      %589 = vmax.xlane.f32.xlu0 %v588
      %v590 = vpop.xlane.xlu0 %589
      %v591 = vsub.f32 %v575, %v581
      %v592 = vsub.f32 %v576, %v584
      %v593 = vsub.f32 %v577, %v587
      %v594 = vsub.f32 %v578, %v590
      %v595 = vmul.f32 %v591, 1.442695
      %v596 = vpow.pop %v595
      %v597 = vmul.f32 %v592, 1.442695
      %v598 = vpow.pop %v597
      %v599 = vmul.f32 %v593, 1.442695
      %v600 = vpow.pop %v599
      %v601 = vmul.f32 %v594, 1.442695
      %v602 = vpow.pop %v601
      %v603 = vsel %vm161, %v596, 0.0
      %604 = vadd.xlane.f32.xlu0 %v603
      %v605 = vpop.xlane.xlu0 %604
      %v606 = vsel %vm161, %v598, 0.0
      %607 = vadd.xlane.f32.xlu0 %v606
      %v608 = vpop.xlane.xlu0 %607
      %v609 = vsel %vm161, %v600, 0.0
      %610 = vadd.xlane.f32.xlu0 %v609
      %v611 = vpop.xlane.xlu0 %610
      %v612 = vsel %vm161, %v602, 0.0
      %613 = vadd.xlane.f32.xlu0 %v612
      %v614 = vpop.xlane.xlu0 %613
      %v615 = vpack.c.bf16 %v598, %v596
      %v616 = vpack.c.bf16 %v602, %v600
      %617 = vrot.lane.b32.xlu0 %v247, 32
      %v618 = vpop.permute.xlu0 %617
      %619 = vrot.lane.b32.xlu0 %v248, 32
      %v620 = vpop.permute.xlu0 %619
      %v624 = vsel %vm161, %v615, 0
      %v627 = vsel %vm161, %v616, 0
      %629 = vmatpush.bf16.msra.mxu0 0
      %630 = vmatpush.bf16.msra.mxu0 0
      %631 = vmatpush.bf16.msra.mxu0 0
      %632 = vmatpush.bf16.msra.mxu0 0
      %633 = vmatpush.bf16.msra.mxu0 0
      %634 = vmatpush.bf16.msra.mxu0 0
      %635 = vmatpush.bf16.msra.mxu0 %v620
      %636 = vmatpush.bf16.msra.mxu0 %v618
      %637 = vmatmul.bf16.gmra.mxu0 %v624
      %v638 = vpop.f32.mrf.mxu0
      %v639 = vadd.f32 0.0, %v638
      %v640 = vpop.f32.mrf.mxu0
      %v641 = vadd.f32 0.0, %v640
      %642 = vmatmul.bf16.gmra.mxu0 %v627
      %v643 = vpop.f32.mrf.mxu0
      %v644 = vadd.f32 0.0, %v643
      %v645 = vpop.f32.mrf.mxu0
      %v646 = vadd.f32 0.0, %v645
      %647 = vdwg.mxu0
      %v648 = vrcp.pop %v605
      %v649 = vrcp.pop %v608
      %v650 = vrcp.pop %v611
      %v651 = vrcp.pop %v614
      %v652 = vmul.f32 %v639, %v648
      %v653 = vmul.f32 %v641, %v649
      %v654 = vmul.f32 %v644, %v650
      %v655 = vmul.f32 %v646, %v651
      %660 = vrot.lane.b32.xlu0 %v404, 32
      %v661 = vpop.permute.xlu0 %660
      %662 = vrot.lane.b32.xlu0 %v405, 32
      %v663 = vpop.permute.xlu0 %662
      %664 = vrot.lane.b32.xlu0 %v406, 32
      %v665 = vpop.permute.xlu0 %664
      %666 = vrot.lane.b32.xlu0 %v407, 32
      %v667 = vpop.permute.xlu0 %666
      %676 = vrot.lane.b32.xlu0 %v528, 64
      %v677 = vpop.permute.xlu0 %676
      %678 = vrot.lane.b32.xlu0 %v529, 64
      %v679 = vpop.permute.xlu0 %678
      %680 = vrot.lane.b32.xlu0 %v530, 64
      %v681 = vpop.permute.xlu0 %680
      %682 = vrot.lane.b32.xlu0 %v531, 64
      %v683 = vpop.permute.xlu0 %682
      %692 = vrot.lane.b32.xlu0 %v652, 96
      %v693 = vpop.permute.xlu0 %692
      %694 = vrot.lane.b32.xlu0 %v653, 96
      %v695 = vpop.permute.xlu0 %694
      %696 = vrot.lane.b32.xlu0 %v654, 96
      %v697 = vpop.permute.xlu0 %696
      %698 = vrot.lane.b32.xlu0 %v655, 96
      %v699 = vpop.permute.xlu0 %698
      %v704 = vsel %vm161, %v280, %v661
      %v705 = vsel %vm161, %v281, %v663
      %v706 = vsel %vm161, %v282, %v665
      %v707 = vsel %vm161, %v283, %v667
      %vm708 = vcmask 523264
      %v709 = vsel %vm708, %v704, %v677
      %v710 = vsel %vm708, %v705, %v679
      %v711 = vsel %vm708, %v706, %v681
      %v712 = vsel %vm708, %v707, %v683
      %vm713 = vcmask 785408
      %v714 = vsel %vm713, %v709, %v693
      %v715 = vsel %vm713, %v710, %v695
      %v716 = vsel %vm713, %v711, %v697
      %v717 = vsel %vm713, %v712, %v699
      %v718 = vpack.c.bf16 %v714, %v714
      %v719 = vpack.c.bf16 %v715, %v715
      %v720 = vpack.c.bf16 %v716, %v716
      %v721 = vpack.c.bf16 %v717, %v717
      %722 = vst [vmem:[%s116] sm:$0xf] %v718
      %723 = vst [vmem:[%s116 + $0x4] sm:$0xf] %v719
      %724 = vst [vmem:[%s116 + $0x8] sm:$0xf] %v720
      %725 = vst [vmem:[%s116 + $0xc] sm:$0xf] %v721
      %p726 = scmp.lt.s32.totalorder %s12, 1
      %s727 = scalar_select %p726, %s12, 1
      %s728 = smul.addr %s727, 4
      %s729 = smul.addr %s728, 4
      %s730 = scalar_lea.vmem %s1, %s729
      // Predicated region
      $region25: #{gpt_forward.13} parent=23 // pred_check
        %p731 = pneg %p56
      $region26: #{gpt_forward.13} parent=23 // pred_check_branch
        %733 = sbr.rel (%p731) target = $region28
      $region27: #{gpt_forward.13} parent=23 // pred_region
        _
      $region28: #{gpt_forward.13} parent=23 // pred_fallthru
        _
    $region24: #{gpt_forward.13} parent=5 // pred_fallthru
      _
    %p734 = scmp.le.s32.totalorder 2, %s7
    // Predicated region
    $region29: #{gpt_forward.13} parent=5 // pred_check
      %p735 = pneg %p734
    $region30: #{gpt_forward.13} parent=5 // pred_check_branch
      %737 = sbr.rel (%p735) target = $region32
    $region31: #{gpt_forward.13} parent=5 // pred_region
      %s738 = ssub.s32 %s7, 2
      // Predicated region
      $region33: #{gpt_forward.13} parent=31 // pred_check
        %p739 = pneg %p62
      $region34: #{gpt_forward.13} parent=31 // pred_check_branch
        %741 = sbr.rel (%p739) target = $region36
      $region35: #{gpt_forward.13} parent=31 // pred_region
        %p742 = scmp.lt.s32.totalorder %s13, 1
        %s743 = scalar_select %p742, %s13, 1
        %s744 = smul.addr %s743, 4
        %s745 = smul.addr %s744, 4
        %s746 = scalar_lea.vmem %s1, %s745
      $region36: #{gpt_forward.13} parent=31 // pred_fallthru
        _
    $region32: #{gpt_forward.13} parent=5 // pred_fallthru
      _
  $region6: #{gpt_forward.13} parent=0 // loop_footer
    %s11 = sadd.s32 1, %s7
  $region7: #{gpt_forward.13} parent=0 // loop_footer_branch
    %6 = sbr.rel target = $region3
  $region8: #{gpt_forward.13} parent=0 // loop_exit
    _

// kernel: gpt_forward.22
$region0: #{gpt_forward.22}
  #allocation0 [shape = 'u32[]', space=smem, size = 0x4, offset = 0x4, fixed_abs, tag = 'smem constant byte address 0x4 - core index']
  #allocation1 [shape = 'u32[72,128]{1,0:T(1,128)}', space=vmem, size = 0x9000, scoped, tag = 'internal scratch']
  %s0 = inlined_call_operand.vmem [shape: f32[64,128], index: 0, kind: input, shape index: {}]
  %s1 = inlined_call_operand.vmem [shape: f32[1,128], index: 1, kind: input, shape index: {}]
  %s2 = inlined_call_operand.vmem [shape: f32[1,128], index: 2, kind: input, shape index: {}]
  %s3 = inlined_call_operand.vmem [shape: bf16[64,128], index: 3, kind: output, shape index: {}]
  %s4 = sld [smem:[#allocation0]]
  $region22: #{gpt_forward.22} parent=0
    _
  %s6 = ssub.s32 1, %s4
  %s7 = scalar_select 0, %s6, %s4
  // Predicated region
  $region2: #{gpt_forward.22} parent=0 // pred_check
    _
  $region3: #{gpt_forward.22} parent=0 // pred_check_branch
    %9 = sbr.rel (0) target = $region5
  $region4: #{gpt_forward.22} parent=0 // pred_region
    _
  $region5: #{gpt_forward.22} parent=0 // pred_fallthru
    _
  // Predicated region
  $region6: #{gpt_forward.22} parent=0 // pred_check
    _
  $region7: #{gpt_forward.22} parent=0 // pred_check_branch
    %11 = sbr.rel (0) target = $region9
  $region8: #{gpt_forward.22} parent=0 // pred_region
    _
  $region9: #{gpt_forward.22} parent=0 // pred_fallthru
    _
  // Predicated region
  $region10: #{gpt_forward.22} parent=0 // pred_check
    _
  $region11: #{gpt_forward.22} parent=0 // pred_check_branch
    %13 = sbr.rel (0) target = $region13
  $region12: #{gpt_forward.22} parent=0 // pred_region
    _
  $region13: #{gpt_forward.22} parent=0 // pred_fallthru
    _
  %v14 = vld [vmem:[%s0] sm:$0xff]
  %v15 = vld [vmem:[%s0 + $0x8] sm:$0xff]
  %v16 = vld [vmem:[%s0 + $0x10] sm:$0xff]
  %v17 = vld [vmem:[%s0 + $0x18] sm:$0xff]
  %v18 = vld [vmem:[%s0 + $0x20] sm:$0xff]
  %v19 = vld [vmem:[%s0 + $0x28] sm:$0xff]
  %v20 = vld [vmem:[%s0 + $0x30] sm:$0xff]
  %v21 = vld [vmem:[%s0 + $0x38] sm:$0xff]
  %22 = vadd.xlane.f32.xlu0 %v14
  %v23 = vpop.xlane.xlu0 %22
  %24 = vadd.xlane.f32.xlu0 %v15
  %v25 = vpop.xlane.xlu0 %24
  %26 = vadd.xlane.f32.xlu0 %v16
  %v27 = vpop.xlane.xlu0 %26
  %28 = vadd.xlane.f32.xlu0 %v17
  %v29 = vpop.xlane.xlu0 %28
  %30 = vadd.xlane.f32.xlu0 %v18
  %v31 = vpop.xlane.xlu0 %30
  %32 = vadd.xlane.f32.xlu0 %v19
  %v33 = vpop.xlane.xlu0 %32
  %34 = vadd.xlane.f32.xlu0 %v20
  %v35 = vpop.xlane.xlu0 %34
  %36 = vadd.xlane.f32.xlu0 %v21
  %v37 = vpop.xlane.xlu0 %36
  %v38 = vrcp.pop 128.0
  %v39 = vmul.f32 128.0, %v38
  %v40 = vsub.f32 1.0, %v39
  %v41 = vmul.f32 %v38, %v40
  %v42 = vadd.f32 %v38, %v41
  %vm43 = vweird.f32 %v38
  %v44 = vsel %vm43, %v38, %v42
  %v45 = vmul.f32 %v23, %v44
  %v46 = vmul.f32 %v25, %v44
  %v47 = vmul.f32 %v27, %v44
  %v48 = vmul.f32 %v29, %v44
  %v49 = vmul.f32 %v31, %v44
  %v50 = vmul.f32 %v33, %v44
  %v51 = vmul.f32 %v35, %v44
  %v52 = vmul.f32 %v37, %v44
  %v53 = vsub.f32 %v14, %v45
  %v54 = vsub.f32 %v15, %v46
  %v55 = vsub.f32 %v16, %v47
  %v56 = vsub.f32 %v17, %v48
  %v57 = vsub.f32 %v18, %v49
  %v58 = vsub.f32 %v19, %v50
  %v59 = vsub.f32 %v20, %v51
  %v60 = vsub.f32 %v21, %v52
  %v61 = vmul.f32 %v53, %v53
  %v62 = vmul.f32 %v54, %v54
  %v63 = vmul.f32 %v55, %v55
  %v64 = vmul.f32 %v56, %v56
  %v65 = vmul.f32 %v57, %v57
  %v66 = vmul.f32 %v58, %v58
  %v67 = vmul.f32 %v59, %v59
  %v68 = vmul.f32 %v60, %v60
  %69 = vadd.xlane.f32.xlu0 %v61
  %v70 = vpop.xlane.xlu0 %69
  %71 = vadd.xlane.f32.xlu0 %v62
  %v72 = vpop.xlane.xlu0 %71
  %73 = vadd.xlane.f32.xlu0 %v63
  %v74 = vpop.xlane.xlu0 %73
  %75 = vadd.xlane.f32.xlu0 %v64
  %v76 = vpop.xlane.xlu0 %75
  %77 = vadd.xlane.f32.xlu0 %v65
  %v78 = vpop.xlane.xlu0 %77
  %79 = vadd.xlane.f32.xlu0 %v66
  %v80 = vpop.xlane.xlu0 %79
  %81 = vadd.xlane.f32.xlu0 %v67
  %v82 = vpop.xlane.xlu0 %81
  %83 = vadd.xlane.f32.xlu0 %v68
  %v84 = vpop.xlane.xlu0 %83
  %v85 = vmul.f32 %v70, %v44
  %v86 = vmul.f32 %v72, %v44
  %v87 = vmul.f32 %v74, %v44
  %v88 = vmul.f32 %v76, %v44
  %v89 = vmul.f32 %v78, %v44
  %v90 = vmul.f32 %v80, %v44
  %v91 = vmul.f32 %v82, %v44
  %v92 = vmul.f32 %v84, %v44
  %v93 = vadd.f32 %v85, 1e-05
  %v94 = vadd.f32 %v86, 1e-05
  %v95 = vadd.f32 %v87, 1e-05
  %v96 = vadd.f32 %v88, 1e-05
  %v97 = vadd.f32 %v89, 1e-05
  %v98 = vadd.f32 %v90, 1e-05
  %v99 = vadd.f32 %v91, 1e-05
  %v100 = vadd.f32 %v92, 1e-05
  %v101 = vrsqrt.pop %v93
  %v102 = vmul.f32 %v101, %v93
  %v103 = vmul.f32 %v102, %v101
  %v104 = vmul.f32 0.5, %v103
  %v105 = vsub.f32 1.5, %v104
  %v106 = vmul.f32 %v101, %v105
  %vm107 = vweird.f32 %v93
  %vm108 = vweird.f32 %v101
  %vm109 = vmor %vm107, %vm108
  %v110 = vsel %vm109, %v101, %v106
  %v111 = vrsqrt.pop %v94
  %v112 = vmul.f32 %v111, %v94
  %v113 = vmul.f32 %v112, %v111
  %v114 = vmul.f32 0.5, %v113
  %v115 = vsub.f32 1.5, %v114
  %v116 = vmul.f32 %v111, %v115
  %vm117 = vweird.f32 %v94
  %vm118 = vweird.f32 %v111
  %vm119 = vmor %vm117, %vm118
  %v120 = vsel %vm119, %v111, %v116
  %v121 = vrsqrt.pop %v95
  %v122 = vmul.f32 %v121, %v95
  %v123 = vmul.f32 %v122, %v121
  %v124 = vmul.f32 0.5, %v123
  %v125 = vsub.f32 1.5, %v124
  %v126 = vmul.f32 %v121, %v125
  %vm127 = vweird.f32 %v95
  %vm128 = vweird.f32 %v121
  %vm129 = vmor %vm127, %vm128
  %v130 = vsel %vm129, %v121, %v126
  %v131 = vrsqrt.pop %v96
  %v132 = vmul.f32 %v131, %v96
  %v133 = vmul.f32 %v132, %v131
  %v134 = vmul.f32 0.5, %v133
  %v135 = vsub.f32 1.5, %v134
  %v136 = vmul.f32 %v131, %v135
  %vm137 = vweird.f32 %v96
  %vm138 = vweird.f32 %v131
  %vm139 = vmor %vm137, %vm138
  %v140 = vsel %vm139, %v131, %v136
  %v141 = vrsqrt.pop %v97
  %v142 = vmul.f32 %v141, %v97
  %v143 = vmul.f32 %v142, %v141
  %v144 = vmul.f32 0.5, %v143
  %v145 = vsub.f32 1.5, %v144
  %v146 = vmul.f32 %v141, %v145
  %vm147 = vweird.f32 %v97
  %vm148 = vweird.f32 %v141
  %vm149 = vmor %vm147, %vm148
  %v150 = vsel %vm149, %v141, %v146
  %v151 = vrsqrt.pop %v98
  %v152 = vmul.f32 %v151, %v98
  %v153 = vmul.f32 %v152, %v151
  %v154 = vmul.f32 0.5, %v153
  %v155 = vsub.f32 1.5, %v154
  %v156 = vmul.f32 %v151, %v155
  %vm157 = vweird.f32 %v98
  %vm158 = vweird.f32 %v151
  %vm159 = vmor %vm157, %vm158
  %v160 = vsel %vm159, %v151, %v156
  %v161 = vrsqrt.pop %v99
  %v162 = vmul.f32 %v161, %v99
  %v163 = vmul.f32 %v162, %v161
  %v164 = vmul.f32 0.5, %v163
  %v165 = vsub.f32 1.5, %v164
  %v166 = vmul.f32 %v161, %v165
  %vm167 = vweird.f32 %v99
  %vm168 = vweird.f32 %v161
  %vm169 = vmor %vm167, %vm168
  %v170 = vsel %vm169, %v161, %v166
  %v171 = vrsqrt.pop %v100
  %v172 = vmul.f32 %v171, %v100
  %v173 = vmul.f32 %v172, %v171
  %v174 = vmul.f32 0.5, %v173
  %v175 = vsub.f32 1.5, %v174
  %v176 = vmul.f32 %v171, %v175
  %vm177 = vweird.f32 %v100
  %vm178 = vweird.f32 %v171
  %vm179 = vmor %vm177, %vm178
  %v180 = vsel %vm179, %v171, %v176
  %v181 = vmul.f32 %v53, %v110
  %v182 = vmul.f32 %v54, %v120
  %v183 = vmul.f32 %v55, %v130
  %v184 = vmul.f32 %v56, %v140
  %v185 = vmul.f32 %v57, %v150
  %v186 = vmul.f32 %v58, %v160
  %v187 = vmul.f32 %v59, %v170
  %v188 = vmul.f32 %v60, %v180
  %v189 = vld [vmem:[%s1] sm:$0x1]
  %v191 = vperm.slane %v189, 0
  %v193 = vmul.f32 %v181, %v191
  %v194 = vmul.f32 %v182, %v191
  %v195 = vmul.f32 %v183, %v191
  %v196 = vmul.f32 %v184, %v191
  %v197 = vmul.f32 %v185, %v191
  %v198 = vmul.f32 %v186, %v191
  %v199 = vmul.f32 %v187, %v191
  %v200 = vmul.f32 %v188, %v191
  %v201 = vld [vmem:[%s2] sm:$0x1]
  %v203 = vperm.slane %v201, 0
  %v205 = vadd.f32 %v193, %v203
  %v206 = vadd.f32 %v194, %v203
  %v207 = vadd.f32 %v195, %v203
  %v208 = vadd.f32 %v196, %v203
  %v209 = vadd.f32 %v197, %v203
  %v210 = vadd.f32 %v198, %v203
  %v211 = vadd.f32 %v199, %v203
  %v212 = vadd.f32 %v200, %v203
  %v213 = vpack.c.bf16 %v205, %v205
  %v214 = vpack.c.bf16 %v206, %v206
  %v215 = vpack.c.bf16 %v207, %v207
  %v216 = vpack.c.bf16 %v208, %v208
  %v217 = vpack.c.bf16 %v209, %v209
  %v218 = vpack.c.bf16 %v210, %v210
  %v219 = vpack.c.bf16 %v211, %v211
  %v220 = vpack.c.bf16 %v212, %v212
  %221 = vst [vmem:[%s3] sm:$0xf] %v213
  %222 = vst [vmem:[%s3 + $0x4] sm:$0xf] %v214
  %223 = vst [vmem:[%s3 + $0x8] sm:$0xf] %v215
  %224 = vst [vmem:[%s3 + $0xc] sm:$0xf] %v216
  %225 = vst [vmem:[%s3 + $0x10] sm:$0xf] %v217
  %226 = vst [vmem:[%s3 + $0x14] sm:$0xf] %v218
  %227 = vst [vmem:[%s3 + $0x18] sm:$0xf] %v219
  %228 = vst [vmem:[%s3 + $0x1c] sm:$0xf] %v220
  // Predicated region
  $region14: #{gpt_forward.22} parent=0 // pred_check
    _
  $region15: #{gpt_forward.22} parent=0 // pred_check_branch
    %230 = sbr.rel (0) target = $region17
  $region16: #{gpt_forward.22} parent=0 // pred_region
    _
  $region17: #{gpt_forward.22} parent=0 // pred_fallthru
    _
  // Predicated region
  $region18: #{gpt_forward.22} parent=0 // pred_check
    _
  $region19: #{gpt_forward.22} parent=0 // pred_check_branch
    %232 = sbr.rel (0) target = $region21
  $region20: #{gpt_forward.22} parent=0 // pred_region
    _
  $region21: #{gpt_forward.22} parent=0 // pred_fallthru
    _

// kernel: gpt_forward.23
$region0: #{gpt_forward.23}
  #allocation0 [shape = 'u32[]', space=smem, size = 0x4, offset = 0x4, fixed_abs, tag = 'smem constant byte address 0x4 - core index']
  #allocation1 [shape = 'u32[72,128]{1,0:T(1,128)}', space=vmem, size = 0x9000, scoped, tag = 'internal scratch']
  %s0 = inlined_call_operand.vmem [shape: bf16[64,128], index: 0, kind: input, shape index: {}]
  %s1 = inlined_call_operand.hbm [shape: bf16[128,512], index: 1, kind: input, shape index: {}]
  %s2 = inlined_call_operand.hbm [shape: f32[64,512], index: 2, kind: output, shape index: {}]
  %s3 = sld [smem:[#allocation0]]
  $region45: #{gpt_forward.23} parent=0
    _
  %s5 = ssub.s32 1, %s3
  %s6 = scalar_select 0, %s5, %s3
  $region1: #{gpt_forward.23} parent=0
    #allocation2 [shape = 'u8[131072]{0}', space=vmem, size = 0x20000, scoped, tag = 'input window, operand 1']
    #allocation3 [shape = 's32[2]{0}', space=sflag, size = 0x8, scoped, tag = 'scoped memory for gpt_forward.23']
    #allocation4 [shape = 's32[2]{0}', space=sflag, size = 0x8, scoped, tag = 'scoped memory for gpt_forward.23']
    #allocation5 [shape = 'u8[131072]{0}', space=vmem, size = 0x20000, scoped, tag = 'output window, operand 0']
    %7 = vsyncpa [#allocation3], 0
    %s8 = scalar_lea.sflag [#allocation3], 1
    %9 = vsyncpa %s8, 0
    %10 = vsyncpa [#allocation4], 0
    %s11 = scalar_lea.sflag [#allocation4], 1
    %12 = vsyncpa %s11, 0
    loop: start=0, step=1, limit=4
    $region2: #{gpt_forward.23} parent=1 // loop_pre_header
      _
    $region3: #{gpt_forward.23} parent=1 // loop_header
      %s14 = sphi 0, %s18
      %p15 = scmp.ge.s32.totalorder %s14, 4
      %s21 = sphi 0, %s33
      %s22 = sphi 0, %s29
      %s23 = sphi 0, %s21
      %s24 = sphi 0, %s22
      %s25 = sphi 0, %s23
      %s26 = sphi 0, %s24
      %s36 = sphi 0, %s38
      %s39 = sphi 0, %s36
      %s40 = sphi 0, %s39
      %s56 = sphi 0, %s40
      %s62 = sphi 0, %s64
      %s65 = sphi 0, %s62
      %s66 = sphi 0, %s65
      %s82 = sphi 0, %s66
      %s90 = sphi 0, %s92
      %s93 = sphi 0, %s90
      %s94 = sphi 0, %s93
      %s110 = sphi 0, %s94
    $region4: #{gpt_forward.23} parent=1 // loop_header_branch
      %17 = sbr.rel (%p15) target = $region8
    $region5: #{gpt_forward.23} parent=1 // loop_body
      %s19 = ssub.s32 %s14, 1
      %s20 = ssub.s32 %s14, 2
      %s27 = sadd.s32 1, %s22
      %p28 = scmp.ge.s32.totalorder %s27, 2
      %s29 = scalar_select %p28, 0, %s27
      %s30 = sadd.s32 1, %s21
      %s31 = scalar_select %p28, %s30, %s21
      %p32 = scmp.ge.s32.totalorder %s31, 1
      %s33 = scalar_select %p32, 0, %s31
      %s34 = ssub.s32 %s21, %s33
      %p35 = scmp.eq.s32.totalorder %s34, 0
      %s37 = sadd.s32 %s36, 1
      %s38 = scalar_select %p35, %s36, %s37
      %p41 = pneg %p35
      %p42 = scmp.eq.s32.totalorder %s14, 1
      %p43 = por %p41, %p42
      %p44 = scmp.ne.s32.totalorder %s36, %s39
      %p45 = scmp.eq.s32.totalorder %s14, 0
      %p46 = por %p44, %p45
      %p47 = scmp.ne.s32.totalorder %s36, %s39
      %p48 = scmp.eq.s32.totalorder %s19, 1
      %p49 = por %p47, %p48
      %p50 = scmp.ne.s32.totalorder %s39, %s40
      %p51 = scmp.eq.s32.totalorder %s19, 0
      %p52 = por %p50, %p51
      %p53 = scmp.ne.s32.totalorder %s39, %s40
      %p54 = scmp.eq.s32.totalorder %s20, 1
      %p55 = por %p53, %p54
      %p57 = scmp.ne.s32.totalorder %s40, %s56
      %p58 = scmp.eq.s32.totalorder %s20, 0
      %p59 = por %p57, %p58
      %s60 = ssub.s32 %s22, %s29
      %p61 = scmp.eq.s32.totalorder %s60, 0
      %s63 = sadd.s32 %s62, 1
      %s64 = scalar_select %p61, %s62, %s63
      %p67 = pneg %p61
      %p68 = scmp.eq.s32.totalorder %s14, 1
      %p69 = por %p67, %p68
      %p70 = scmp.ne.s32.totalorder %s62, %s65
      %p71 = scmp.eq.s32.totalorder %s14, 0
      %p72 = por %p70, %p71
      %p73 = scmp.ne.s32.totalorder %s62, %s65
      %p74 = scmp.eq.s32.totalorder %s19, 1
      %p75 = por %p73, %p74
      %p76 = scmp.ne.s32.totalorder %s65, %s66
      %p77 = scmp.eq.s32.totalorder %s19, 0
      %p78 = por %p76, %p77
      %p79 = scmp.ne.s32.totalorder %s65, %s66
      %p80 = scmp.eq.s32.totalorder %s20, 1
      %p81 = por %p79, %p80
      %p83 = scmp.ne.s32.totalorder %s66, %s82
      %p84 = scmp.eq.s32.totalorder %s20, 0
      %p85 = por %p83, %p84
      %s86 = ssub.s32 %s21, %s33
      %s87 = ssub.s32 %s22, %s29
      %s88 = sor.u32 %s86, %s87
      %p89 = scmp.eq.s32.totalorder %s88, 0
      %s91 = sadd.s32 %s90, 1
      %s92 = scalar_select %p89, %s90, %s91
      %p95 = pneg %p89
      %p96 = scmp.eq.s32.totalorder %s14, 1
      %p97 = por %p95, %p96
      %p98 = scmp.ne.s32.totalorder %s90, %s93
      %p99 = scmp.eq.s32.totalorder %s14, 0
      %p100 = por %p98, %p99
      %p101 = scmp.ne.s32.totalorder %s90, %s93
      %p102 = scmp.eq.s32.totalorder %s19, 1
      %p103 = por %p101, %p102
      %p104 = scmp.ne.s32.totalorder %s93, %s94
      %p105 = scmp.eq.s32.totalorder %s19, 0
      %p106 = por %p104, %p105
      %p107 = scmp.ne.s32.totalorder %s93, %s94
      %p108 = scmp.eq.s32.totalorder %s20, 1
      %p109 = por %p107, %p108
      %p111 = scmp.ne.s32.totalorder %s94, %s110
      %p112 = scmp.eq.s32.totalorder %s20, 0
      %p113 = por %p111, %p112
      %p114 = scmp.le.s32.totalorder 1, %s14
      %p115 = scmp.lt.s32.totalorder %s14, 3
      %p116 = pnand %p114, %p115
      %p117 = pneg %p116
      // Predicated region
      $region9: #{gpt_forward.23} parent=5 // pred_check
        _
      $region10: #{gpt_forward.23} parent=5 // pred_check_branch
        %119 = sbr.rel (%p116) target = $region12
      $region11: #{gpt_forward.23} parent=5 // pred_region
        %s120 = ssub.s32 %s14, 1
        // Predicated region
        $region13: #{gpt_forward.23} parent=11 // pred_check
          %p121 = pneg %p52
        $region14: #{gpt_forward.23} parent=11 // pred_check_branch
          %123 = sbr.rel (%p121) target = $region16
        $region15: #{gpt_forward.23} parent=11 // pred_region
          %s124 = smul.u32 8, %s23
          %p125 = scmp.lt.s32.totalorder %s124, 7
          %s126 = scalar_select %p125, %s124, 7
          %s127 = smul.addr %s126, 4
          %s128 = scalar_lea.vmem %s0, %s127
          %s129 = smul.u32 8, %s23
        $region16: #{gpt_forward.23} parent=11 // pred_fallthru
          _
      $region12: #{gpt_forward.23} parent=5 // pred_fallthru
        _
      %p130 = scmp.lt.s32.totalorder %s14, 2
      // Predicated region
      $region17: #{gpt_forward.23} parent=5 // pred_check
        %p131 = pneg %p130
      $region18: #{gpt_forward.23} parent=5 // pred_check_branch
        %133 = sbr.rel (%p131) target = $region20
      $region19: #{gpt_forward.23} parent=5 // pred_region
        // Predicated region
        $region21: #{gpt_forward.23} parent=19 // pred_check
          %p134 = pneg %p72
        $region22: #{gpt_forward.23} parent=19 // pred_check_branch
          %136 = sbr.rel (%p134) target = $region24
        $region23: #{gpt_forward.23} parent=19 // pred_region
          %s137 = sand.u32 %s62, 1
          %s138 = scalar_lea.sflag [#allocation3], %s137
          %s139 = sand.u32 %s62, 1
          %s140 = smul.addr %s139, 128
          %s141 = scalar_lea.vmem [#allocation2], %s140
          %s142 = smul.u32 2, %s22
          %144 = vsyncadd %s138, 0
          %s145 = smul.addr %s142, 4
          %s146 = scalar_lea.hbm %s1, %s145
          %s147 = sshll.u32 %s146, 4
          %s148 = int_to_ptr.hbm [resolvable:$true] %s147
          %s149 = sshll.u32 %s141, 4
          %s150 = int_to_ptr.vmem [resolvable:$true] %s149
          %155 = dma.hbm_to_vmem [thread:$0]  %s148, 2048, %s150, %s138, 256, 128, 8
        $region24: #{gpt_forward.23} parent=19 // pred_fallthru
          _
      $region20: #{gpt_forward.23} parent=5 // pred_fallthru
        _
      %p156 = scmp.le.s32.totalorder 1, %s14
      %p157 = scmp.lt.s32.totalorder %s14, 3
      %p158 = pnand %p156, %p157
      %p159 = pneg %p158
      // Predicated region
      $region25: #{gpt_forward.23} parent=5 // pred_check
        _
      $region26: #{gpt_forward.23} parent=5 // pred_check_branch
        %161 = sbr.rel (%p158) target = $region28
      $region27: #{gpt_forward.23} parent=5 // pred_region
        %s162 = ssub.s32 %s14, 1
        %s163 = sand.u32 %s65, 1
        %s164 = scalar_lea.sflag [#allocation3], %s163
        %s165 = sand.u32 %s65, 1
        %s166 = smul.addr %s165, 128
        %s167 = scalar_lea.vmem [#allocation2], %s166
        // Predicated region
        $region29: #{gpt_forward.23} parent=27 // pred_check
          %p168 = pneg %p78
        $region30: #{gpt_forward.23} parent=27 // pred_check_branch
          %170 = sbr.rel (%p168) target = $region32
        $region31: #{gpt_forward.23} parent=27 // pred_region
          %172 = dma.done %s164, 2048
        $region32: #{gpt_forward.23} parent=27 // pred_fallthru
          _
        %s173 = smul.u32 8, %s23
        %p174 = scmp.lt.s32.totalorder %s173, 7
        %s175 = scalar_select %p174, %s173, 7
        %s176 = smul.addr %s175, 4
        %s177 = scalar_lea.vmem %s0, %s176
        %p178 = pneg %p52
        %p179 = pneg %p49
        %s180 = sand.u32 %s65, 1
        %s181 = scalar_lea.sflag [#allocation3], %s180
        %s182 = sand.u32 %s65, 1
        %s183 = smul.addr %s182, 128
        %s184 = scalar_lea.vmem [#allocation2], %s183
        %p185 = pneg %p78
        %p186 = pneg %p75
        %p187 = pneg %p106
        %p188 = pneg %p103
        %s189 = sand.u32 %s93, 1
        %s190 = scalar_lea.sflag [#allocation4], %s189
        %s191 = sand.u32 %s93, 1
        %s192 = smul.addr %s191, 128
        %s193 = scalar_lea.vmem [#allocation5], %s192
        %s194 = smul.u32 8, %s23
        %p195 = scmp.lt.s32.totalorder %s194, 7
        %s196 = scalar_select %p195, %s194, 7
        %s197 = smul.addr %s196, 4
        %s198 = scalar_lea.vmem %s0, %s197
        %s199 = smul.u32 8, %s23
        %s200 = smul.u32 2, %s24
        %s201 = smul.u32 8, %s23
        %s202 = smul.u32 2, %s24
        %v203 = vld [vmem:[%s198] sm:$0xf]
        %v204 = vld [vmem:[%s198 + $0x4] sm:$0xf]
        %v205 = vld [vmem:[%s198 + $0x8] sm:$0xf]
        %v206 = vld [vmem:[%s198 + $0xc] sm:$0xf]
        %v207 = vld [vmem:[%s198 + $0x10] sm:$0xf]
        %v208 = vld [vmem:[%s198 + $0x14] sm:$0xf]
        %v209 = vld [vmem:[%s198 + $0x18] sm:$0xf]
        %v210 = vld [vmem:[%s198 + $0x1c] sm:$0xf]
        %v211 = vld [vmem:[%s167] sm:$0xff]
        %v212 = vld [vmem:[%s167 + $0x8] sm:$0xff]
        %v213 = vld [vmem:[%s167 + $0x10] sm:$0xff]
        %v214 = vld [vmem:[%s167 + $0x18] sm:$0xff]
        %v215 = vld [vmem:[%s167 + $0x20] sm:$0xff]
        %v216 = vld [vmem:[%s167 + $0x28] sm:$0xff]
        %v217 = vld [vmem:[%s167 + $0x30] sm:$0xff]
        %v218 = vld [vmem:[%s167 + $0x38] sm:$0xff]
        %v219 = vld [vmem:[%s167 + $0x40] sm:$0xff]
        %v220 = vld [vmem:[%s167 + $0x48] sm:$0xff]
        %v221 = vld [vmem:[%s167 + $0x50] sm:$0xff]
        %v222 = vld [vmem:[%s167 + $0x58] sm:$0xff]
        %v223 = vld [vmem:[%s167 + $0x60] sm:$0xff]
        %v224 = vld [vmem:[%s167 + $0x68] sm:$0xff]
        %v225 = vld [vmem:[%s167 + $0x70] sm:$0xff]
        %v226 = vld [vmem:[%s167 + $0x78] sm:$0xff]
        %v235 = vunpack.c.l.b16 %v203
        %v236 = vunpack.c.l.b16 %v204
        %v237 = vunpack.c.l.b16 %v205
        %v238 = vunpack.c.l.b16 %v206
        %v239 = vunpack.c.l.b16 %v207
        %v240 = vunpack.c.l.b16 %v208
        %v241 = vunpack.c.l.b16 %v209
        %v242 = vunpack.c.l.b16 %v210
        %v243 = vpack.c.b16 %v236, %v235
        %v244 = vpack.c.b16 %v238, %v237
        %v245 = vpack.c.b16 %v240, %v239
        %v246 = vpack.c.b16 %v242, %v241
        %v267 = vunpack.c.l.b16 %v211
        %v268 = vunpack.c.h.b16 %v211
        %v269 = vunpack.c.l.b16 %v212
        %v270 = vunpack.c.h.b16 %v212
        %v271 = vunpack.c.l.b16 %v213
        %v272 = vunpack.c.h.b16 %v213
        %v273 = vunpack.c.l.b16 %v214
        %v274 = vunpack.c.h.b16 %v214
        %v275 = vunpack.c.l.b16 %v215
        %v276 = vunpack.c.h.b16 %v215
        %v277 = vunpack.c.l.b16 %v216
        %v278 = vunpack.c.h.b16 %v216
        %v279 = vunpack.c.l.b16 %v217
        %v280 = vunpack.c.h.b16 %v217
        %v281 = vunpack.c.l.b16 %v218
        %v282 = vunpack.c.h.b16 %v218
        %v283 = vunpack.c.l.b16 %v219
        %v284 = vunpack.c.h.b16 %v219
        %v285 = vunpack.c.l.b16 %v220
        %v286 = vunpack.c.h.b16 %v220
        %v287 = vunpack.c.l.b16 %v221
        %v288 = vunpack.c.h.b16 %v221
        %v289 = vunpack.c.l.b16 %v222
        %v290 = vunpack.c.h.b16 %v222
        %v291 = vunpack.c.l.b16 %v223
        %v292 = vunpack.c.h.b16 %v223
        %v293 = vunpack.c.l.b16 %v224
        %v294 = vunpack.c.h.b16 %v224
        %v295 = vunpack.c.l.b16 %v225
        %v296 = vunpack.c.h.b16 %v225
        %v297 = vunpack.c.l.b16 %v226
        %v298 = vunpack.c.h.b16 %v226
        %v299 = vpack.c.b16 %v269, %v267
        %v300 = vpack.c.b16 %v270, %v268
        %v301 = vpack.c.b16 %v273, %v271
        %v302 = vpack.c.b16 %v274, %v272
        %v303 = vpack.c.b16 %v277, %v275
        %v304 = vpack.c.b16 %v278, %v276
        %v305 = vpack.c.b16 %v281, %v279
        %v306 = vpack.c.b16 %v282, %v280
        %v307 = vpack.c.b16 %v285, %v283
        %v308 = vpack.c.b16 %v286, %v284
        %v309 = vpack.c.b16 %v289, %v287
        %v310 = vpack.c.b16 %v290, %v288
        %v311 = vpack.c.b16 %v293, %v291
        %v312 = vpack.c.b16 %v294, %v292
        %v313 = vpack.c.b16 %v297, %v295
        %v314 = vpack.c.b16 %v298, %v296
        %331 = vmatpush.bf16.msra.mxu0 %v313
        %332 = vmatpush.bf16.msra.mxu0 %v311
        %333 = vmatpush.bf16.msra.mxu0 %v309
        %334 = vmatpush.bf16.msra.mxu0 %v307
        %335 = vmatpush.bf16.msra.mxu0 %v305
        %336 = vmatpush.bf16.msra.mxu0 %v303
        %337 = vmatpush.bf16.msra.mxu0 %v301
        %338 = vmatpush.bf16.msra.mxu0 %v299
        %339 = vmatmul.bf16.gmra.mxu0 %v243
        %v340 = vpop.f32.mrf.mxu0
        %v341 = vadd.f32 0.0, %v340
        %v342 = vpop.f32.mrf.mxu0
        %v343 = vadd.f32 0.0, %v342
        %344 = vmatmul.bf16.gmra.mxu0 %v244
        %v345 = vpop.f32.mrf.mxu0
        %v346 = vadd.f32 0.0, %v345
        %v347 = vpop.f32.mrf.mxu0
        %v348 = vadd.f32 0.0, %v347
        %349 = vmatmul.bf16.gmra.mxu0 %v245
        %v350 = vpop.f32.mrf.mxu0
        %v351 = vadd.f32 0.0, %v350
        %v352 = vpop.f32.mrf.mxu0
        %v353 = vadd.f32 0.0, %v352
        %354 = vmatmul.bf16.gmra.mxu0 %v246
        %v355 = vpop.f32.mrf.mxu0
        %v356 = vadd.f32 0.0, %v355
        %v357 = vpop.f32.mrf.mxu0
        %v358 = vadd.f32 0.0, %v357
        %359 = vdwg.mxu0
        %360 = vmatpush.bf16.msra.mxu0 %v314
        %361 = vmatpush.bf16.msra.mxu0 %v312
        %362 = vmatpush.bf16.msra.mxu0 %v310
        %363 = vmatpush.bf16.msra.mxu0 %v308
        %364 = vmatpush.bf16.msra.mxu0 %v306
        %365 = vmatpush.bf16.msra.mxu0 %v304
        %366 = vmatpush.bf16.msra.mxu0 %v302
        %367 = vmatpush.bf16.msra.mxu0 %v300
        %368 = vmatmul.bf16.gmra.mxu0 %v243
        %v369 = vpop.f32.mrf.mxu0
        %v370 = vadd.f32 0.0, %v369
        %v371 = vpop.f32.mrf.mxu0
        %v372 = vadd.f32 0.0, %v371
        %373 = vmatmul.bf16.gmra.mxu0 %v244
        %v374 = vpop.f32.mrf.mxu0
        %v375 = vadd.f32 0.0, %v374
        %v376 = vpop.f32.mrf.mxu0
        %v377 = vadd.f32 0.0, %v376
        %378 = vmatmul.bf16.gmra.mxu0 %v245
        %v379 = vpop.f32.mrf.mxu0
        %v380 = vadd.f32 0.0, %v379
        %v381 = vpop.f32.mrf.mxu0
        %v382 = vadd.f32 0.0, %v381
        %383 = vmatmul.bf16.gmra.mxu0 %v246
        %v384 = vpop.f32.mrf.mxu0
        %v385 = vadd.f32 0.0, %v384
        %v386 = vpop.f32.mrf.mxu0
        %v387 = vadd.f32 0.0, %v386
        %388 = vdwg.mxu0
        %389 = vst [vmem:[%s193] sm:$0xff] %v341
        %390 = vst [vmem:[%s193 + $0x8] sm:$0xff] %v370
        %391 = vst [vmem:[%s193 + $0x10] sm:$0xff] %v343
        %392 = vst [vmem:[%s193 + $0x18] sm:$0xff] %v372
        %393 = vst [vmem:[%s193 + $0x20] sm:$0xff] %v346
        %394 = vst [vmem:[%s193 + $0x28] sm:$0xff] %v375
        %395 = vst [vmem:[%s193 + $0x30] sm:$0xff] %v348
        %396 = vst [vmem:[%s193 + $0x38] sm:$0xff] %v377
        %397 = vst [vmem:[%s193 + $0x40] sm:$0xff] %v351
        %398 = vst [vmem:[%s193 + $0x48] sm:$0xff] %v380
        %399 = vst [vmem:[%s193 + $0x50] sm:$0xff] %v353
        %400 = vst [vmem:[%s193 + $0x58] sm:$0xff] %v382
        %401 = vst [vmem:[%s193 + $0x60] sm:$0xff] %v356
        %402 = vst [vmem:[%s193 + $0x68] sm:$0xff] %v385
        %403 = vst [vmem:[%s193 + $0x70] sm:$0xff] %v358
        %404 = vst [vmem:[%s193 + $0x78] sm:$0xff] %v387
        %s405 = sand.u32 %s93, 1
        %s406 = scalar_lea.sflag [#allocation4], %s405
        %s407 = sand.u32 %s93, 1
        %s408 = smul.addr %s407, 128
        %s409 = scalar_lea.vmem [#allocation5], %s408
        // Predicated region
        $region33: #{gpt_forward.23} parent=27 // pred_check
          %p410 = pneg %p103
        $region34: #{gpt_forward.23} parent=27 // pred_check_branch
          %412 = sbr.rel (%p410) target = $region36
        $region35: #{gpt_forward.23} parent=27 // pred_region
          %s413 = smul.u32 8, %s23
          %s414 = smul.u32 2, %s24
          %416 = vsyncadd %s406, 0
          %s417 = smul.addr %s413, 4
          %s418 = sadd.s32 %s414, %s417
          %s419 = smul.addr %s418, 8
          %s420 = scalar_lea.hbm %s2, %s419
          %s421 = sshll.u32 %s409, 4
          %s422 = int_to_ptr.vmem [resolvable:$true] %s421
          %s423 = sshll.u32 %s420, 4
          %s424 = int_to_ptr.hbm [resolvable:$true] %s423
          %429 = dma.vmem_to_hbm [thread:$0]  %s422, 2048, %s424, %s406, 256, 512, 16
        $region36: #{gpt_forward.23} parent=27 // pred_fallthru
          _
      $region28: #{gpt_forward.23} parent=5 // pred_fallthru
        _
      %p430 = scmp.le.s32.totalorder 2, %s14
      // Predicated region
      $region37: #{gpt_forward.23} parent=5 // pred_check
        %p431 = pneg %p430
      $region38: #{gpt_forward.23} parent=5 // pred_check_branch
        %433 = sbr.rel (%p431) target = $region40
      $region39: #{gpt_forward.23} parent=5 // pred_region
        %s434 = ssub.s32 %s14, 2
        // Predicated region
        $region41: #{gpt_forward.23} parent=39 // pred_check
          %p435 = pneg %p109
        $region42: #{gpt_forward.23} parent=39 // pred_check_branch
          %437 = sbr.rel (%p435) target = $region44
        $region43: #{gpt_forward.23} parent=39 // pred_region
          %s438 = sand.u32 %s94, 1
          %s439 = scalar_lea.sflag [#allocation4], %s438
          %s440 = sand.u32 %s94, 1
          %s441 = smul.addr %s440, 128
          %s442 = scalar_lea.vmem [#allocation5], %s441
          %444 = dma.done %s439, 2048
        $region44: #{gpt_forward.23} parent=39 // pred_fallthru
          _
      $region40: #{gpt_forward.23} parent=5 // pred_fallthru
        _
    $region6: #{gpt_forward.23} parent=1 // loop_footer
      %s18 = sadd.s32 1, %s14
    $region7: #{gpt_forward.23} parent=1 // loop_footer_branch
      %13 = sbr.rel target = $region3
    $region8: #{gpt_forward.23} parent=1 // loop_exit
      _
    %445 = vsyncpa [#allocation3], 1
    %s446 = scalar_lea.sflag [#allocation3], 1
    %447 = vsyncpa %s446, 1
    %448 = vsyncpa [#allocation4], 1
    %s449 = scalar_lea.sflag [#allocation4], 1
    %450 = vsyncpa %s449, 1

// kernel: gpt_forward.16
$region0: #{gpt_forward.16}
  #allocation0 [shape = 'u32[]', space=smem, size = 0x4, offset = 0x4, fixed_abs, tag = 'smem constant byte address 0x4 - core index']
  #allocation1 [shape = 'u32[72,128]{1,0:T(1,128)}', space=vmem, size = 0x9000, scoped, tag = 'internal scratch']
  %s0 = inlined_call_operand.vmem [shape: bf16[64,512], index: 0, kind: input, shape index: {}]
  %s1 = inlined_call_operand.vmem [shape: bf16[512,128], index: 1, kind: input, shape index: {}]
  %s2 = inlined_call_operand.vmem [shape: f32[1,128], index: 2, kind: input, shape index: {}]
  %s3 = inlined_call_operand.vmem [shape: f32[64,128], index: 3, kind: input, shape index: {}]
  %s4 = inlined_call_operand.vmem [shape: f32[64,128], index: 4, kind: output, shape index: {}]
  %s5 = sld [smem:[#allocation0]]
  $region26: #{gpt_forward.16} parent=0
    _
  %s7 = ssub.s32 1, %s5
  %s8 = scalar_select 0, %s7, %s5
  // Predicated region
  $region2: #{gpt_forward.16} parent=0 // pred_check
    _
  $region3: #{gpt_forward.16} parent=0 // pred_check_branch
    %10 = sbr.rel (0) target = $region5
  $region4: #{gpt_forward.16} parent=0 // pred_region
    _
  $region5: #{gpt_forward.16} parent=0 // pred_fallthru
    _
  // Predicated region
  $region6: #{gpt_forward.16} parent=0 // pred_check
    _
  $region7: #{gpt_forward.16} parent=0 // pred_check_branch
    %12 = sbr.rel (0) target = $region9
  $region8: #{gpt_forward.16} parent=0 // pred_region
    _
  $region9: #{gpt_forward.16} parent=0 // pred_fallthru
    _
  // Predicated region
  $region10: #{gpt_forward.16} parent=0 // pred_check
    _
  $region11: #{gpt_forward.16} parent=0 // pred_check_branch
    %14 = sbr.rel (0) target = $region13
  $region12: #{gpt_forward.16} parent=0 // pred_region
    _
  $region13: #{gpt_forward.16} parent=0 // pred_fallthru
    _
  // Predicated region
  $region14: #{gpt_forward.16} parent=0 // pred_check
    _
  $region15: #{gpt_forward.16} parent=0 // pred_check_branch
    %16 = sbr.rel (0) target = $region17
  $region16: #{gpt_forward.16} parent=0 // pred_region
    _
  $region17: #{gpt_forward.16} parent=0 // pred_fallthru
    _
  %v17 = vld [vmem:[%s0] sm:$0xff]
  %v18 = vld [vmem:[%s0 + $0x8] sm:$0xff]
  %v19 = vld [vmem:[%s0 + $0x10] sm:$0xff]
  %v20 = vld [vmem:[%s0 + $0x18] sm:$0xff]
  %v21 = vld [vmem:[%s0 + $0x20] sm:$0xff]
  %v22 = vld [vmem:[%s0 + $0x28] sm:$0xff]
  %v23 = vld [vmem:[%s0 + $0x30] sm:$0xff]
  %v24 = vld [vmem:[%s0 + $0x38] sm:$0xff]
  %v25 = vld [vmem:[%s0 + $0x40] sm:$0xff]
  %v26 = vld [vmem:[%s0 + $0x48] sm:$0xff]
  %v27 = vld [vmem:[%s0 + $0x50] sm:$0xff]
  %v28 = vld [vmem:[%s0 + $0x58] sm:$0xff]
  %v29 = vld [vmem:[%s0 + $0x60] sm:$0xff]
  %v30 = vld [vmem:[%s0 + $0x68] sm:$0xff]
  %v31 = vld [vmem:[%s0 + $0x70] sm:$0xff]
  %v32 = vld [vmem:[%s0 + $0x78] sm:$0xff]
  %v33 = vld [vmem:[%s1] sm:$0xf]
  %v34 = vld [vmem:[%s1 + $0x4] sm:$0xf]
  %v35 = vld [vmem:[%s1 + $0x8] sm:$0xf]
  %v36 = vld [vmem:[%s1 + $0xc] sm:$0xf]
  %v37 = vld [vmem:[%s1 + $0x10] sm:$0xf]
  %v38 = vld [vmem:[%s1 + $0x14] sm:$0xf]
  %v39 = vld [vmem:[%s1 + $0x18] sm:$0xf]
  %v40 = vld [vmem:[%s1 + $0x1c] sm:$0xf]
  %v41 = vld [vmem:[%s1 + $0x20] sm:$0xf]
  %v42 = vld [vmem:[%s1 + $0x24] sm:$0xf]
  %v43 = vld [vmem:[%s1 + $0x28] sm:$0xf]
  %v44 = vld [vmem:[%s1 + $0x2c] sm:$0xf]
  %v45 = vld [vmem:[%s1 + $0x30] sm:$0xf]
  %v46 = vld [vmem:[%s1 + $0x34] sm:$0xf]
  %v47 = vld [vmem:[%s1 + $0x38] sm:$0xf]
  %v48 = vld [vmem:[%s1 + $0x3c] sm:$0xf]
  %v49 = vld [vmem:[%s1 + $0x40] sm:$0xf]
  %v50 = vld [vmem:[%s1 + $0x44] sm:$0xf]
  %v51 = vld [vmem:[%s1 + $0x48] sm:$0xf]
  %v52 = vld [vmem:[%s1 + $0x4c] sm:$0xf]
  %v53 = vld [vmem:[%s1 + $0x50] sm:$0xf]
  %v54 = vld [vmem:[%s1 + $0x54] sm:$0xf]
  %v55 = vld [vmem:[%s1 + $0x58] sm:$0xf]
  %v56 = vld [vmem:[%s1 + $0x5c] sm:$0xf]
  %v57 = vld [vmem:[%s1 + $0x60] sm:$0xf]
  %v58 = vld [vmem:[%s1 + $0x64] sm:$0xf]
  %v59 = vld [vmem:[%s1 + $0x68] sm:$0xf]
  %v60 = vld [vmem:[%s1 + $0x6c] sm:$0xf]
  %v61 = vld [vmem:[%s1 + $0x70] sm:$0xf]
  %v62 = vld [vmem:[%s1 + $0x74] sm:$0xf]
  %v63 = vld [vmem:[%s1 + $0x78] sm:$0xf]
  %v64 = vld [vmem:[%s1 + $0x7c] sm:$0xf]
  %v65 = vld [vmem:[%s1 + $0x80] sm:$0xf]
  %v66 = vld [vmem:[%s1 + $0x84] sm:$0xf]
  %v67 = vld [vmem:[%s1 + $0x88] sm:$0xf]
  %v68 = vld [vmem:[%s1 + $0x8c] sm:$0xf]
  %v69 = vld [vmem:[%s1 + $0x90] sm:$0xf]
  %v70 = vld [vmem:[%s1 + $0x94] sm:$0xf]
  %v71 = vld [vmem:[%s1 + $0x98] sm:$0xf]
  %v72 = vld [vmem:[%s1 + $0x9c] sm:$0xf]
  %v73 = vld [vmem:[%s1 + $0xa0] sm:$0xf]
  %v74 = vld [vmem:[%s1 + $0xa4] sm:$0xf]
  %v75 = vld [vmem:[%s1 + $0xa8] sm:$0xf]
  %v76 = vld [vmem:[%s1 + $0xac] sm:$0xf]
  %v77 = vld [vmem:[%s1 + $0xb0] sm:$0xf]
  %v78 = vld [vmem:[%s1 + $0xb4] sm:$0xf]
  %v79 = vld [vmem:[%s1 + $0xb8] sm:$0xf]
  %v80 = vld [vmem:[%s1 + $0xbc] sm:$0xf]
  %v81 = vld [vmem:[%s1 + $0xc0] sm:$0xf]
  %v82 = vld [vmem:[%s1 + $0xc4] sm:$0xf]
  %v83 = vld [vmem:[%s1 + $0xc8] sm:$0xf]
  %v84 = vld [vmem:[%s1 + $0xcc] sm:$0xf]
  %v85 = vld [vmem:[%s1 + $0xd0] sm:$0xf]
  %v86 = vld [vmem:[%s1 + $0xd4] sm:$0xf]
  %v87 = vld [vmem:[%s1 + $0xd8] sm:$0xf]
  %v88 = vld [vmem:[%s1 + $0xdc] sm:$0xf]
  %v89 = vld [vmem:[%s1 + $0xe0] sm:$0xf]
  %v90 = vld [vmem:[%s1 + $0xe4] sm:$0xf]
  %v91 = vld [vmem:[%s1 + $0xe8] sm:$0xf]
  %v92 = vld [vmem:[%s1 + $0xec] sm:$0xf]
  %v93 = vld [vmem:[%s1 + $0xf0] sm:$0xf]
  %v94 = vld [vmem:[%s1 + $0xf4] sm:$0xf]
  %v95 = vld [vmem:[%s1 + $0xf8] sm:$0xf]
  %v96 = vld [vmem:[%s1 + $0xfc] sm:$0xf]
  %v97 = vld [vmem:[%s2] sm:$0x1]
  %v99 = vperm.slane %v97, 0
  %v117 = vunpack.c.l.b16 %v17
  %v118 = vunpack.c.h.b16 %v17
  %v119 = vunpack.c.l.b16 %v18
  %v120 = vunpack.c.h.b16 %v18
  %v121 = vunpack.c.l.b16 %v19
  %v122 = vunpack.c.h.b16 %v19
  %v123 = vunpack.c.l.b16 %v20
  %v124 = vunpack.c.h.b16 %v20
  %v125 = vunpack.c.l.b16 %v21
  %v126 = vunpack.c.h.b16 %v21
  %v127 = vunpack.c.l.b16 %v22
  %v128 = vunpack.c.h.b16 %v22
  %v129 = vunpack.c.l.b16 %v23
  %v130 = vunpack.c.h.b16 %v23
  %v131 = vunpack.c.l.b16 %v24
  %v132 = vunpack.c.h.b16 %v24
  %v133 = vunpack.c.l.b16 %v25
  %v134 = vunpack.c.h.b16 %v25
  %v135 = vunpack.c.l.b16 %v26
  %v136 = vunpack.c.h.b16 %v26
  %v137 = vunpack.c.l.b16 %v27
  %v138 = vunpack.c.h.b16 %v27
  %v139 = vunpack.c.l.b16 %v28
  %v140 = vunpack.c.h.b16 %v28
  %v141 = vunpack.c.l.b16 %v29
  %v142 = vunpack.c.h.b16 %v29
  %v143 = vunpack.c.l.b16 %v30
  %v144 = vunpack.c.h.b16 %v30
  %v145 = vunpack.c.l.b16 %v31
  %v146 = vunpack.c.h.b16 %v31
  %v147 = vunpack.c.l.b16 %v32
  %v148 = vunpack.c.h.b16 %v32
  %v149 = vpack.c.b16 %v121, %v117
  %v150 = vpack.c.b16 %v122, %v118
  %v151 = vpack.c.b16 %v123, %v119
  %v152 = vpack.c.b16 %v124, %v120
  %v153 = vpack.c.b16 %v129, %v125
  %v154 = vpack.c.b16 %v130, %v126
  %v155 = vpack.c.b16 %v131, %v127
  %v156 = vpack.c.b16 %v132, %v128
  %v157 = vpack.c.b16 %v137, %v133
  %v158 = vpack.c.b16 %v138, %v134
  %v159 = vpack.c.b16 %v139, %v135
  %v160 = vpack.c.b16 %v140, %v136
  %v161 = vpack.c.b16 %v145, %v141
  %v162 = vpack.c.b16 %v146, %v142
  %v163 = vpack.c.b16 %v147, %v143
  %v164 = vpack.c.b16 %v148, %v144
  %v245 = vunpack.c.l.b16 %v33
  %v246 = vunpack.c.l.b16 %v34
  %v247 = vunpack.c.l.b16 %v35
  %v248 = vunpack.c.l.b16 %v36
  %v249 = vunpack.c.l.b16 %v37
  %v250 = vunpack.c.l.b16 %v38
  %v251 = vunpack.c.l.b16 %v39
  %v252 = vunpack.c.l.b16 %v40
  %v253 = vunpack.c.l.b16 %v41
  %v254 = vunpack.c.l.b16 %v42
  %v255 = vunpack.c.l.b16 %v43
  %v256 = vunpack.c.l.b16 %v44
  %v257 = vunpack.c.l.b16 %v45
  %v258 = vunpack.c.l.b16 %v46
  %v259 = vunpack.c.l.b16 %v47
  %v260 = vunpack.c.l.b16 %v48
  %v261 = vunpack.c.l.b16 %v49
  %v262 = vunpack.c.l.b16 %v50
  %v263 = vunpack.c.l.b16 %v51
  %v264 = vunpack.c.l.b16 %v52
  %v265 = vunpack.c.l.b16 %v53
  %v266 = vunpack.c.l.b16 %v54
  %v267 = vunpack.c.l.b16 %v55
  %v268 = vunpack.c.l.b16 %v56
  %v269 = vunpack.c.l.b16 %v57
  %v270 = vunpack.c.l.b16 %v58
  %v271 = vunpack.c.l.b16 %v59
  %v272 = vunpack.c.l.b16 %v60
  %v273 = vunpack.c.l.b16 %v61
  %v274 = vunpack.c.l.b16 %v62
  %v275 = vunpack.c.l.b16 %v63
  %v276 = vunpack.c.l.b16 %v64
  %v277 = vunpack.c.l.b16 %v65
  %v278 = vunpack.c.l.b16 %v66
  %v279 = vunpack.c.l.b16 %v67
  %v280 = vunpack.c.l.b16 %v68
  %v281 = vunpack.c.l.b16 %v69
  %v282 = vunpack.c.l.b16 %v70
  %v283 = vunpack.c.l.b16 %v71
  %v284 = vunpack.c.l.b16 %v72
  %v285 = vunpack.c.l.b16 %v73
  %v286 = vunpack.c.l.b16 %v74
  %v287 = vunpack.c.l.b16 %v75
  %v288 = vunpack.c.l.b16 %v76
  %v289 = vunpack.c.l.b16 %v77
  %v290 = vunpack.c.l.b16 %v78
  %v291 = vunpack.c.l.b16 %v79
  %v292 = vunpack.c.l.b16 %v80
  %v293 = vunpack.c.l.b16 %v81
  %v294 = vunpack.c.l.b16 %v82
  %v295 = vunpack.c.l.b16 %v83
  %v296 = vunpack.c.l.b16 %v84
  %v297 = vunpack.c.l.b16 %v85
  %v298 = vunpack.c.l.b16 %v86
  %v299 = vunpack.c.l.b16 %v87
  %v300 = vunpack.c.l.b16 %v88
  %v301 = vunpack.c.l.b16 %v89
  %v302 = vunpack.c.l.b16 %v90
  %v303 = vunpack.c.l.b16 %v91
  %v304 = vunpack.c.l.b16 %v92
  %v305 = vunpack.c.l.b16 %v93
  %v306 = vunpack.c.l.b16 %v94
  %v307 = vunpack.c.l.b16 %v95
  %v308 = vunpack.c.l.b16 %v96
  %v309 = vpack.c.b16 %v246, %v245
  %v310 = vpack.c.b16 %v248, %v247
  %v311 = vpack.c.b16 %v250, %v249
  %v312 = vpack.c.b16 %v252, %v251
  %v313 = vpack.c.b16 %v254, %v253
  %v314 = vpack.c.b16 %v256, %v255
  %v315 = vpack.c.b16 %v258, %v257
  %v316 = vpack.c.b16 %v260, %v259
  %v317 = vpack.c.b16 %v262, %v261
  %v318 = vpack.c.b16 %v264, %v263
  %v319 = vpack.c.b16 %v266, %v265
  %v320 = vpack.c.b16 %v268, %v267
  %v321 = vpack.c.b16 %v270, %v269
  %v322 = vpack.c.b16 %v272, %v271
  %v323 = vpack.c.b16 %v274, %v273
  %v324 = vpack.c.b16 %v276, %v275
  %v325 = vpack.c.b16 %v278, %v277
  %v326 = vpack.c.b16 %v280, %v279
  %v327 = vpack.c.b16 %v282, %v281
  %v328 = vpack.c.b16 %v284, %v283
  %v329 = vpack.c.b16 %v286, %v285
  %v330 = vpack.c.b16 %v288, %v287
  %v331 = vpack.c.b16 %v290, %v289
  %v332 = vpack.c.b16 %v292, %v291
  %v333 = vpack.c.b16 %v294, %v293
  %v334 = vpack.c.b16 %v296, %v295
  %v335 = vpack.c.b16 %v298, %v297
  %v336 = vpack.c.b16 %v300, %v299
  %v337 = vpack.c.b16 %v302, %v301
  %v338 = vpack.c.b16 %v304, %v303
  %v339 = vpack.c.b16 %v306, %v305
  %v340 = vpack.c.b16 %v308, %v307
  %373 = vmatpush.bf16.msra.mxu0 %v316
  %374 = vmatpush.bf16.msra.mxu0 %v315
  %375 = vmatpush.bf16.msra.mxu0 %v314
  %376 = vmatpush.bf16.msra.mxu0 %v313
  %377 = vmatpush.bf16.msra.mxu0 %v312
  %378 = vmatpush.bf16.msra.mxu0 %v311
  %379 = vmatpush.bf16.msra.mxu0 %v310
  %380 = vmatpush.bf16.msra.mxu0 %v309
  %381 = vmatmul.bf16.gmra.mxu0 %v149
  %v382 = vpop.f32.mrf.mxu0
  %v383 = vadd.f32 %v99, %v382
  %v384 = vpop.f32.mrf.mxu0
  %v385 = vadd.f32 %v99, %v384
  %386 = vmatmul.bf16.gmra.mxu0 %v153
  %v387 = vpop.f32.mrf.mxu0
  %v388 = vadd.f32 %v99, %v387
  %v389 = vpop.f32.mrf.mxu0
  %v390 = vadd.f32 %v99, %v389
  %391 = vmatmul.bf16.gmra.mxu0 %v157
  %v392 = vpop.f32.mrf.mxu0
  %v393 = vadd.f32 %v99, %v392
  %v394 = vpop.f32.mrf.mxu0
  %v395 = vadd.f32 %v99, %v394
  %396 = vmatmul.bf16.gmra.mxu0 %v161
  %v397 = vpop.f32.mrf.mxu0
  %v398 = vadd.f32 %v99, %v397
  %v399 = vpop.f32.mrf.mxu0
  %v400 = vadd.f32 %v99, %v399
  %401 = vdwg.mxu0
  %402 = vmatpush.bf16.msra.mxu0 %v324
  %403 = vmatpush.bf16.msra.mxu0 %v323
  %404 = vmatpush.bf16.msra.mxu0 %v322
  %405 = vmatpush.bf16.msra.mxu0 %v321
  %406 = vmatpush.bf16.msra.mxu0 %v320
  %407 = vmatpush.bf16.msra.mxu0 %v319
  %408 = vmatpush.bf16.msra.mxu0 %v318
  %409 = vmatpush.bf16.msra.mxu0 %v317
  %410 = vmatmul.bf16.gmra.mxu0 %v150
  %v411 = vpop.f32.mrf.mxu0
  %v412 = vadd.f32 %v383, %v411
  %v413 = vpop.f32.mrf.mxu0
  %v414 = vadd.f32 %v385, %v413
  %415 = vmatmul.bf16.gmra.mxu0 %v154
  %v416 = vpop.f32.mrf.mxu0
  %v417 = vadd.f32 %v388, %v416
  %v418 = vpop.f32.mrf.mxu0
  %v419 = vadd.f32 %v390, %v418
  %420 = vmatmul.bf16.gmra.mxu0 %v158
  %v421 = vpop.f32.mrf.mxu0
  %v422 = vadd.f32 %v393, %v421
  %v423 = vpop.f32.mrf.mxu0
  %v424 = vadd.f32 %v395, %v423
  %425 = vmatmul.bf16.gmra.mxu0 %v162
  %v426 = vpop.f32.mrf.mxu0
  %v427 = vadd.f32 %v398, %v426
  %v428 = vpop.f32.mrf.mxu0
  %v429 = vadd.f32 %v400, %v428
  %430 = vdwg.mxu0
  %431 = vmatpush.bf16.msra.mxu0 %v332
  %432 = vmatpush.bf16.msra.mxu0 %v331
  %433 = vmatpush.bf16.msra.mxu0 %v330
  %434 = vmatpush.bf16.msra.mxu0 %v329
  %435 = vmatpush.bf16.msra.mxu0 %v328
  %436 = vmatpush.bf16.msra.mxu0 %v327
  %437 = vmatpush.bf16.msra.mxu0 %v326
  %438 = vmatpush.bf16.msra.mxu0 %v325
  %439 = vmatmul.bf16.gmra.mxu0 %v151
  %v440 = vpop.f32.mrf.mxu0
  %v441 = vadd.f32 %v412, %v440
  %v442 = vpop.f32.mrf.mxu0
  %v443 = vadd.f32 %v414, %v442
  %444 = vmatmul.bf16.gmra.mxu0 %v155
  %v445 = vpop.f32.mrf.mxu0
  %v446 = vadd.f32 %v417, %v445
  %v447 = vpop.f32.mrf.mxu0
  %v448 = vadd.f32 %v419, %v447
  %449 = vmatmul.bf16.gmra.mxu0 %v159
  %v450 = vpop.f32.mrf.mxu0
  %v451 = vadd.f32 %v422, %v450
  %v452 = vpop.f32.mrf.mxu0
  %v453 = vadd.f32 %v424, %v452
  %454 = vmatmul.bf16.gmra.mxu0 %v163
  %v455 = vpop.f32.mrf.mxu0
  %v456 = vadd.f32 %v427, %v455
  %v457 = vpop.f32.mrf.mxu0
  %v458 = vadd.f32 %v429, %v457
  %459 = vdwg.mxu0
  %460 = vmatpush.bf16.msra.mxu0 %v340
  %461 = vmatpush.bf16.msra.mxu0 %v339
  %462 = vmatpush.bf16.msra.mxu0 %v338
  %463 = vmatpush.bf16.msra.mxu0 %v337
  %464 = vmatpush.bf16.msra.mxu0 %v336
  %465 = vmatpush.bf16.msra.mxu0 %v335
  %466 = vmatpush.bf16.msra.mxu0 %v334
  %467 = vmatpush.bf16.msra.mxu0 %v333
  %468 = vmatmul.bf16.gmra.mxu0 %v152
  %v469 = vpop.f32.mrf.mxu0
  %v470 = vadd.f32 %v441, %v469
  %v471 = vpop.f32.mrf.mxu0
  %v472 = vadd.f32 %v443, %v471
  %473 = vmatmul.bf16.gmra.mxu0 %v156
  %v474 = vpop.f32.mrf.mxu0
  %v475 = vadd.f32 %v446, %v474
  %v476 = vpop.f32.mrf.mxu0
  %v477 = vadd.f32 %v448, %v476
  %478 = vmatmul.bf16.gmra.mxu0 %v160
  %v479 = vpop.f32.mrf.mxu0
  %v480 = vadd.f32 %v451, %v479
  %v481 = vpop.f32.mrf.mxu0
  %v482 = vadd.f32 %v453, %v481
  %483 = vmatmul.bf16.gmra.mxu0 %v164
  %v484 = vpop.f32.mrf.mxu0
  %v485 = vadd.f32 %v456, %v484
  %v486 = vpop.f32.mrf.mxu0
  %v487 = vadd.f32 %v458, %v486
  %488 = vdwg.mxu0
  %v489 = vld [vmem:[%s3] sm:$0xff]
  %v490 = vld [vmem:[%s3 + $0x8] sm:$0xff]
  %v491 = vld [vmem:[%s3 + $0x10] sm:$0xff]
  %v492 = vld [vmem:[%s3 + $0x18] sm:$0xff]
  %v493 = vld [vmem:[%s3 + $0x20] sm:$0xff]
  %v494 = vld [vmem:[%s3 + $0x28] sm:$0xff]
  %v495 = vld [vmem:[%s3 + $0x30] sm:$0xff]
  %v496 = vld [vmem:[%s3 + $0x38] sm:$0xff]
  %v497 = vadd.f32 %v470, %v489
  %v498 = vadd.f32 %v472, %v490
  %v499 = vadd.f32 %v475, %v491
  %v500 = vadd.f32 %v477, %v492
  %v501 = vadd.f32 %v480, %v493
  %v502 = vadd.f32 %v482, %v494
  %v503 = vadd.f32 %v485, %v495
  %v504 = vadd.f32 %v487, %v496
  %505 = vst [vmem:[%s4] sm:$0xff] %v497
  %506 = vst [vmem:[%s4 + $0x8] sm:$0xff] %v498
  %507 = vst [vmem:[%s4 + $0x10] sm:$0xff] %v499
  %508 = vst [vmem:[%s4 + $0x18] sm:$0xff] %v500
  %509 = vst [vmem:[%s4 + $0x20] sm:$0xff] %v501
  %510 = vst [vmem:[%s4 + $0x28] sm:$0xff] %v502
  %511 = vst [vmem:[%s4 + $0x30] sm:$0xff] %v503
  %512 = vst [vmem:[%s4 + $0x38] sm:$0xff] %v504
  // Predicated region
  $region18: #{gpt_forward.16} parent=0 // pred_check
    _
  $region19: #{gpt_forward.16} parent=0 // pred_check_branch
    %514 = sbr.rel (0) target = $region21
  $region20: #{gpt_forward.16} parent=0 // pred_region
    _
  $region21: #{gpt_forward.16} parent=0 // pred_fallthru
    _
  // Predicated region
  $region22: #{gpt_forward.16} parent=0 // pred_check
    _
  $region23: #{gpt_forward.16} parent=0 // pred_check_branch
    %516 = sbr.rel (0) target = $region25
  $region24: #{gpt_forward.16} parent=0 // pred_region
    _
  $region25: #{gpt_forward.16} parent=0 // pred_fallthru
    _

// kernel: gpt_forward.21
$region0: #{gpt_forward.21}
  #allocation0 [shape = 'u32[]', space=smem, size = 0x4, offset = 0x4, fixed_abs, tag = 'smem constant byte address 0x4 - core index']
  #allocation1 [shape = 'u32[72,128]{1,0:T(1,128)}', space=vmem, size = 0x9000, scoped, tag = 'internal scratch']
  %s0 = inlined_call_operand.vmem [shape: bf16[64,512], index: 0, kind: input, shape index: {}]
  %s1 = inlined_call_operand.hbm [shape: bf16[512,128], index: 1, kind: input, shape index: {}]
  %s2 = inlined_call_operand.vmem [shape: f32[1,128], index: 2, kind: input, shape index: {}]
  %s3 = inlined_call_operand.vmem [shape: f32[64,128], index: 3, kind: input, shape index: {}]
  %s4 = inlined_call_operand.vmem [shape: f32[64,128], index: 4, kind: output, shape index: {}]
  %s5 = sld [smem:[#allocation0]]
  $region30: #{gpt_forward.21} parent=0
    _
  %s7 = ssub.s32 1, %s5
  %s8 = scalar_select 0, %s7, %s5
  $region1: #{gpt_forward.21} parent=0
    #allocation2 [shape = 'u8[131072]{0}', space=vmem, size = 0x20000, scoped, tag = 'input window, operand 1, single buffered']
    #allocation3 [shape = 's32[1]{0}', space=sflag, size = 0x4, scoped, tag = 'scoped memory for gpt_forward.21']
    %9 = vsyncpa [#allocation3], 0
    // Predicated region
    $region2: #{gpt_forward.21} parent=1 // pred_check
      _
    $region3: #{gpt_forward.21} parent=1 // pred_check_branch
      %11 = sbr.rel (0) target = $region5
    $region4: #{gpt_forward.21} parent=1 // pred_region
      _
    $region5: #{gpt_forward.21} parent=1 // pred_fallthru
      _
    // Predicated region
    $region6: #{gpt_forward.21} parent=1 // pred_check
      _
    $region7: #{gpt_forward.21} parent=1 // pred_check_branch
      %13 = sbr.rel (0) target = $region9
    $region8: #{gpt_forward.21} parent=1 // pred_region
      %15 = vsyncadd [#allocation3], 0
      %s16 = sshll.u32 %s1, 4
      %s17 = int_to_ptr.hbm [resolvable:$true] %s16
      %s18 = sshll.u32 [#allocation2], 4
      %s19 = int_to_ptr.vmem [resolvable:$true] %s18
      %24 = dma.hbm_to_vmem [thread:$0]  %s17, 4096, %s19, [#allocation3], 64, 64, 4
    $region9: #{gpt_forward.21} parent=1 // pred_fallthru
      _
    // Predicated region
    $region10: #{gpt_forward.21} parent=1 // pred_check
      _
    $region11: #{gpt_forward.21} parent=1 // pred_check_branch
      %26 = sbr.rel (0) target = $region13
    $region12: #{gpt_forward.21} parent=1 // pred_region
      _
    $region13: #{gpt_forward.21} parent=1 // pred_fallthru
      _
    // Predicated region
    $region14: #{gpt_forward.21} parent=1 // pred_check
      _
    $region15: #{gpt_forward.21} parent=1 // pred_check_branch
      %28 = sbr.rel (0) target = $region17
    $region16: #{gpt_forward.21} parent=1 // pred_region
      _
    $region17: #{gpt_forward.21} parent=1 // pred_fallthru
      _
    // Predicated region
    $region18: #{gpt_forward.21} parent=1 // pred_check
      _
    $region19: #{gpt_forward.21} parent=1 // pred_check_branch
      %30 = sbr.rel (0) target = $region21
    $region20: #{gpt_forward.21} parent=1 // pred_region
      %32 = dma.done [#allocation3], 4096
    $region21: #{gpt_forward.21} parent=1 // pred_fallthru
      _
    %v33 = vld [vmem:[%s0] sm:$0xff]
    %v34 = vld [vmem:[%s0 + $0x8] sm:$0xff]
    %v35 = vld [vmem:[%s0 + $0x10] sm:$0xff]
    %v36 = vld [vmem:[%s0 + $0x18] sm:$0xff]
    %v37 = vld [vmem:[%s0 + $0x20] sm:$0xff]
    %v38 = vld [vmem:[%s0 + $0x28] sm:$0xff]
    %v39 = vld [vmem:[%s0 + $0x30] sm:$0xff]
    %v40 = vld [vmem:[%s0 + $0x38] sm:$0xff]
    %v41 = vld [vmem:[%s0 + $0x40] sm:$0xff]
    %v42 = vld [vmem:[%s0 + $0x48] sm:$0xff]
    %v43 = vld [vmem:[%s0 + $0x50] sm:$0xff]
    %v44 = vld [vmem:[%s0 + $0x58] sm:$0xff]
    %v45 = vld [vmem:[%s0 + $0x60] sm:$0xff]
    %v46 = vld [vmem:[%s0 + $0x68] sm:$0xff]
    %v47 = vld [vmem:[%s0 + $0x70] sm:$0xff]
    %v48 = vld [vmem:[%s0 + $0x78] sm:$0xff]
    %v49 = vld [vmem:[#allocation2] sm:$0xf]
    %v50 = vld [vmem:[#allocation2 + $0x4] sm:$0xf]
    %v51 = vld [vmem:[#allocation2 + $0x8] sm:$0xf]
    %v52 = vld [vmem:[#allocation2 + $0xc] sm:$0xf]
    %v53 = vld [vmem:[#allocation2 + $0x10] sm:$0xf]
    %v54 = vld [vmem:[#allocation2 + $0x14] sm:$0xf]
    %v55 = vld [vmem:[#allocation2 + $0x18] sm:$0xf]
    %v56 = vld [vmem:[#allocation2 + $0x1c] sm:$0xf]
    %v57 = vld [vmem:[#allocation2 + $0x20] sm:$0xf]
    %v58 = vld [vmem:[#allocation2 + $0x24] sm:$0xf]
    %v59 = vld [vmem:[#allocation2 + $0x28] sm:$0xf]
    %v60 = vld [vmem:[#allocation2 + $0x2c] sm:$0xf]
    %v61 = vld [vmem:[#allocation2 + $0x30] sm:$0xf]
    %v62 = vld [vmem:[#allocation2 + $0x34] sm:$0xf]
    %v63 = vld [vmem:[#allocation2 + $0x38] sm:$0xf]
    %v64 = vld [vmem:[#allocation2 + $0x3c] sm:$0xf]
    %v65 = vld [vmem:[#allocation2 + $0x40] sm:$0xf]
    %v66 = vld [vmem:[#allocation2 + $0x44] sm:$0xf]
    %v67 = vld [vmem:[#allocation2 + $0x48] sm:$0xf]
    %v68 = vld [vmem:[#allocation2 + $0x4c] sm:$0xf]
    %v69 = vld [vmem:[#allocation2 + $0x50] sm:$0xf]
    %v70 = vld [vmem:[#allocation2 + $0x54] sm:$0xf]
    %v71 = vld [vmem:[#allocation2 + $0x58] sm:$0xf]
    %v72 = vld [vmem:[#allocation2 + $0x5c] sm:$0xf]
    %v73 = vld [vmem:[#allocation2 + $0x60] sm:$0xf]
    %v74 = vld [vmem:[#allocation2 + $0x64] sm:$0xf]
    %v75 = vld [vmem:[#allocation2 + $0x68] sm:$0xf]
    %v76 = vld [vmem:[#allocation2 + $0x6c] sm:$0xf]
    %v77 = vld [vmem:[#allocation2 + $0x70] sm:$0xf]
    %v78 = vld [vmem:[#allocation2 + $0x74] sm:$0xf]
    %v79 = vld [vmem:[#allocation2 + $0x78] sm:$0xf]
    %v80 = vld [vmem:[#allocation2 + $0x7c] sm:$0xf]
    %v81 = vld [vmem:[#allocation2 + $0x80] sm:$0xf]
    %v82 = vld [vmem:[#allocation2 + $0x84] sm:$0xf]
    %v83 = vld [vmem:[#allocation2 + $0x88] sm:$0xf]
    %v84 = vld [vmem:[#allocation2 + $0x8c] sm:$0xf]
    %v85 = vld [vmem:[#allocation2 + $0x90] sm:$0xf]
    %v86 = vld [vmem:[#allocation2 + $0x94] sm:$0xf]
    %v87 = vld [vmem:[#allocation2 + $0x98] sm:$0xf]
    %v88 = vld [vmem:[#allocation2 + $0x9c] sm:$0xf]
    %v89 = vld [vmem:[#allocation2 + $0xa0] sm:$0xf]
    %v90 = vld [vmem:[#allocation2 + $0xa4] sm:$0xf]
    %v91 = vld [vmem:[#allocation2 + $0xa8] sm:$0xf]
    %v92 = vld [vmem:[#allocation2 + $0xac] sm:$0xf]
    %v93 = vld [vmem:[#allocation2 + $0xb0] sm:$0xf]
    %v94 = vld [vmem:[#allocation2 + $0xb4] sm:$0xf]
    %v95 = vld [vmem:[#allocation2 + $0xb8] sm:$0xf]
    %v96 = vld [vmem:[#allocation2 + $0xbc] sm:$0xf]
    %v97 = vld [vmem:[#allocation2 + $0xc0] sm:$0xf]
    %v98 = vld [vmem:[#allocation2 + $0xc4] sm:$0xf]
    %v99 = vld [vmem:[#allocation2 + $0xc8] sm:$0xf]
    %v100 = vld [vmem:[#allocation2 + $0xcc] sm:$0xf]
    %v101 = vld [vmem:[#allocation2 + $0xd0] sm:$0xf]
    %v102 = vld [vmem:[#allocation2 + $0xd4] sm:$0xf]
    %v103 = vld [vmem:[#allocation2 + $0xd8] sm:$0xf]
    %v104 = vld [vmem:[#allocation2 + $0xdc] sm:$0xf]
    %v105 = vld [vmem:[#allocation2 + $0xe0] sm:$0xf]
    %v106 = vld [vmem:[#allocation2 + $0xe4] sm:$0xf]
    %v107 = vld [vmem:[#allocation2 + $0xe8] sm:$0xf]
    %v108 = vld [vmem:[#allocation2 + $0xec] sm:$0xf]
    %v109 = vld [vmem:[#allocation2 + $0xf0] sm:$0xf]
    %v110 = vld [vmem:[#allocation2 + $0xf4] sm:$0xf]
    %v111 = vld [vmem:[#allocation2 + $0xf8] sm:$0xf]
    %v112 = vld [vmem:[#allocation2 + $0xfc] sm:$0xf]
    %v113 = vld [vmem:[%s2] sm:$0x1]
    %v115 = vperm.slane %v113, 0
    %v133 = vunpack.c.l.b16 %v33
    %v134 = vunpack.c.h.b16 %v33
    %v135 = vunpack.c.l.b16 %v34
    %v136 = vunpack.c.h.b16 %v34
    %v137 = vunpack.c.l.b16 %v35
    %v138 = vunpack.c.h.b16 %v35
    %v139 = vunpack.c.l.b16 %v36
    %v140 = vunpack.c.h.b16 %v36
    %v141 = vunpack.c.l.b16 %v37
    %v142 = vunpack.c.h.b16 %v37
    %v143 = vunpack.c.l.b16 %v38
    %v144 = vunpack.c.h.b16 %v38
    %v145 = vunpack.c.l.b16 %v39
    %v146 = vunpack.c.h.b16 %v39
    %v147 = vunpack.c.l.b16 %v40
    %v148 = vunpack.c.h.b16 %v40
    %v149 = vunpack.c.l.b16 %v41
    %v150 = vunpack.c.h.b16 %v41
    %v151 = vunpack.c.l.b16 %v42
    %v152 = vunpack.c.h.b16 %v42
    %v153 = vunpack.c.l.b16 %v43
    %v154 = vunpack.c.h.b16 %v43
    %v155 = vunpack.c.l.b16 %v44
    %v156 = vunpack.c.h.b16 %v44
    %v157 = vunpack.c.l.b16 %v45
    %v158 = vunpack.c.h.b16 %v45
    %v159 = vunpack.c.l.b16 %v46
    %v160 = vunpack.c.h.b16 %v46
    %v161 = vunpack.c.l.b16 %v47
    %v162 = vunpack.c.h.b16 %v47
    %v163 = vunpack.c.l.b16 %v48
    %v164 = vunpack.c.h.b16 %v48
    %v165 = vpack.c.b16 %v137, %v133
    %v166 = vpack.c.b16 %v138, %v134
    %v167 = vpack.c.b16 %v139, %v135
    %v168 = vpack.c.b16 %v140, %v136
    %v169 = vpack.c.b16 %v145, %v141
    %v170 = vpack.c.b16 %v146, %v142
    %v171 = vpack.c.b16 %v147, %v143
    %v172 = vpack.c.b16 %v148, %v144
    %v173 = vpack.c.b16 %v153, %v149
    %v174 = vpack.c.b16 %v154, %v150
    %v175 = vpack.c.b16 %v155, %v151
    %v176 = vpack.c.b16 %v156, %v152
    %v177 = vpack.c.b16 %v161, %v157
    %v178 = vpack.c.b16 %v162, %v158
    %v179 = vpack.c.b16 %v163, %v159
    %v180 = vpack.c.b16 %v164, %v160
    %v261 = vunpack.c.l.b16 %v49
    %v262 = vunpack.c.l.b16 %v50
    %v263 = vunpack.c.l.b16 %v51
    %v264 = vunpack.c.l.b16 %v52
    %v265 = vunpack.c.l.b16 %v53
    %v266 = vunpack.c.l.b16 %v54
    %v267 = vunpack.c.l.b16 %v55
    %v268 = vunpack.c.l.b16 %v56
    %v269 = vunpack.c.l.b16 %v57
    %v270 = vunpack.c.l.b16 %v58
    %v271 = vunpack.c.l.b16 %v59
    %v272 = vunpack.c.l.b16 %v60
    %v273 = vunpack.c.l.b16 %v61
    %v274 = vunpack.c.l.b16 %v62
    %v275 = vunpack.c.l.b16 %v63
    %v276 = vunpack.c.l.b16 %v64
    %v277 = vunpack.c.l.b16 %v65
    %v278 = vunpack.c.l.b16 %v66
    %v279 = vunpack.c.l.b16 %v67
    %v280 = vunpack.c.l.b16 %v68
    %v281 = vunpack.c.l.b16 %v69
    %v282 = vunpack.c.l.b16 %v70
    %v283 = vunpack.c.l.b16 %v71
    %v284 = vunpack.c.l.b16 %v72
    %v285 = vunpack.c.l.b16 %v73
    %v286 = vunpack.c.l.b16 %v74
    %v287 = vunpack.c.l.b16 %v75
    %v288 = vunpack.c.l.b16 %v76
    %v289 = vunpack.c.l.b16 %v77
    %v290 = vunpack.c.l.b16 %v78
    %v291 = vunpack.c.l.b16 %v79
    %v292 = vunpack.c.l.b16 %v80
    %v293 = vunpack.c.l.b16 %v81
    %v294 = vunpack.c.l.b16 %v82
    %v295 = vunpack.c.l.b16 %v83
    %v296 = vunpack.c.l.b16 %v84
    %v297 = vunpack.c.l.b16 %v85
    %v298 = vunpack.c.l.b16 %v86
    %v299 = vunpack.c.l.b16 %v87
    %v300 = vunpack.c.l.b16 %v88
    %v301 = vunpack.c.l.b16 %v89
    %v302 = vunpack.c.l.b16 %v90
    %v303 = vunpack.c.l.b16 %v91
    %v304 = vunpack.c.l.b16 %v92
    %v305 = vunpack.c.l.b16 %v93
    %v306 = vunpack.c.l.b16 %v94
    %v307 = vunpack.c.l.b16 %v95
    %v308 = vunpack.c.l.b16 %v96
    %v309 = vunpack.c.l.b16 %v97
    %v310 = vunpack.c.l.b16 %v98
    %v311 = vunpack.c.l.b16 %v99
    %v312 = vunpack.c.l.b16 %v100
    %v313 = vunpack.c.l.b16 %v101
    %v314 = vunpack.c.l.b16 %v102
    %v315 = vunpack.c.l.b16 %v103
    %v316 = vunpack.c.l.b16 %v104
    %v317 = vunpack.c.l.b16 %v105
    %v318 = vunpack.c.l.b16 %v106
    %v319 = vunpack.c.l.b16 %v107
    %v320 = vunpack.c.l.b16 %v108
    %v321 = vunpack.c.l.b16 %v109
    %v322 = vunpack.c.l.b16 %v110
    %v323 = vunpack.c.l.b16 %v111
    %v324 = vunpack.c.l.b16 %v112
    %v325 = vpack.c.b16 %v262, %v261
    %v326 = vpack.c.b16 %v264, %v263
    %v327 = vpack.c.b16 %v266, %v265
    %v328 = vpack.c.b16 %v268, %v267
    %v329 = vpack.c.b16 %v270, %v269
    %v330 = vpack.c.b16 %v272, %v271
    %v331 = vpack.c.b16 %v274, %v273
    %v332 = vpack.c.b16 %v276, %v275
    %v333 = vpack.c.b16 %v278, %v277
    %v334 = vpack.c.b16 %v280, %v279
    %v335 = vpack.c.b16 %v282, %v281
    %v336 = vpack.c.b16 %v284, %v283
    %v337 = vpack.c.b16 %v286, %v285
    %v338 = vpack.c.b16 %v288, %v287
    %v339 = vpack.c.b16 %v290, %v289
    %v340 = vpack.c.b16 %v292, %v291
    %v341 = vpack.c.b16 %v294, %v293
    %v342 = vpack.c.b16 %v296, %v295
    %v343 = vpack.c.b16 %v298, %v297
    %v344 = vpack.c.b16 %v300, %v299
    %v345 = vpack.c.b16 %v302, %v301
    %v346 = vpack.c.b16 %v304, %v303
    %v347 = vpack.c.b16 %v306, %v305
    %v348 = vpack.c.b16 %v308, %v307
    %v349 = vpack.c.b16 %v310, %v309
    %v350 = vpack.c.b16 %v312, %v311
    %v351 = vpack.c.b16 %v314, %v313
    %v352 = vpack.c.b16 %v316, %v315
    %v353 = vpack.c.b16 %v318, %v317
    %v354 = vpack.c.b16 %v320, %v319
    %v355 = vpack.c.b16 %v322, %v321
    %v356 = vpack.c.b16 %v324, %v323
    %389 = vmatpush.bf16.msra.mxu0 %v332
    %390 = vmatpush.bf16.msra.mxu0 %v331
    %391 = vmatpush.bf16.msra.mxu0 %v330
    %392 = vmatpush.bf16.msra.mxu0 %v329
    %393 = vmatpush.bf16.msra.mxu0 %v328
    %394 = vmatpush.bf16.msra.mxu0 %v327
    %395 = vmatpush.bf16.msra.mxu0 %v326
    %396 = vmatpush.bf16.msra.mxu0 %v325
    %397 = vmatmul.bf16.gmra.mxu0 %v165
    %v398 = vpop.f32.mrf.mxu0
    %v399 = vadd.f32 %v115, %v398
    %v400 = vpop.f32.mrf.mxu0
    %v401 = vadd.f32 %v115, %v400
    %402 = vmatmul.bf16.gmra.mxu0 %v169
    %v403 = vpop.f32.mrf.mxu0
    %v404 = vadd.f32 %v115, %v403
    %v405 = vpop.f32.mrf.mxu0
    %v406 = vadd.f32 %v115, %v405
    %407 = vmatmul.bf16.gmra.mxu0 %v173
    %v408 = vpop.f32.mrf.mxu0
    %v409 = vadd.f32 %v115, %v408
    %v410 = vpop.f32.mrf.mxu0
    %v411 = vadd.f32 %v115, %v410
    %412 = vmatmul.bf16.gmra.mxu0 %v177
    %v413 = vpop.f32.mrf.mxu0
    %v414 = vadd.f32 %v115, %v413
    %v415 = vpop.f32.mrf.mxu0
    %v416 = vadd.f32 %v115, %v415
    %417 = vdwg.mxu0
    %418 = vmatpush.bf16.msra.mxu0 %v340
    %419 = vmatpush.bf16.msra.mxu0 %v339
    %420 = vmatpush.bf16.msra.mxu0 %v338
    %421 = vmatpush.bf16.msra.mxu0 %v337
    %422 = vmatpush.bf16.msra.mxu0 %v336
    %423 = vmatpush.bf16.msra.mxu0 %v335
    %424 = vmatpush.bf16.msra.mxu0 %v334
    %425 = vmatpush.bf16.msra.mxu0 %v333
    %426 = vmatmul.bf16.gmra.mxu0 %v166
    %v427 = vpop.f32.mrf.mxu0
    %v428 = vadd.f32 %v399, %v427
    %v429 = vpop.f32.mrf.mxu0
    %v430 = vadd.f32 %v401, %v429
    %431 = vmatmul.bf16.gmra.mxu0 %v170
    %v432 = vpop.f32.mrf.mxu0
    %v433 = vadd.f32 %v404, %v432
    %v434 = vpop.f32.mrf.mxu0
    %v435 = vadd.f32 %v406, %v434
    %436 = vmatmul.bf16.gmra.mxu0 %v174
    %v437 = vpop.f32.mrf.mxu0
    %v438 = vadd.f32 %v409, %v437
    %v439 = vpop.f32.mrf.mxu0
    %v440 = vadd.f32 %v411, %v439
    %441 = vmatmul.bf16.gmra.mxu0 %v178
    %v442 = vpop.f32.mrf.mxu0
    %v443 = vadd.f32 %v414, %v442
    %v444 = vpop.f32.mrf.mxu0
    %v445 = vadd.f32 %v416, %v444
    %446 = vdwg.mxu0
    %447 = vmatpush.bf16.msra.mxu0 %v348
    %448 = vmatpush.bf16.msra.mxu0 %v347
    %449 = vmatpush.bf16.msra.mxu0 %v346
    %450 = vmatpush.bf16.msra.mxu0 %v345
    %451 = vmatpush.bf16.msra.mxu0 %v344
    %452 = vmatpush.bf16.msra.mxu0 %v343
    %453 = vmatpush.bf16.msra.mxu0 %v342
    %454 = vmatpush.bf16.msra.mxu0 %v341
    %455 = vmatmul.bf16.gmra.mxu0 %v167
    %v456 = vpop.f32.mrf.mxu0
    %v457 = vadd.f32 %v428, %v456
    %v458 = vpop.f32.mrf.mxu0
    %v459 = vadd.f32 %v430, %v458
    %460 = vmatmul.bf16.gmra.mxu0 %v171
    %v461 = vpop.f32.mrf.mxu0
    %v462 = vadd.f32 %v433, %v461
    %v463 = vpop.f32.mrf.mxu0
    %v464 = vadd.f32 %v435, %v463
    %465 = vmatmul.bf16.gmra.mxu0 %v175
    %v466 = vpop.f32.mrf.mxu0
    %v467 = vadd.f32 %v438, %v466
    %v468 = vpop.f32.mrf.mxu0
    %v469 = vadd.f32 %v440, %v468
    %470 = vmatmul.bf16.gmra.mxu0 %v179
    %v471 = vpop.f32.mrf.mxu0
    %v472 = vadd.f32 %v443, %v471
    %v473 = vpop.f32.mrf.mxu0
    %v474 = vadd.f32 %v445, %v473
    %475 = vdwg.mxu0
    %476 = vmatpush.bf16.msra.mxu0 %v356
    %477 = vmatpush.bf16.msra.mxu0 %v355
    %478 = vmatpush.bf16.msra.mxu0 %v354
    %479 = vmatpush.bf16.msra.mxu0 %v353
    %480 = vmatpush.bf16.msra.mxu0 %v352
    %481 = vmatpush.bf16.msra.mxu0 %v351
    %482 = vmatpush.bf16.msra.mxu0 %v350
    %483 = vmatpush.bf16.msra.mxu0 %v349
    %484 = vmatmul.bf16.gmra.mxu0 %v168
    %v485 = vpop.f32.mrf.mxu0
    %v486 = vadd.f32 %v457, %v485
    %v487 = vpop.f32.mrf.mxu0
    %v488 = vadd.f32 %v459, %v487
    %489 = vmatmul.bf16.gmra.mxu0 %v172
    %v490 = vpop.f32.mrf.mxu0
    %v491 = vadd.f32 %v462, %v490
    %v492 = vpop.f32.mrf.mxu0
    %v493 = vadd.f32 %v464, %v492
    %494 = vmatmul.bf16.gmra.mxu0 %v176
    %v495 = vpop.f32.mrf.mxu0
    %v496 = vadd.f32 %v467, %v495
    %v497 = vpop.f32.mrf.mxu0
    %v498 = vadd.f32 %v469, %v497
    %499 = vmatmul.bf16.gmra.mxu0 %v180
    %v500 = vpop.f32.mrf.mxu0
    %v501 = vadd.f32 %v472, %v500
    %v502 = vpop.f32.mrf.mxu0
    %v503 = vadd.f32 %v474, %v502
    %504 = vdwg.mxu0
    %v505 = vld [vmem:[%s3] sm:$0xff]
    %v506 = vld [vmem:[%s3 + $0x8] sm:$0xff]
    %v507 = vld [vmem:[%s3 + $0x10] sm:$0xff]
    %v508 = vld [vmem:[%s3 + $0x18] sm:$0xff]
    %v509 = vld [vmem:[%s3 + $0x20] sm:$0xff]
    %v510 = vld [vmem:[%s3 + $0x28] sm:$0xff]
    %v511 = vld [vmem:[%s3 + $0x30] sm:$0xff]
    %v512 = vld [vmem:[%s3 + $0x38] sm:$0xff]
    %v513 = vadd.f32 %v486, %v505
    %v514 = vadd.f32 %v488, %v506
    %v515 = vadd.f32 %v491, %v507
    %v516 = vadd.f32 %v493, %v508
    %v517 = vadd.f32 %v496, %v509
    %v518 = vadd.f32 %v498, %v510
    %v519 = vadd.f32 %v501, %v511
    %v520 = vadd.f32 %v503, %v512
    %521 = vst [vmem:[%s4] sm:$0xff] %v513
    %522 = vst [vmem:[%s4 + $0x8] sm:$0xff] %v514
    %523 = vst [vmem:[%s4 + $0x10] sm:$0xff] %v515
    %524 = vst [vmem:[%s4 + $0x18] sm:$0xff] %v516
    %525 = vst [vmem:[%s4 + $0x20] sm:$0xff] %v517
    %526 = vst [vmem:[%s4 + $0x28] sm:$0xff] %v518
    %527 = vst [vmem:[%s4 + $0x30] sm:$0xff] %v519
    %528 = vst [vmem:[%s4 + $0x38] sm:$0xff] %v520
    // Predicated region
    $region22: #{gpt_forward.21} parent=1 // pred_check
      _
    $region23: #{gpt_forward.21} parent=1 // pred_check_branch
      %530 = sbr.rel (0) target = $region25
    $region24: #{gpt_forward.21} parent=1 // pred_region
      _
    $region25: #{gpt_forward.21} parent=1 // pred_fallthru
      _
    // Predicated region
    $region26: #{gpt_forward.21} parent=1 // pred_check
      _
    $region27: #{gpt_forward.21} parent=1 // pred_check_branch
      %532 = sbr.rel (0) target = $region29
    $region28: #{gpt_forward.21} parent=1 // pred_region
      _
    $region29: #{gpt_forward.21} parent=1 // pred_fallthru
      _
    %533 = vsyncpa [#allocation3], 1

</llo_original>
